<compile_context>
chip_gen: v6e
topology: v6e:2x2x1
jax: 0.10.0
libtpu: 0.0.40
codegen_flags: <defaults>
</compile_context>

<pallas_src>
import functools

import jax
import jax.numpy as jnp
from jax import lax
from jax.experimental import pallas as pl
from jax.experimental.pallas import tpu as pltpu

P_DROP = 0.1      # Dropout(p=0.1)
EPS = 1e-12       # LayerNorm eps
HIDDEN = 768      # LayerNorm((768,))

KEEP_SCALE = 1.0 / (1.0 - P_DROP)
# Treat uniform 32-bit random words as signed int32: P(bits < T) == P_DROP.
_DROP_THRESHOLD_I32 = int(P_DROP * (1 << 32)) - (1 << 31)   # == -1717986919


def _round_up(x, m):
    return ((x + m - 1) // m) * m


def _dln_body(bits_i32, x_ref, res_ref, gamma_ref, beta_ref, out_ref):
    """Shared dropout + add + layernorm math on one [tile, H] block."""
    x = x_ref[...].astype(jnp.float32)
    res = res_ref[...].astype(jnp.float32)

    # ---- Dropout (training mode, inverted scaling) ----
    keep = bits_i32 >= jnp.int32(_DROP_THRESHOLD_I32)
    h = res + jnp.where(keep, x * KEEP_SCALE, 0.0)

    # ---- LayerNorm over the hidden (lane) axis ----
    mean = jnp.mean(h, axis=-1, keepdims=True)
    c = h - mean
    var = jnp.mean(c * c, axis=-1, keepdims=True)
    inv = lax.rsqrt(var + EPS)
    y = c * inv * gamma_ref[...].astype(jnp.float32) + beta_ref[...].astype(jnp.float32)

    out_ref[...] = y.astype(out_ref.dtype)


def _dln_kernel_prng(seed_ref,             # scalar-prefetch (SMEM)
                     x_ref, res_ref,       # [tile, H] VMEM tiles
                     gamma_ref, beta_ref,  # [1, H] affine params
                     out_ref):
    # In-kernel hardware PRNG (TPU / Mosaic only); seeded per grid step so the
    # "parallel" dimension semantics stay correct.
    pltpu.prng_seed(seed_ref[0] + pl.program_id(0))
    bits = pltpu.bitcast(pltpu.prng_random_bits(x_ref.shape), jnp.int32)
    _dln_body(bits, x_ref, res_ref, gamma_ref, beta_ref, out_ref)


def _dln_kernel_bits(x_ref, res_ref, bits_ref, gamma_ref, beta_ref, out_ref):
    # Fallback path: random bits precomputed outside the kernel (works under
    # the CPU interpret lowering where prng_seed is unavailable).
    _dln_body(bits_ref[...], x_ref, res_ref, gamma_ref, beta_ref, out_ref)


@functools.partial(jax.jit, static_argnames=("tile_rows",))
def dropout_add_layernorm(x169, x140, gamma, beta, seed, *, tile_rows=1024):
    B, S, H = x169.shape
    assert H == HIDDEN
    rows = B * S

    # Tile size: as large as requested but no larger than the (8-aligned)
    # problem; pad the row axis so the grid tiles it exactly.
    tile = min(tile_rows, _round_up(rows, 8))
    padded_rows = _round_up(rows, tile)
    grid = (padded_rows // tile,)

    x169_2d = x169.reshape(rows, H)
    x140_2d = x140.reshape(rows, H)
    if padded_rows != rows:
        pad = padded_rows - rows
        x169_2d = jnp.pad(x169_2d, ((0, pad), (0, 0)))
        x140_2d = jnp.pad(x140_2d, ((0, pad), (0, 0)))

    gamma_2d = gamma.reshape(1, H)
    beta_2d = beta.reshape(1, H)

    compiler_params = pltpu.CompilerParams(
        # Grid steps are independent (per-step PRNG seed / precomputed bits),
        # so let Mosaic shard them across TensorCores (helps v7x).
        dimension_semantics=("parallel",),
        # Allow 1024-row f32 tiles to double-buffer even under v5e's small
        # default scoped-VMEM limit; still well under v7x's 64 MiB VMEM.
        vmem_limit_bytes=48 * 1024 * 1024,
    )
    out_shape = jax.ShapeDtypeStruct((padded_rows, H), x169.dtype)

    if jax.default_backend() == "tpu":
        row_spec = pl.BlockSpec((tile, H), lambda i, seed_ref: (i, 0))
        par_spec = pl.BlockSpec((1, H), lambda i, seed_ref: (0, 0))
        out_2d = pl.pallas_call(
            _dln_kernel_prng,
            out_shape=out_shape,
            grid_spec=pltpu.PrefetchScalarGridSpec(
                num_scalar_prefetch=1,
                grid=grid,
                in_specs=[row_spec, row_spec, par_spec, par_spec],
                out_specs=row_spec,
            ),
            compiler_params=compiler_params,
        )(seed, x169_2d, x140_2d, gamma_2d, beta_2d)
    else:
        # Non-TPU / interpret fallback: generate the dropout bits with the
        # standard JAX PRNG and pass them as a regular input.
        key = jax.random.PRNGKey(seed[0])
        bits_u32 = jax.random.bits(key, (padded_rows, H), dtype=jnp.uint32)
        bits_i32 = lax.bitcast_convert_type(bits_u32, jnp.int32)

        row_spec = pl.BlockSpec((tile, H), lambda i: (i, 0))
        par_spec = pl.BlockSpec((1, H), lambda i: (0, 0))
        out_2d = pl.pallas_call(
            _dln_kernel_bits,
            out_shape=out_shape,
            grid_spec=pltpu.PrefetchScalarGridSpec(
                num_scalar_prefetch=0,
                grid=grid,
                in_specs=[row_spec, row_spec, row_spec, par_spec, par_spec],
                out_specs=row_spec,
            ),
            compiler_params=compiler_params,
        )(x169_2d, x140_2d, bits_i32, gamma_2d, beta_2d)

    if padded_rows != rows:
        out_2d = out_2d[:rows]
    return out_2d.reshape(B, S, H)


if __name__ == "__main__":
    # Shapes from the module: x169, x140 are [1, 384, 768]; hidden must be 768.
    B, S, H = 1, 384, HIDDEN
    key = jax.random.PRNGKey(0)
    k1, k2 = jax.random.split(key)
    x169 = jax.random.normal(k1, (B, S, H), dtype=jnp.float32)
    x140 = jax.random.normal(k2, (B, S, H), dtype=jnp.float32)

    # LayerNorm elementwise-affine params (nn.LayerNorm default init).
    gamma = jnp.ones((H,), dtype=jnp.float32)
    beta = jnp.zeros((H,), dtype=jnp.float32)

    seed = jnp.array([0], dtype=jnp.int32)  # deterministic dropout seed

    out = dropout_add_layernorm(x169, x140, gamma, beta, seed)
    jax.block_until_ready(out)

    assert out.shape == (B, S, H)
    assert bool(jnp.isfinite(out).all())
    print("KERNEL_OK")
</pallas_src>

<mosaic_0001>
module attributes {stable_mosaic.version = 11 : i64} {
  func.func @_dln_kernel_bits(%arg0: i32, %arg1: memref<384x768xf32, #tpu.memory_space<vmem>>, %arg2: memref<384x768xf32, #tpu.memory_space<vmem>>, %arg3: memref<384x768xi32, #tpu.memory_space<vmem>>, %arg4: memref<1x768xf32, #tpu.memory_space<vmem>>, %arg5: memref<1x768xf32, #tpu.memory_space<vmem>>, %arg6: memref<384x768xf32, #tpu.memory_space<vmem>>) attributes {dimension_semantics = [#tpu.dimension_semantics<parallel>], iteration_bounds = array<i64: 1>, scalar_prefetch = 0 : i64, scratch_operands = 0 : i64, tpu.core_type = #tpu.core_type<tc>, window_params = [{transform_indices = @transform_0, window_bounds = array<i64: 384, 768>}, {transform_indices = @transform_1, window_bounds = array<i64: 384, 768>}, {transform_indices = @transform_2, window_bounds = array<i64: 384, 768>}, {pipeline_mode = #tpu.pipeline_mode<synchronous>, transform_indices = @transform_3, window_bounds = array<i64: 1, 768>}, {pipeline_mode = #tpu.pipeline_mode<synchronous>, transform_indices = @transform_4, window_bounds = array<i64: 1, 768>}, {transform_indices = @transform_5, window_bounds = array<i64: 384, 768>}]} {
    %c0 = arith.constant 0 : index
    %c0_0 = arith.constant 0 : index
    %0 = vector.load %arg3[%c0, %c0_0] : memref<384x768xi32, #tpu.memory_space<vmem>>, vector<384x768xi32>
    %c0_1 = arith.constant 0 : index
    %c0_2 = arith.constant 0 : index
    %1 = vector.load %arg1[%c0_1, %c0_2] : memref<384x768xf32, #tpu.memory_space<vmem>>, vector<384x768xf32>
    %c0_3 = arith.constant 0 : index
    %c0_4 = arith.constant 0 : index
    %2 = vector.load %arg2[%c0_3, %c0_4] : memref<384x768xf32, #tpu.memory_space<vmem>>, vector<384x768xf32>
    %c-1717986919_i32 = arith.constant -1717986919 : i32
    %3 = vector.broadcast %c-1717986919_i32 : i32 to vector<384x768xi32>
    %4 = arith.cmpi sge, %0, %3 : vector<384x768xi32>
    %cst = arith.constant 1.11111116 : f32
    %5 = vector.broadcast %cst : f32 to vector<384x768xf32>
    %6 = arith.mulf %1, %5 : vector<384x768xf32>
    %cst_5 = arith.constant 0.000000e+00 : f32
    %7 = vector.broadcast %cst_5 : f32 to vector<384x768xf32>
    %8 = arith.select %4, %6, %7 : vector<384x768xi1>, vector<384x768xf32>
    %9 = arith.addf %2, %8 : vector<384x768xf32>
    %cst_6 = arith.constant dense<0.000000e+00> : vector<384xf32>
    %10 = vector.multi_reduction <add>, %9, %cst_6 [1] : vector<384x768xf32> to vector<384xf32>
    %11 = vector.shape_cast %10 : vector<384xf32> to vector<384x1xf32>
    %cst_7 = arith.constant 7.680000e+02 : f32
    %12 = vector.broadcast %cst_7 : f32 to vector<384x1xf32>
    %13 = arith.divf %11, %12 : vector<384x1xf32>
    %14 = vector.broadcast %13 : vector<384x1xf32> to vector<384x768xf32>
    %15 = arith.subf %9, %14 : vector<384x768xf32>
    %16 = arith.mulf %15, %15 : vector<384x768xf32>
    %cst_8 = arith.constant dense<0.000000e+00> : vector<384xf32>
    %17 = vector.multi_reduction <add>, %16, %cst_8 [1] : vector<384x768xf32> to vector<384xf32>
    %18 = vector.shape_cast %17 : vector<384xf32> to vector<384x1xf32>
    %cst_9 = arith.constant 7.680000e+02 : f32
    %19 = vector.broadcast %cst_9 : f32 to vector<384x1xf32>
    %20 = arith.divf %18, %19 : vector<384x1xf32>
    %cst_10 = arith.constant 9.99999996E-13 : f32
    %21 = vector.broadcast %cst_10 : f32 to vector<384x1xf32>
    %22 = arith.addf %20, %21 : vector<384x1xf32>
    %23 = math.rsqrt %22 : vector<384x1xf32>
    %24 = vector.broadcast %23 : vector<384x1xf32> to vector<384x768xf32>
    %25 = arith.mulf %15, %24 : vector<384x768xf32>
    %c0_11 = arith.constant 0 : index
    %c0_12 = arith.constant 0 : index
    %26 = vector.load %arg4[%c0_11, %c0_12] : memref<1x768xf32, #tpu.memory_space<vmem>>, vector<1x768xf32>
    %27 = vector.broadcast %26 : vector<1x768xf32> to vector<384x768xf32>
    %28 = arith.mulf %25, %27 : vector<384x768xf32>
    %c0_13 = arith.constant 0 : index
    %c0_14 = arith.constant 0 : index
    %29 = vector.load %arg5[%c0_13, %c0_14] : memref<1x768xf32, #tpu.memory_space<vmem>>, vector<1x768xf32>
    %30 = vector.broadcast %29 : vector<1x768xf32> to vector<384x768xf32>
    %31 = arith.addf %28, %30 : vector<384x768xf32>
    %c0_15 = arith.constant 0 : index
    %c0_16 = arith.constant 0 : index
    %32 = vector.load %arg6[%c0_15, %c0_16] : memref<384x768xf32, #tpu.memory_space<vmem>>, vector<384x768xf32>
    tpu.vector_store %arg6[%c0_15, %c0_16], %31 {strides = array<i32>} : memref<384x768xf32, #tpu.memory_space<vmem>>, vector<384x768xf32>,
    return
  }
  func.func @transform_0(%arg0: i32) -> (i32, i32) {
    %c0_i32 = arith.constant 0 : i32
    %c0_i32_0 = arith.constant 0 : i32
    return %arg0, %c0_i32 : i32, i32
  }
  func.func @transform_1(%arg0: i32) -> (i32, i32) {
    %c0_i32 = arith.constant 0 : i32
    %c0_i32_0 = arith.constant 0 : i32
    return %arg0, %c0_i32 : i32, i32
  }
  func.func @transform_2(%arg0: i32) -> (i32, i32) {
    %c0_i32 = arith.constant 0 : i32
    %c0_i32_0 = arith.constant 0 : i32
    return %arg0, %c0_i32 : i32, i32
  }
  func.func @transform_3(%arg0: i32) -> (i32, i32) {
    %c0_i32 = arith.constant 0 : i32
    %c0_i32_0 = arith.constant 0 : i32
    %c0_i32_1 = arith.constant 0 : i32
    return %c0_i32, %c0_i32_0 : i32, i32
  }
  func.func @transform_4(%arg0: i32) -> (i32, i32) {
    %c0_i32 = arith.constant 0 : i32
    %c0_i32_0 = arith.constant 0 : i32
    %c0_i32_1 = arith.constant 0 : i32
    return %c0_i32, %c0_i32_0 : i32, i32
  }
  func.func @transform_5(%arg0: i32) -> (i32, i32) {
    %c0_i32 = arith.constant 0 : i32
    %c0_i32_0 = arith.constant 0 : i32
    return %arg0, %c0_i32 : i32, i32
  }
}

</mosaic_0001>

<llo_original>
// kernel: dropout_add_layernorm.1
$region0: #{dropout_add_layernorm.1}
  #allocation0 [shape = 'u32[]', space=smem, size = 0x4, offset = 0x4, fixed_abs, tag = 'smem constant byte address 0x4 - core index']
  #allocation1 [shape = 'u32[144,128]{1,0:T(1,128)}', space=vmem, size = 0x12000, scoped, tag = 'internal scratch']
  %s0 = inlined_call_operand.vmem [shape: f32[384,768], index: 0, kind: input, shape index: {}]
  %s1 = inlined_call_operand.hbm [shape: f32[384,768], index: 1, kind: input, shape index: {}]
  %s2 = inlined_call_operand.vmem [shape: s32[384,768], index: 2, kind: input, shape index: {}]
  %s3 = inlined_call_operand.vmem [shape: f32[1,768], index: 3, kind: input, shape index: {}]
  %s4 = inlined_call_operand.vmem [shape: f32[1,768], index: 4, kind: input, shape index: {}]
  %s5 = inlined_call_operand.hbm [shape: f32[384,768], index: 5, kind: output, shape index: {}]
  %s6 = sld [smem:[#allocation0]]
  $region34: #{dropout_add_layernorm.1} parent=0
    _
  %s8 = ssub.s32 1, %s6
  %s9 = scalar_select 0, %s8, %s6
  $region1: #{dropout_add_layernorm.1} parent=0
    #allocation2 [shape = 'u8[1179648]{0}', space=vmem, size = 0x120000, scoped, tag = 'input window, operand 1, single buffered']
    #allocation3 [shape = 's32[1]{0}', space=sflag, size = 0x4, scoped, tag = 'scoped memory for dropout_add_layernorm.1']
    #allocation4 [shape = 's32[1]{0}', space=sflag, size = 0x4, scoped, tag = 'scoped memory for dropout_add_layernorm.1']
    #allocation5 [shape = 'u8[1179648]{0}', space=vmem, size = 0x120000, scoped, tag = 'output window, operand 0, single buffered']
    %10 = vsyncpa [#allocation3], 0
    %11 = vsyncpa [#allocation4], 0
    // Predicated region
    $region2: #{dropout_add_layernorm.1} parent=1 // pred_check
      _
    $region3: #{dropout_add_layernorm.1} parent=1 // pred_check_branch
      %13 = sbr.rel (0) target = $region5
    $region4: #{dropout_add_layernorm.1} parent=1 // pred_region
      _
    $region5: #{dropout_add_layernorm.1} parent=1 // pred_fallthru
      _
    // Predicated region
    $region6: #{dropout_add_layernorm.1} parent=1 // pred_check
      _
    $region7: #{dropout_add_layernorm.1} parent=1 // pred_check_branch
      %15 = sbr.rel (0) target = $region9
    $region8: #{dropout_add_layernorm.1} parent=1 // pred_region
      %s17 = ssub.s32 36864, 36864
      %18 = vsyncadd [#allocation3], %s17
      %s19 = sshll.u32 [#allocation2], 4
      %s20 = int_to_ptr.vmem [resolvable:$true] %s19
      %25 = dma.hbm_to_vmem [thread:$0]  %s1, 36864, %s20, [#allocation3], 768, 768, 48
    $region9: #{dropout_add_layernorm.1} parent=1 // pred_fallthru
      _
    // Predicated region
    $region10: #{dropout_add_layernorm.1} parent=1 // pred_check
      _
    $region11: #{dropout_add_layernorm.1} parent=1 // pred_check_branch
      %27 = sbr.rel (0) target = $region13
    $region12: #{dropout_add_layernorm.1} parent=1 // pred_region
      _
    $region13: #{dropout_add_layernorm.1} parent=1 // pred_fallthru
      _
    // Predicated region
    $region14: #{dropout_add_layernorm.1} parent=1 // pred_check
      _
    $region15: #{dropout_add_layernorm.1} parent=1 // pred_check_branch
      %29 = sbr.rel (0) target = $region17
    $region16: #{dropout_add_layernorm.1} parent=1 // pred_region
      _
    $region17: #{dropout_add_layernorm.1} parent=1 // pred_fallthru
      _
    // Predicated region
    $region18: #{dropout_add_layernorm.1} parent=1 // pred_check
      _
    $region19: #{dropout_add_layernorm.1} parent=1 // pred_check_branch
      %31 = sbr.rel (0) target = $region21
    $region20: #{dropout_add_layernorm.1} parent=1 // pred_region
      _
    $region21: #{dropout_add_layernorm.1} parent=1 // pred_fallthru
      _
    // Predicated region
    $region22: #{dropout_add_layernorm.1} parent=1 // pred_check
      _
    $region23: #{dropout_add_layernorm.1} parent=1 // pred_check_branch
      %33 = sbr.rel (0) target = $region25
    $region24: #{dropout_add_layernorm.1} parent=1 // pred_region
      %34 = dma.done [#allocation3], 36864
    $region25: #{dropout_add_layernorm.1} parent=1 // pred_fallthru
      _
    %v35 = vld [vmem:[%s2] sm:$0xff]
    %v36 = vld [vmem:[%s2 + $0x8] sm:$0xff]
    %v37 = vld [vmem:[%s2 + $0x10] sm:$0xff]
    %v38 = vld [vmem:[%s2 + $0x18] sm:$0xff]
    %v39 = vld [vmem:[%s2 + $0x20] sm:$0xff]
    %v40 = vld [vmem:[%s2 + $0x28] sm:$0xff]
    %v41 = vld [vmem:[%s2 + $0x30] sm:$0xff]
    %v42 = vld [vmem:[%s2 + $0x38] sm:$0xff]
    %v43 = vld [vmem:[%s2 + $0x40] sm:$0xff]
    %v44 = vld [vmem:[%s2 + $0x48] sm:$0xff]
    %v45 = vld [vmem:[%s2 + $0x50] sm:$0xff]
    %v46 = vld [vmem:[%s2 + $0x58] sm:$0xff]
    %v47 = vld [vmem:[%s2 + $0x60] sm:$0xff]
    %v48 = vld [vmem:[%s2 + $0x68] sm:$0xff]
    %v49 = vld [vmem:[%s2 + $0x70] sm:$0xff]
    %v50 = vld [vmem:[%s2 + $0x78] sm:$0xff]
    %v51 = vld [vmem:[%s2 + $0x80] sm:$0xff]
    %v52 = vld [vmem:[%s2 + $0x88] sm:$0xff]
    %v53 = vld [vmem:[%s2 + $0x90] sm:$0xff]
    %v54 = vld [vmem:[%s2 + $0x98] sm:$0xff]
    %v55 = vld [vmem:[%s2 + $0xa0] sm:$0xff]
    %v56 = vld [vmem:[%s2 + $0xa8] sm:$0xff]
    %v57 = vld [vmem:[%s2 + $0xb0] sm:$0xff]
    %v58 = vld [vmem:[%s2 + $0xb8] sm:$0xff]
    %v59 = vld [vmem:[%s2 + $0xc0] sm:$0xff]
    %v60 = vld [vmem:[%s2 + $0xc8] sm:$0xff]
    %v61 = vld [vmem:[%s2 + $0xd0] sm:$0xff]
    %v62 = vld [vmem:[%s2 + $0xd8] sm:$0xff]
    %v63 = vld [vmem:[%s2 + $0xe0] sm:$0xff]
    %v64 = vld [vmem:[%s2 + $0xe8] sm:$0xff]
    %v65 = vld [vmem:[%s2 + $0xf0] sm:$0xff]
    %v66 = vld [vmem:[%s2 + $0xf8] sm:$0xff]
    %v67 = vld [vmem:[%s2 + $0x100] sm:$0xff]
    %v68 = vld [vmem:[%s2 + $0x108] sm:$0xff]
    %v69 = vld [vmem:[%s2 + $0x110] sm:$0xff]
    %v70 = vld [vmem:[%s2 + $0x118] sm:$0xff]
    %v71 = vld [vmem:[%s2 + $0x120] sm:$0xff]
    %v72 = vld [vmem:[%s2 + $0x128] sm:$0xff]
    %v73 = vld [vmem:[%s2 + $0x130] sm:$0xff]
    %v74 = vld [vmem:[%s2 + $0x138] sm:$0xff]
    %v75 = vld [vmem:[%s2 + $0x140] sm:$0xff]
    %v76 = vld [vmem:[%s2 + $0x148] sm:$0xff]
    %v77 = vld [vmem:[%s2 + $0x150] sm:$0xff]
    %v78 = vld [vmem:[%s2 + $0x158] sm:$0xff]
    %v79 = vld [vmem:[%s2 + $0x160] sm:$0xff]
    %v80 = vld [vmem:[%s2 + $0x168] sm:$0xff]
    %v81 = vld [vmem:[%s2 + $0x170] sm:$0xff]
    %v82 = vld [vmem:[%s2 + $0x178] sm:$0xff]
    %v83 = vld [vmem:[%s2 + $0x180] sm:$0xff]
    %v84 = vld [vmem:[%s2 + $0x188] sm:$0xff]
    %v85 = vld [vmem:[%s2 + $0x190] sm:$0xff]
    %v86 = vld [vmem:[%s2 + $0x198] sm:$0xff]
    %v87 = vld [vmem:[%s2 + $0x1a0] sm:$0xff]
    %v88 = vld [vmem:[%s2 + $0x1a8] sm:$0xff]
    %v89 = vld [vmem:[%s2 + $0x1b0] sm:$0xff]
    %v90 = vld [vmem:[%s2 + $0x1b8] sm:$0xff]
    %v91 = vld [vmem:[%s2 + $0x1c0] sm:$0xff]
    %v92 = vld [vmem:[%s2 + $0x1c8] sm:$0xff]
    %v93 = vld [vmem:[%s2 + $0x1d0] sm:$0xff]
    %v94 = vld [vmem:[%s2 + $0x1d8] sm:$0xff]
    %v95 = vld [vmem:[%s2 + $0x1e0] sm:$0xff]
    %v96 = vld [vmem:[%s2 + $0x1e8] sm:$0xff]
    %v97 = vld [vmem:[%s2 + $0x1f0] sm:$0xff]
    %v98 = vld [vmem:[%s2 + $0x1f8] sm:$0xff]
    %v99 = vld [vmem:[%s2 + $0x200] sm:$0xff]
    %v100 = vld [vmem:[%s2 + $0x208] sm:$0xff]
    %v101 = vld [vmem:[%s2 + $0x210] sm:$0xff]
    %v102 = vld [vmem:[%s2 + $0x218] sm:$0xff]
    %v103 = vld [vmem:[%s2 + $0x220] sm:$0xff]
    %v104 = vld [vmem:[%s2 + $0x228] sm:$0xff]
    %v105 = vld [vmem:[%s2 + $0x230] sm:$0xff]
    %v106 = vld [vmem:[%s2 + $0x238] sm:$0xff]
    %v107 = vld [vmem:[%s2 + $0x240] sm:$0xff]
    %v108 = vld [vmem:[%s2 + $0x248] sm:$0xff]
    %v109 = vld [vmem:[%s2 + $0x250] sm:$0xff]
    %v110 = vld [vmem:[%s2 + $0x258] sm:$0xff]
    %v111 = vld [vmem:[%s2 + $0x260] sm:$0xff]
    %v112 = vld [vmem:[%s2 + $0x268] sm:$0xff]
    %v113 = vld [vmem:[%s2 + $0x270] sm:$0xff]
    %v114 = vld [vmem:[%s2 + $0x278] sm:$0xff]
    %v115 = vld [vmem:[%s2 + $0x280] sm:$0xff]
    %v116 = vld [vmem:[%s2 + $0x288] sm:$0xff]
    %v117 = vld [vmem:[%s2 + $0x290] sm:$0xff]
    %v118 = vld [vmem:[%s2 + $0x298] sm:$0xff]
    %v119 = vld [vmem:[%s2 + $0x2a0] sm:$0xff]
    %v120 = vld [vmem:[%s2 + $0x2a8] sm:$0xff]
    %v121 = vld [vmem:[%s2 + $0x2b0] sm:$0xff]
    %v122 = vld [vmem:[%s2 + $0x2b8] sm:$0xff]
    %v123 = vld [vmem:[%s2 + $0x2c0] sm:$0xff]
    %v124 = vld [vmem:[%s2 + $0x2c8] sm:$0xff]
    %v125 = vld [vmem:[%s2 + $0x2d0] sm:$0xff]
    %v126 = vld [vmem:[%s2 + $0x2d8] sm:$0xff]
    %v127 = vld [vmem:[%s2 + $0x2e0] sm:$0xff]
    %v128 = vld [vmem:[%s2 + $0x2e8] sm:$0xff]
    %v129 = vld [vmem:[%s2 + $0x2f0] sm:$0xff]
    %v130 = vld [vmem:[%s2 + $0x2f8] sm:$0xff]
    %v131 = vld [vmem:[%s2 + $0x300] sm:$0xff]
    %v132 = vld [vmem:[%s2 + $0x308] sm:$0xff]
    %v133 = vld [vmem:[%s2 + $0x310] sm:$0xff]
    %v134 = vld [vmem:[%s2 + $0x318] sm:$0xff]
    %v135 = vld [vmem:[%s2 + $0x320] sm:$0xff]
    %v136 = vld [vmem:[%s2 + $0x328] sm:$0xff]
    %v137 = vld [vmem:[%s2 + $0x330] sm:$0xff]
    %v138 = vld [vmem:[%s2 + $0x338] sm:$0xff]
    %v139 = vld [vmem:[%s2 + $0x340] sm:$0xff]
    %v140 = vld [vmem:[%s2 + $0x348] sm:$0xff]
    %v141 = vld [vmem:[%s2 + $0x350] sm:$0xff]
    %v142 = vld [vmem:[%s2 + $0x358] sm:$0xff]
    %v143 = vld [vmem:[%s2 + $0x360] sm:$0xff]
    %v144 = vld [vmem:[%s2 + $0x368] sm:$0xff]
    %v145 = vld [vmem:[%s2 + $0x370] sm:$0xff]
    %v146 = vld [vmem:[%s2 + $0x378] sm:$0xff]
    %v147 = vld [vmem:[%s2 + $0x380] sm:$0xff]
    %v148 = vld [vmem:[%s2 + $0x388] sm:$0xff]
    %v149 = vld [vmem:[%s2 + $0x390] sm:$0xff]
    %v150 = vld [vmem:[%s2 + $0x398] sm:$0xff]
    %v151 = vld [vmem:[%s2 + $0x3a0] sm:$0xff]
    %v152 = vld [vmem:[%s2 + $0x3a8] sm:$0xff]
    %v153 = vld [vmem:[%s2 + $0x3b0] sm:$0xff]
    %v154 = vld [vmem:[%s2 + $0x3b8] sm:$0xff]
    %v155 = vld [vmem:[%s2 + $0x3c0] sm:$0xff]
    %v156 = vld [vmem:[%s2 + $0x3c8] sm:$0xff]
    %v157 = vld [vmem:[%s2 + $0x3d0] sm:$0xff]
    %v158 = vld [vmem:[%s2 + $0x3d8] sm:$0xff]
    %v159 = vld [vmem:[%s2 + $0x3e0] sm:$0xff]
    %v160 = vld [vmem:[%s2 + $0x3e8] sm:$0xff]
    %v161 = vld [vmem:[%s2 + $0x3f0] sm:$0xff]
    %v162 = vld [vmem:[%s2 + $0x3f8] sm:$0xff]
    %v163 = vld [vmem:[%s2 + $0x400] sm:$0xff]
    %v164 = vld [vmem:[%s2 + $0x408] sm:$0xff]
    %v165 = vld [vmem:[%s2 + $0x410] sm:$0xff]
    %v166 = vld [vmem:[%s2 + $0x418] sm:$0xff]
    %v167 = vld [vmem:[%s2 + $0x420] sm:$0xff]
    %v168 = vld [vmem:[%s2 + $0x428] sm:$0xff]
    %v169 = vld [vmem:[%s2 + $0x430] sm:$0xff]
    %v170 = vld [vmem:[%s2 + $0x438] sm:$0xff]
    %v171 = vld [vmem:[%s2 + $0x440] sm:$0xff]
    %v172 = vld [vmem:[%s2 + $0x448] sm:$0xff]
    %v173 = vld [vmem:[%s2 + $0x450] sm:$0xff]
    %v174 = vld [vmem:[%s2 + $0x458] sm:$0xff]
    %v175 = vld [vmem:[%s2 + $0x460] sm:$0xff]
    %v176 = vld [vmem:[%s2 + $0x468] sm:$0xff]
    %v177 = vld [vmem:[%s2 + $0x470] sm:$0xff]
    %v178 = vld [vmem:[%s2 + $0x478] sm:$0xff]
    %v179 = vld [vmem:[%s2 + $0x480] sm:$0xff]
    %v180 = vld [vmem:[%s2 + $0x488] sm:$0xff]
    %v181 = vld [vmem:[%s2 + $0x490] sm:$0xff]
    %v182 = vld [vmem:[%s2 + $0x498] sm:$0xff]
    %v183 = vld [vmem:[%s2 + $0x4a0] sm:$0xff]
    %v184 = vld [vmem:[%s2 + $0x4a8] sm:$0xff]
    %v185 = vld [vmem:[%s2 + $0x4b0] sm:$0xff]
    %v186 = vld [vmem:[%s2 + $0x4b8] sm:$0xff]
    %v187 = vld [vmem:[%s2 + $0x4c0] sm:$0xff]
    %v188 = vld [vmem:[%s2 + $0x4c8] sm:$0xff]
    %v189 = vld [vmem:[%s2 + $0x4d0] sm:$0xff]
    %v190 = vld [vmem:[%s2 + $0x4d8] sm:$0xff]
    %v191 = vld [vmem:[%s2 + $0x4e0] sm:$0xff]
    %v192 = vld [vmem:[%s2 + $0x4e8] sm:$0xff]
    %v193 = vld [vmem:[%s2 + $0x4f0] sm:$0xff]
    %v194 = vld [vmem:[%s2 + $0x4f8] sm:$0xff]
    %v195 = vld [vmem:[%s2 + $0x500] sm:$0xff]
    %v196 = vld [vmem:[%s2 + $0x508] sm:$0xff]
    %v197 = vld [vmem:[%s2 + $0x510] sm:$0xff]
    %v198 = vld [vmem:[%s2 + $0x518] sm:$0xff]
    %v199 = vld [vmem:[%s2 + $0x520] sm:$0xff]
    %v200 = vld [vmem:[%s2 + $0x528] sm:$0xff]
    %v201 = vld [vmem:[%s2 + $0x530] sm:$0xff]
    %v202 = vld [vmem:[%s2 + $0x538] sm:$0xff]
    %v203 = vld [vmem:[%s2 + $0x540] sm:$0xff]
    %v204 = vld [vmem:[%s2 + $0x548] sm:$0xff]
    %v205 = vld [vmem:[%s2 + $0x550] sm:$0xff]
    %v206 = vld [vmem:[%s2 + $0x558] sm:$0xff]
    %v207 = vld [vmem:[%s2 + $0x560] sm:$0xff]
    %v208 = vld [vmem:[%s2 + $0x568] sm:$0xff]
    %v209 = vld [vmem:[%s2 + $0x570] sm:$0xff]
    %v210 = vld [vmem:[%s2 + $0x578] sm:$0xff]
    %v211 = vld [vmem:[%s2 + $0x580] sm:$0xff]
    %v212 = vld [vmem:[%s2 + $0x588] sm:$0xff]
    %v213 = vld [vmem:[%s2 + $0x590] sm:$0xff]
    %v214 = vld [vmem:[%s2 + $0x598] sm:$0xff]
    %v215 = vld [vmem:[%s2 + $0x5a0] sm:$0xff]
    %v216 = vld [vmem:[%s2 + $0x5a8] sm:$0xff]
    %v217 = vld [vmem:[%s2 + $0x5b0] sm:$0xff]
    %v218 = vld [vmem:[%s2 + $0x5b8] sm:$0xff]
    %v219 = vld [vmem:[%s2 + $0x5c0] sm:$0xff]
    %v220 = vld [vmem:[%s2 + $0x5c8] sm:$0xff]
    %v221 = vld [vmem:[%s2 + $0x5d0] sm:$0xff]
    %v222 = vld [vmem:[%s2 + $0x5d8] sm:$0xff]
    %v223 = vld [vmem:[%s2 + $0x5e0] sm:$0xff]
    %v224 = vld [vmem:[%s2 + $0x5e8] sm:$0xff]
    %v225 = vld [vmem:[%s2 + $0x5f0] sm:$0xff]
    %v226 = vld [vmem:[%s2 + $0x5f8] sm:$0xff]
    %v227 = vld [vmem:[%s2 + $0x600] sm:$0xff]
    %v228 = vld [vmem:[%s2 + $0x608] sm:$0xff]
    %v229 = vld [vmem:[%s2 + $0x610] sm:$0xff]
    %v230 = vld [vmem:[%s2 + $0x618] sm:$0xff]
    %v231 = vld [vmem:[%s2 + $0x620] sm:$0xff]
    %v232 = vld [vmem:[%s2 + $0x628] sm:$0xff]
    %v233 = vld [vmem:[%s2 + $0x630] sm:$0xff]
    %v234 = vld [vmem:[%s2 + $0x638] sm:$0xff]
    %v235 = vld [vmem:[%s2 + $0x640] sm:$0xff]
    %v236 = vld [vmem:[%s2 + $0x648] sm:$0xff]
    %v237 = vld [vmem:[%s2 + $0x650] sm:$0xff]
    %v238 = vld [vmem:[%s2 + $0x658] sm:$0xff]
    %v239 = vld [vmem:[%s2 + $0x660] sm:$0xff]
    %v240 = vld [vmem:[%s2 + $0x668] sm:$0xff]
    %v241 = vld [vmem:[%s2 + $0x670] sm:$0xff]
    %v242 = vld [vmem:[%s2 + $0x678] sm:$0xff]
    %v243 = vld [vmem:[%s2 + $0x680] sm:$0xff]
    %v244 = vld [vmem:[%s2 + $0x688] sm:$0xff]
    %v245 = vld [vmem:[%s2 + $0x690] sm:$0xff]
    %v246 = vld [vmem:[%s2 + $0x698] sm:$0xff]
    %v247 = vld [vmem:[%s2 + $0x6a0] sm:$0xff]
    %v248 = vld [vmem:[%s2 + $0x6a8] sm:$0xff]
    %v249 = vld [vmem:[%s2 + $0x6b0] sm:$0xff]
    %v250 = vld [vmem:[%s2 + $0x6b8] sm:$0xff]
    %v251 = vld [vmem:[%s2 + $0x6c0] sm:$0xff]
    %v252 = vld [vmem:[%s2 + $0x6c8] sm:$0xff]
    %v253 = vld [vmem:[%s2 + $0x6d0] sm:$0xff]
    %v254 = vld [vmem:[%s2 + $0x6d8] sm:$0xff]
    %v255 = vld [vmem:[%s2 + $0x6e0] sm:$0xff]
    %v256 = vld [vmem:[%s2 + $0x6e8] sm:$0xff]
    %v257 = vld [vmem:[%s2 + $0x6f0] sm:$0xff]
    %v258 = vld [vmem:[%s2 + $0x6f8] sm:$0xff]
    %v259 = vld [vmem:[%s2 + $0x700] sm:$0xff]
    %v260 = vld [vmem:[%s2 + $0x708] sm:$0xff]
    %v261 = vld [vmem:[%s2 + $0x710] sm:$0xff]
    %v262 = vld [vmem:[%s2 + $0x718] sm:$0xff]
    %v263 = vld [vmem:[%s2 + $0x720] sm:$0xff]
    %v264 = vld [vmem:[%s2 + $0x728] sm:$0xff]
    %v265 = vld [vmem:[%s2 + $0x730] sm:$0xff]
    %v266 = vld [vmem:[%s2 + $0x738] sm:$0xff]
    %v267 = vld [vmem:[%s2 + $0x740] sm:$0xff]
    %v268 = vld [vmem:[%s2 + $0x748] sm:$0xff]
    %v269 = vld [vmem:[%s2 + $0x750] sm:$0xff]
    %v270 = vld [vmem:[%s2 + $0x758] sm:$0xff]
    %v271 = vld [vmem:[%s2 + $0x760] sm:$0xff]
    %v272 = vld [vmem:[%s2 + $0x768] sm:$0xff]
    %v273 = vld [vmem:[%s2 + $0x770] sm:$0xff]
    %v274 = vld [vmem:[%s2 + $0x778] sm:$0xff]
    %v275 = vld [vmem:[%s2 + $0x780] sm:$0xff]
    %v276 = vld [vmem:[%s2 + $0x788] sm:$0xff]
    %v277 = vld [vmem:[%s2 + $0x790] sm:$0xff]
    %v278 = vld [vmem:[%s2 + $0x798] sm:$0xff]
    %v279 = vld [vmem:[%s2 + $0x7a0] sm:$0xff]
    %v280 = vld [vmem:[%s2 + $0x7a8] sm:$0xff]
    %v281 = vld [vmem:[%s2 + $0x7b0] sm:$0xff]
    %v282 = vld [vmem:[%s2 + $0x7b8] sm:$0xff]
    %v283 = vld [vmem:[%s2 + $0x7c0] sm:$0xff]
    %v284 = vld [vmem:[%s2 + $0x7c8] sm:$0xff]
    %v285 = vld [vmem:[%s2 + $0x7d0] sm:$0xff]
    %v286 = vld [vmem:[%s2 + $0x7d8] sm:$0xff]
    %v287 = vld [vmem:[%s2 + $0x7e0] sm:$0xff]
    %v288 = vld [vmem:[%s2 + $0x7e8] sm:$0xff]
    %v289 = vld [vmem:[%s2 + $0x7f0] sm:$0xff]
    %v290 = vld [vmem:[%s2 + $0x7f8] sm:$0xff]
    %v291 = vld [vmem:[%s2 + $0x800] sm:$0xff]
    %v292 = vld [vmem:[%s2 + $0x808] sm:$0xff]
    %v293 = vld [vmem:[%s2 + $0x810] sm:$0xff]
    %v294 = vld [vmem:[%s2 + $0x818] sm:$0xff]
    %v295 = vld [vmem:[%s2 + $0x820] sm:$0xff]
    %v296 = vld [vmem:[%s2 + $0x828] sm:$0xff]
    %v297 = vld [vmem:[%s2 + $0x830] sm:$0xff]
    %v298 = vld [vmem:[%s2 + $0x838] sm:$0xff]
    %v299 = vld [vmem:[%s2 + $0x840] sm:$0xff]
    %v300 = vld [vmem:[%s2 + $0x848] sm:$0xff]
    %v301 = vld [vmem:[%s2 + $0x850] sm:$0xff]
    %v302 = vld [vmem:[%s2 + $0x858] sm:$0xff]
    %v303 = vld [vmem:[%s2 + $0x860] sm:$0xff]
    %v304 = vld [vmem:[%s2 + $0x868] sm:$0xff]
    %v305 = vld [vmem:[%s2 + $0x870] sm:$0xff]
    %v306 = vld [vmem:[%s2 + $0x878] sm:$0xff]
    %v307 = vld [vmem:[%s2 + $0x880] sm:$0xff]
    %v308 = vld [vmem:[%s2 + $0x888] sm:$0xff]
    %v309 = vld [vmem:[%s2 + $0x890] sm:$0xff]
    %v310 = vld [vmem:[%s2 + $0x898] sm:$0xff]
    %v311 = vld [vmem:[%s2 + $0x8a0] sm:$0xff]
    %v312 = vld [vmem:[%s2 + $0x8a8] sm:$0xff]
    %v313 = vld [vmem:[%s2 + $0x8b0] sm:$0xff]
    %v314 = vld [vmem:[%s2 + $0x8b8] sm:$0xff]
    %v315 = vld [vmem:[%s2 + $0x8c0] sm:$0xff]
    %v316 = vld [vmem:[%s2 + $0x8c8] sm:$0xff]
    %v317 = vld [vmem:[%s2 + $0x8d0] sm:$0xff]
    %v318 = vld [vmem:[%s2 + $0x8d8] sm:$0xff]
    %v319 = vld [vmem:[%s2 + $0x8e0] sm:$0xff]
    %v320 = vld [vmem:[%s2 + $0x8e8] sm:$0xff]
    %v321 = vld [vmem:[%s2 + $0x8f0] sm:$0xff]
    %v322 = vld [vmem:[%s2 + $0x8f8] sm:$0xff]
    %v323 = vld [vmem:[%s0] sm:$0xff]
    %v324 = vld [vmem:[%s0 + $0x8] sm:$0xff]
    %v325 = vld [vmem:[%s0 + $0x10] sm:$0xff]
    %v326 = vld [vmem:[%s0 + $0x18] sm:$0xff]
    %v327 = vld [vmem:[%s0 + $0x20] sm:$0xff]
    %v328 = vld [vmem:[%s0 + $0x28] sm:$0xff]
    %v329 = vld [vmem:[%s0 + $0x30] sm:$0xff]
    %v330 = vld [vmem:[%s0 + $0x38] sm:$0xff]
    %v331 = vld [vmem:[%s0 + $0x40] sm:$0xff]
    %v332 = vld [vmem:[%s0 + $0x48] sm:$0xff]
    %v333 = vld [vmem:[%s0 + $0x50] sm:$0xff]
    %v334 = vld [vmem:[%s0 + $0x58] sm:$0xff]
    %v335 = vld [vmem:[%s0 + $0x60] sm:$0xff]
    %v336 = vld [vmem:[%s0 + $0x68] sm:$0xff]
    %v337 = vld [vmem:[%s0 + $0x70] sm:$0xff]
    %v338 = vld [vmem:[%s0 + $0x78] sm:$0xff]
    %v339 = vld [vmem:[%s0 + $0x80] sm:$0xff]
    %v340 = vld [vmem:[%s0 + $0x88] sm:$0xff]
    %v341 = vld [vmem:[%s0 + $0x90] sm:$0xff]
    %v342 = vld [vmem:[%s0 + $0x98] sm:$0xff]
    %v343 = vld [vmem:[%s0 + $0xa0] sm:$0xff]
    %v344 = vld [vmem:[%s0 + $0xa8] sm:$0xff]
    %v345 = vld [vmem:[%s0 + $0xb0] sm:$0xff]
    %v346 = vld [vmem:[%s0 + $0xb8] sm:$0xff]
    %v347 = vld [vmem:[%s0 + $0xc0] sm:$0xff]
    %v348 = vld [vmem:[%s0 + $0xc8] sm:$0xff]
    %v349 = vld [vmem:[%s0 + $0xd0] sm:$0xff]
    %v350 = vld [vmem:[%s0 + $0xd8] sm:$0xff]
    %v351 = vld [vmem:[%s0 + $0xe0] sm:$0xff]
    %v352 = vld [vmem:[%s0 + $0xe8] sm:$0xff]
    %v353 = vld [vmem:[%s0 + $0xf0] sm:$0xff]
    %v354 = vld [vmem:[%s0 + $0xf8] sm:$0xff]
    %v355 = vld [vmem:[%s0 + $0x100] sm:$0xff]
    %v356 = vld [vmem:[%s0 + $0x108] sm:$0xff]
    %v357 = vld [vmem:[%s0 + $0x110] sm:$0xff]
    %v358 = vld [vmem:[%s0 + $0x118] sm:$0xff]
    %v359 = vld [vmem:[%s0 + $0x120] sm:$0xff]
    %v360 = vld [vmem:[%s0 + $0x128] sm:$0xff]
    %v361 = vld [vmem:[%s0 + $0x130] sm:$0xff]
    %v362 = vld [vmem:[%s0 + $0x138] sm:$0xff]
    %v363 = vld [vmem:[%s0 + $0x140] sm:$0xff]
    %v364 = vld [vmem:[%s0 + $0x148] sm:$0xff]
    %v365 = vld [vmem:[%s0 + $0x150] sm:$0xff]
    %v366 = vld [vmem:[%s0 + $0x158] sm:$0xff]
    %v367 = vld [vmem:[%s0 + $0x160] sm:$0xff]
    %v368 = vld [vmem:[%s0 + $0x168] sm:$0xff]
    %v369 = vld [vmem:[%s0 + $0x170] sm:$0xff]
    %v370 = vld [vmem:[%s0 + $0x178] sm:$0xff]
    %v371 = vld [vmem:[%s0 + $0x180] sm:$0xff]
    %v372 = vld [vmem:[%s0 + $0x188] sm:$0xff]
    %v373 = vld [vmem:[%s0 + $0x190] sm:$0xff]
    %v374 = vld [vmem:[%s0 + $0x198] sm:$0xff]
    %v375 = vld [vmem:[%s0 + $0x1a0] sm:$0xff]
    %v376 = vld [vmem:[%s0 + $0x1a8] sm:$0xff]
    %v377 = vld [vmem:[%s0 + $0x1b0] sm:$0xff]
    %v378 = vld [vmem:[%s0 + $0x1b8] sm:$0xff]
    %v379 = vld [vmem:[%s0 + $0x1c0] sm:$0xff]
    %v380 = vld [vmem:[%s0 + $0x1c8] sm:$0xff]
    %v381 = vld [vmem:[%s0 + $0x1d0] sm:$0xff]
    %v382 = vld [vmem:[%s0 + $0x1d8] sm:$0xff]
    %v383 = vld [vmem:[%s0 + $0x1e0] sm:$0xff]
    %v384 = vld [vmem:[%s0 + $0x1e8] sm:$0xff]
    %v385 = vld [vmem:[%s0 + $0x1f0] sm:$0xff]
    %v386 = vld [vmem:[%s0 + $0x1f8] sm:$0xff]
    %v387 = vld [vmem:[%s0 + $0x200] sm:$0xff]
    %v388 = vld [vmem:[%s0 + $0x208] sm:$0xff]
    %v389 = vld [vmem:[%s0 + $0x210] sm:$0xff]
    %v390 = vld [vmem:[%s0 + $0x218] sm:$0xff]
    %v391 = vld [vmem:[%s0 + $0x220] sm:$0xff]
    %v392 = vld [vmem:[%s0 + $0x228] sm:$0xff]
    %v393 = vld [vmem:[%s0 + $0x230] sm:$0xff]
    %v394 = vld [vmem:[%s0 + $0x238] sm:$0xff]
    %v395 = vld [vmem:[%s0 + $0x240] sm:$0xff]
    %v396 = vld [vmem:[%s0 + $0x248] sm:$0xff]
    %v397 = vld [vmem:[%s0 + $0x250] sm:$0xff]
    %v398 = vld [vmem:[%s0 + $0x258] sm:$0xff]
    %v399 = vld [vmem:[%s0 + $0x260] sm:$0xff]
    %v400 = vld [vmem:[%s0 + $0x268] sm:$0xff]
    %v401 = vld [vmem:[%s0 + $0x270] sm:$0xff]
    %v402 = vld [vmem:[%s0 + $0x278] sm:$0xff]
    %v403 = vld [vmem:[%s0 + $0x280] sm:$0xff]
    %v404 = vld [vmem:[%s0 + $0x288] sm:$0xff]
    %v405 = vld [vmem:[%s0 + $0x290] sm:$0xff]
    %v406 = vld [vmem:[%s0 + $0x298] sm:$0xff]
    %v407 = vld [vmem:[%s0 + $0x2a0] sm:$0xff]
    %v408 = vld [vmem:[%s0 + $0x2a8] sm:$0xff]
    %v409 = vld [vmem:[%s0 + $0x2b0] sm:$0xff]
    %v410 = vld [vmem:[%s0 + $0x2b8] sm:$0xff]
    %v411 = vld [vmem:[%s0 + $0x2c0] sm:$0xff]
    %v412 = vld [vmem:[%s0 + $0x2c8] sm:$0xff]
    %v413 = vld [vmem:[%s0 + $0x2d0] sm:$0xff]
    %v414 = vld [vmem:[%s0 + $0x2d8] sm:$0xff]
    %v415 = vld [vmem:[%s0 + $0x2e0] sm:$0xff]
    %v416 = vld [vmem:[%s0 + $0x2e8] sm:$0xff]
    %v417 = vld [vmem:[%s0 + $0x2f0] sm:$0xff]
    %v418 = vld [vmem:[%s0 + $0x2f8] sm:$0xff]
    %v419 = vld [vmem:[%s0 + $0x300] sm:$0xff]
    %v420 = vld [vmem:[%s0 + $0x308] sm:$0xff]
    %v421 = vld [vmem:[%s0 + $0x310] sm:$0xff]
    %v422 = vld [vmem:[%s0 + $0x318] sm:$0xff]
    %v423 = vld [vmem:[%s0 + $0x320] sm:$0xff]
    %v424 = vld [vmem:[%s0 + $0x328] sm:$0xff]
    %v425 = vld [vmem:[%s0 + $0x330] sm:$0xff]
    %v426 = vld [vmem:[%s0 + $0x338] sm:$0xff]
    %v427 = vld [vmem:[%s0 + $0x340] sm:$0xff]
    %v428 = vld [vmem:[%s0 + $0x348] sm:$0xff]
    %v429 = vld [vmem:[%s0 + $0x350] sm:$0xff]
    %v430 = vld [vmem:[%s0 + $0x358] sm:$0xff]
    %v431 = vld [vmem:[%s0 + $0x360] sm:$0xff]
    %v432 = vld [vmem:[%s0 + $0x368] sm:$0xff]
    %v433 = vld [vmem:[%s0 + $0x370] sm:$0xff]
    %v434 = vld [vmem:[%s0 + $0x378] sm:$0xff]
    %v435 = vld [vmem:[%s0 + $0x380] sm:$0xff]
    %v436 = vld [vmem:[%s0 + $0x388] sm:$0xff]
    %v437 = vld [vmem:[%s0 + $0x390] sm:$0xff]
    %v438 = vld [vmem:[%s0 + $0x398] sm:$0xff]
    %v439 = vld [vmem:[%s0 + $0x3a0] sm:$0xff]
    %v440 = vld [vmem:[%s0 + $0x3a8] sm:$0xff]
    %v441 = vld [vmem:[%s0 + $0x3b0] sm:$0xff]
    %v442 = vld [vmem:[%s0 + $0x3b8] sm:$0xff]
    %v443 = vld [vmem:[%s0 + $0x3c0] sm:$0xff]
    %v444 = vld [vmem:[%s0 + $0x3c8] sm:$0xff]
    %v445 = vld [vmem:[%s0 + $0x3d0] sm:$0xff]
    %v446 = vld [vmem:[%s0 + $0x3d8] sm:$0xff]
    %v447 = vld [vmem:[%s0 + $0x3e0] sm:$0xff]
    %v448 = vld [vmem:[%s0 + $0x3e8] sm:$0xff]
    %v449 = vld [vmem:[%s0 + $0x3f0] sm:$0xff]
    %v450 = vld [vmem:[%s0 + $0x3f8] sm:$0xff]
    %v451 = vld [vmem:[%s0 + $0x400] sm:$0xff]
    %v452 = vld [vmem:[%s0 + $0x408] sm:$0xff]
    %v453 = vld [vmem:[%s0 + $0x410] sm:$0xff]
    %v454 = vld [vmem:[%s0 + $0x418] sm:$0xff]
    %v455 = vld [vmem:[%s0 + $0x420] sm:$0xff]
    %v456 = vld [vmem:[%s0 + $0x428] sm:$0xff]
    %v457 = vld [vmem:[%s0 + $0x430] sm:$0xff]
    %v458 = vld [vmem:[%s0 + $0x438] sm:$0xff]
    %v459 = vld [vmem:[%s0 + $0x440] sm:$0xff]
    %v460 = vld [vmem:[%s0 + $0x448] sm:$0xff]
    %v461 = vld [vmem:[%s0 + $0x450] sm:$0xff]
    %v462 = vld [vmem:[%s0 + $0x458] sm:$0xff]
    %v463 = vld [vmem:[%s0 + $0x460] sm:$0xff]
    %v464 = vld [vmem:[%s0 + $0x468] sm:$0xff]
    %v465 = vld [vmem:[%s0 + $0x470] sm:$0xff]
    %v466 = vld [vmem:[%s0 + $0x478] sm:$0xff]
    %v467 = vld [vmem:[%s0 + $0x480] sm:$0xff]
    %v468 = vld [vmem:[%s0 + $0x488] sm:$0xff]
    %v469 = vld [vmem:[%s0 + $0x490] sm:$0xff]
    %v470 = vld [vmem:[%s0 + $0x498] sm:$0xff]
    %v471 = vld [vmem:[%s0 + $0x4a0] sm:$0xff]
    %v472 = vld [vmem:[%s0 + $0x4a8] sm:$0xff]
    %v473 = vld [vmem:[%s0 + $0x4b0] sm:$0xff]
    %v474 = vld [vmem:[%s0 + $0x4b8] sm:$0xff]
    %v475 = vld [vmem:[%s0 + $0x4c0] sm:$0xff]
    %v476 = vld [vmem:[%s0 + $0x4c8] sm:$0xff]
    %v477 = vld [vmem:[%s0 + $0x4d0] sm:$0xff]
    %v478 = vld [vmem:[%s0 + $0x4d8] sm:$0xff]
    %v479 = vld [vmem:[%s0 + $0x4e0] sm:$0xff]
    %v480 = vld [vmem:[%s0 + $0x4e8] sm:$0xff]
    %v481 = vld [vmem:[%s0 + $0x4f0] sm:$0xff]
    %v482 = vld [vmem:[%s0 + $0x4f8] sm:$0xff]
    %v483 = vld [vmem:[%s0 + $0x500] sm:$0xff]
    %v484 = vld [vmem:[%s0 + $0x508] sm:$0xff]
    %v485 = vld [vmem:[%s0 + $0x510] sm:$0xff]
    %v486 = vld [vmem:[%s0 + $0x518] sm:$0xff]
    %v487 = vld [vmem:[%s0 + $0x520] sm:$0xff]
    %v488 = vld [vmem:[%s0 + $0x528] sm:$0xff]
    %v489 = vld [vmem:[%s0 + $0x530] sm:$0xff]
    %v490 = vld [vmem:[%s0 + $0x538] sm:$0xff]
    %v491 = vld [vmem:[%s0 + $0x540] sm:$0xff]
    %v492 = vld [vmem:[%s0 + $0x548] sm:$0xff]
    %v493 = vld [vmem:[%s0 + $0x550] sm:$0xff]
    %v494 = vld [vmem:[%s0 + $0x558] sm:$0xff]
    %v495 = vld [vmem:[%s0 + $0x560] sm:$0xff]
    %v496 = vld [vmem:[%s0 + $0x568] sm:$0xff]
    %v497 = vld [vmem:[%s0 + $0x570] sm:$0xff]
    %v498 = vld [vmem:[%s0 + $0x578] sm:$0xff]
    %v499 = vld [vmem:[%s0 + $0x580] sm:$0xff]
    %v500 = vld [vmem:[%s0 + $0x588] sm:$0xff]
    %v501 = vld [vmem:[%s0 + $0x590] sm:$0xff]
    %v502 = vld [vmem:[%s0 + $0x598] sm:$0xff]
    %v503 = vld [vmem:[%s0 + $0x5a0] sm:$0xff]
    %v504 = vld [vmem:[%s0 + $0x5a8] sm:$0xff]
    %v505 = vld [vmem:[%s0 + $0x5b0] sm:$0xff]
    %v506 = vld [vmem:[%s0 + $0x5b8] sm:$0xff]
    %v507 = vld [vmem:[%s0 + $0x5c0] sm:$0xff]
    %v508 = vld [vmem:[%s0 + $0x5c8] sm:$0xff]
    %v509 = vld [vmem:[%s0 + $0x5d0] sm:$0xff]
    %v510 = vld [vmem:[%s0 + $0x5d8] sm:$0xff]
    %v511 = vld [vmem:[%s0 + $0x5e0] sm:$0xff]
    %v512 = vld [vmem:[%s0 + $0x5e8] sm:$0xff]
    %v513 = vld [vmem:[%s0 + $0x5f0] sm:$0xff]
    %v514 = vld [vmem:[%s0 + $0x5f8] sm:$0xff]
    %v515 = vld [vmem:[%s0 + $0x600] sm:$0xff]
    %v516 = vld [vmem:[%s0 + $0x608] sm:$0xff]
    %v517 = vld [vmem:[%s0 + $0x610] sm:$0xff]
    %v518 = vld [vmem:[%s0 + $0x618] sm:$0xff]
    %v519 = vld [vmem:[%s0 + $0x620] sm:$0xff]
    %v520 = vld [vmem:[%s0 + $0x628] sm:$0xff]
    %v521 = vld [vmem:[%s0 + $0x630] sm:$0xff]
    %v522 = vld [vmem:[%s0 + $0x638] sm:$0xff]
    %v523 = vld [vmem:[%s0 + $0x640] sm:$0xff]
    %v524 = vld [vmem:[%s0 + $0x648] sm:$0xff]
    %v525 = vld [vmem:[%s0 + $0x650] sm:$0xff]
    %v526 = vld [vmem:[%s0 + $0x658] sm:$0xff]
    %v527 = vld [vmem:[%s0 + $0x660] sm:$0xff]
    %v528 = vld [vmem:[%s0 + $0x668] sm:$0xff]
    %v529 = vld [vmem:[%s0 + $0x670] sm:$0xff]
    %v530 = vld [vmem:[%s0 + $0x678] sm:$0xff]
    %v531 = vld [vmem:[%s0 + $0x680] sm:$0xff]
    %v532 = vld [vmem:[%s0 + $0x688] sm:$0xff]
    %v533 = vld [vmem:[%s0 + $0x690] sm:$0xff]
    %v534 = vld [vmem:[%s0 + $0x698] sm:$0xff]
    %v535 = vld [vmem:[%s0 + $0x6a0] sm:$0xff]
    %v536 = vld [vmem:[%s0 + $0x6a8] sm:$0xff]
    %v537 = vld [vmem:[%s0 + $0x6b0] sm:$0xff]
    %v538 = vld [vmem:[%s0 + $0x6b8] sm:$0xff]
    %v539 = vld [vmem:[%s0 + $0x6c0] sm:$0xff]
    %v540 = vld [vmem:[%s0 + $0x6c8] sm:$0xff]
    %v541 = vld [vmem:[%s0 + $0x6d0] sm:$0xff]
    %v542 = vld [vmem:[%s0 + $0x6d8] sm:$0xff]
    %v543 = vld [vmem:[%s0 + $0x6e0] sm:$0xff]
    %v544 = vld [vmem:[%s0 + $0x6e8] sm:$0xff]
    %v545 = vld [vmem:[%s0 + $0x6f0] sm:$0xff]
    %v546 = vld [vmem:[%s0 + $0x6f8] sm:$0xff]
    %v547 = vld [vmem:[%s0 + $0x700] sm:$0xff]
    %v548 = vld [vmem:[%s0 + $0x708] sm:$0xff]
    %v549 = vld [vmem:[%s0 + $0x710] sm:$0xff]
    %v550 = vld [vmem:[%s0 + $0x718] sm:$0xff]
    %v551 = vld [vmem:[%s0 + $0x720] sm:$0xff]
    %v552 = vld [vmem:[%s0 + $0x728] sm:$0xff]
    %v553 = vld [vmem:[%s0 + $0x730] sm:$0xff]
    %v554 = vld [vmem:[%s0 + $0x738] sm:$0xff]
    %v555 = vld [vmem:[%s0 + $0x740] sm:$0xff]
    %v556 = vld [vmem:[%s0 + $0x748] sm:$0xff]
    %v557 = vld [vmem:[%s0 + $0x750] sm:$0xff]
    %v558 = vld [vmem:[%s0 + $0x758] sm:$0xff]
    %v559 = vld [vmem:[%s0 + $0x760] sm:$0xff]
    %v560 = vld [vmem:[%s0 + $0x768] sm:$0xff]
    %v561 = vld [vmem:[%s0 + $0x770] sm:$0xff]
    %v562 = vld [vmem:[%s0 + $0x778] sm:$0xff]
    %v563 = vld [vmem:[%s0 + $0x780] sm:$0xff]
    %v564 = vld [vmem:[%s0 + $0x788] sm:$0xff]
    %v565 = vld [vmem:[%s0 + $0x790] sm:$0xff]
    %v566 = vld [vmem:[%s0 + $0x798] sm:$0xff]
    %v567 = vld [vmem:[%s0 + $0x7a0] sm:$0xff]
    %v568 = vld [vmem:[%s0 + $0x7a8] sm:$0xff]
    %v569 = vld [vmem:[%s0 + $0x7b0] sm:$0xff]
    %v570 = vld [vmem:[%s0 + $0x7b8] sm:$0xff]
    %v571 = vld [vmem:[%s0 + $0x7c0] sm:$0xff]
    %v572 = vld [vmem:[%s0 + $0x7c8] sm:$0xff]
    %v573 = vld [vmem:[%s0 + $0x7d0] sm:$0xff]
    %v574 = vld [vmem:[%s0 + $0x7d8] sm:$0xff]
    %v575 = vld [vmem:[%s0 + $0x7e0] sm:$0xff]
    %v576 = vld [vmem:[%s0 + $0x7e8] sm:$0xff]
    %v577 = vld [vmem:[%s0 + $0x7f0] sm:$0xff]
    %v578 = vld [vmem:[%s0 + $0x7f8] sm:$0xff]
    %v579 = vld [vmem:[%s0 + $0x800] sm:$0xff]
    %v580 = vld [vmem:[%s0 + $0x808] sm:$0xff]
    %v581 = vld [vmem:[%s0 + $0x810] sm:$0xff]
    %v582 = vld [vmem:[%s0 + $0x818] sm:$0xff]
    %v583 = vld [vmem:[%s0 + $0x820] sm:$0xff]
    %v584 = vld [vmem:[%s0 + $0x828] sm:$0xff]
    %v585 = vld [vmem:[%s0 + $0x830] sm:$0xff]
    %v586 = vld [vmem:[%s0 + $0x838] sm:$0xff]
    %v587 = vld [vmem:[%s0 + $0x840] sm:$0xff]
    %v588 = vld [vmem:[%s0 + $0x848] sm:$0xff]
    %v589 = vld [vmem:[%s0 + $0x850] sm:$0xff]
    %v590 = vld [vmem:[%s0 + $0x858] sm:$0xff]
    %v591 = vld [vmem:[%s0 + $0x860] sm:$0xff]
    %v592 = vld [vmem:[%s0 + $0x868] sm:$0xff]
    %v593 = vld [vmem:[%s0 + $0x870] sm:$0xff]
    %v594 = vld [vmem:[%s0 + $0x878] sm:$0xff]
    %v595 = vld [vmem:[%s0 + $0x880] sm:$0xff]
    %v596 = vld [vmem:[%s0 + $0x888] sm:$0xff]
    %v597 = vld [vmem:[%s0 + $0x890] sm:$0xff]
    %v598 = vld [vmem:[%s0 + $0x898] sm:$0xff]
    %v599 = vld [vmem:[%s0 + $0x8a0] sm:$0xff]
    %v600 = vld [vmem:[%s0 + $0x8a8] sm:$0xff]
    %v601 = vld [vmem:[%s0 + $0x8b0] sm:$0xff]
    %v602 = vld [vmem:[%s0 + $0x8b8] sm:$0xff]
    %v603 = vld [vmem:[%s0 + $0x8c0] sm:$0xff]
    %v604 = vld [vmem:[%s0 + $0x8c8] sm:$0xff]
    %v605 = vld [vmem:[%s0 + $0x8d0] sm:$0xff]
    %v606 = vld [vmem:[%s0 + $0x8d8] sm:$0xff]
    %v607 = vld [vmem:[%s0 + $0x8e0] sm:$0xff]
    %v608 = vld [vmem:[%s0 + $0x8e8] sm:$0xff]
    %v609 = vld [vmem:[%s0 + $0x8f0] sm:$0xff]
    %v610 = vld [vmem:[%s0 + $0x8f8] sm:$0xff]
    %v611 = vld [vmem:[#allocation2] sm:$0xff]
    %v612 = vld [vmem:[#allocation2 + $0x8] sm:$0xff]
    %v613 = vld [vmem:[#allocation2 + $0x10] sm:$0xff]
    %v614 = vld [vmem:[#allocation2 + $0x18] sm:$0xff]
    %v615 = vld [vmem:[#allocation2 + $0x20] sm:$0xff]
    %v616 = vld [vmem:[#allocation2 + $0x28] sm:$0xff]
    %v617 = vld [vmem:[#allocation2 + $0x30] sm:$0xff]
    %v618 = vld [vmem:[#allocation2 + $0x38] sm:$0xff]
    %v619 = vld [vmem:[#allocation2 + $0x40] sm:$0xff]
    %v620 = vld [vmem:[#allocation2 + $0x48] sm:$0xff]
    %v621 = vld [vmem:[#allocation2 + $0x50] sm:$0xff]
    %v622 = vld [vmem:[#allocation2 + $0x58] sm:$0xff]
    %v623 = vld [vmem:[#allocation2 + $0x60] sm:$0xff]
    %v624 = vld [vmem:[#allocation2 + $0x68] sm:$0xff]
    %v625 = vld [vmem:[#allocation2 + $0x70] sm:$0xff]
    %v626 = vld [vmem:[#allocation2 + $0x78] sm:$0xff]
    %v627 = vld [vmem:[#allocation2 + $0x80] sm:$0xff]
    %v628 = vld [vmem:[#allocation2 + $0x88] sm:$0xff]
    %v629 = vld [vmem:[#allocation2 + $0x90] sm:$0xff]
    %v630 = vld [vmem:[#allocation2 + $0x98] sm:$0xff]
    %v631 = vld [vmem:[#allocation2 + $0xa0] sm:$0xff]
    %v632 = vld [vmem:[#allocation2 + $0xa8] sm:$0xff]
    %v633 = vld [vmem:[#allocation2 + $0xb0] sm:$0xff]
    %v634 = vld [vmem:[#allocation2 + $0xb8] sm:$0xff]
    %v635 = vld [vmem:[#allocation2 + $0xc0] sm:$0xff]
    %v636 = vld [vmem:[#allocation2 + $0xc8] sm:$0xff]
    %v637 = vld [vmem:[#allocation2 + $0xd0] sm:$0xff]
    %v638 = vld [vmem:[#allocation2 + $0xd8] sm:$0xff]
    %v639 = vld [vmem:[#allocation2 + $0xe0] sm:$0xff]
    %v640 = vld [vmem:[#allocation2 + $0xe8] sm:$0xff]
    %v641 = vld [vmem:[#allocation2 + $0xf0] sm:$0xff]
    %v642 = vld [vmem:[#allocation2 + $0xf8] sm:$0xff]
    %v643 = vld [vmem:[#allocation2 + $0x100] sm:$0xff]
    %v644 = vld [vmem:[#allocation2 + $0x108] sm:$0xff]
    %v645 = vld [vmem:[#allocation2 + $0x110] sm:$0xff]
    %v646 = vld [vmem:[#allocation2 + $0x118] sm:$0xff]
    %v647 = vld [vmem:[#allocation2 + $0x120] sm:$0xff]
    %v648 = vld [vmem:[#allocation2 + $0x128] sm:$0xff]
    %v649 = vld [vmem:[#allocation2 + $0x130] sm:$0xff]
    %v650 = vld [vmem:[#allocation2 + $0x138] sm:$0xff]
    %v651 = vld [vmem:[#allocation2 + $0x140] sm:$0xff]
    %v652 = vld [vmem:[#allocation2 + $0x148] sm:$0xff]
    %v653 = vld [vmem:[#allocation2 + $0x150] sm:$0xff]
    %v654 = vld [vmem:[#allocation2 + $0x158] sm:$0xff]
    %v655 = vld [vmem:[#allocation2 + $0x160] sm:$0xff]
    %v656 = vld [vmem:[#allocation2 + $0x168] sm:$0xff]
    %v657 = vld [vmem:[#allocation2 + $0x170] sm:$0xff]
    %v658 = vld [vmem:[#allocation2 + $0x178] sm:$0xff]
    %v659 = vld [vmem:[#allocation2 + $0x180] sm:$0xff]
    %v660 = vld [vmem:[#allocation2 + $0x188] sm:$0xff]
    %v661 = vld [vmem:[#allocation2 + $0x190] sm:$0xff]
    %v662 = vld [vmem:[#allocation2 + $0x198] sm:$0xff]
    %v663 = vld [vmem:[#allocation2 + $0x1a0] sm:$0xff]
    %v664 = vld [vmem:[#allocation2 + $0x1a8] sm:$0xff]
    %v665 = vld [vmem:[#allocation2 + $0x1b0] sm:$0xff]
    %v666 = vld [vmem:[#allocation2 + $0x1b8] sm:$0xff]
    %v667 = vld [vmem:[#allocation2 + $0x1c0] sm:$0xff]
    %v668 = vld [vmem:[#allocation2 + $0x1c8] sm:$0xff]
    %v669 = vld [vmem:[#allocation2 + $0x1d0] sm:$0xff]
    %v670 = vld [vmem:[#allocation2 + $0x1d8] sm:$0xff]
    %v671 = vld [vmem:[#allocation2 + $0x1e0] sm:$0xff]
    %v672 = vld [vmem:[#allocation2 + $0x1e8] sm:$0xff]
    %v673 = vld [vmem:[#allocation2 + $0x1f0] sm:$0xff]
    %v674 = vld [vmem:[#allocation2 + $0x1f8] sm:$0xff]
    %v675 = vld [vmem:[#allocation2 + $0x200] sm:$0xff]
    %v676 = vld [vmem:[#allocation2 + $0x208] sm:$0xff]
    %v677 = vld [vmem:[#allocation2 + $0x210] sm:$0xff]
    %v678 = vld [vmem:[#allocation2 + $0x218] sm:$0xff]
    %v679 = vld [vmem:[#allocation2 + $0x220] sm:$0xff]
    %v680 = vld [vmem:[#allocation2 + $0x228] sm:$0xff]
    %v681 = vld [vmem:[#allocation2 + $0x230] sm:$0xff]
    %v682 = vld [vmem:[#allocation2 + $0x238] sm:$0xff]
    %v683 = vld [vmem:[#allocation2 + $0x240] sm:$0xff]
    %v684 = vld [vmem:[#allocation2 + $0x248] sm:$0xff]
    %v685 = vld [vmem:[#allocation2 + $0x250] sm:$0xff]
    %v686 = vld [vmem:[#allocation2 + $0x258] sm:$0xff]
    %v687 = vld [vmem:[#allocation2 + $0x260] sm:$0xff]
    %v688 = vld [vmem:[#allocation2 + $0x268] sm:$0xff]
    %v689 = vld [vmem:[#allocation2 + $0x270] sm:$0xff]
    %v690 = vld [vmem:[#allocation2 + $0x278] sm:$0xff]
    %v691 = vld [vmem:[#allocation2 + $0x280] sm:$0xff]
    %v692 = vld [vmem:[#allocation2 + $0x288] sm:$0xff]
    %v693 = vld [vmem:[#allocation2 + $0x290] sm:$0xff]
    %v694 = vld [vmem:[#allocation2 + $0x298] sm:$0xff]
    %v695 = vld [vmem:[#allocation2 + $0x2a0] sm:$0xff]
    %v696 = vld [vmem:[#allocation2 + $0x2a8] sm:$0xff]
    %v697 = vld [vmem:[#allocation2 + $0x2b0] sm:$0xff]
    %v698 = vld [vmem:[#allocation2 + $0x2b8] sm:$0xff]
    %v699 = vld [vmem:[#allocation2 + $0x2c0] sm:$0xff]
    %v700 = vld [vmem:[#allocation2 + $0x2c8] sm:$0xff]
    %v701 = vld [vmem:[#allocation2 + $0x2d0] sm:$0xff]
    %v702 = vld [vmem:[#allocation2 + $0x2d8] sm:$0xff]
    %v703 = vld [vmem:[#allocation2 + $0x2e0] sm:$0xff]
    %v704 = vld [vmem:[#allocation2 + $0x2e8] sm:$0xff]
    %v705 = vld [vmem:[#allocation2 + $0x2f0] sm:$0xff]
    %v706 = vld [vmem:[#allocation2 + $0x2f8] sm:$0xff]
    %v707 = vld [vmem:[#allocation2 + $0x300] sm:$0xff]
    %v708 = vld [vmem:[#allocation2 + $0x308] sm:$0xff]
    %v709 = vld [vmem:[#allocation2 + $0x310] sm:$0xff]
    %v710 = vld [vmem:[#allocation2 + $0x318] sm:$0xff]
    %v711 = vld [vmem:[#allocation2 + $0x320] sm:$0xff]
    %v712 = vld [vmem:[#allocation2 + $0x328] sm:$0xff]
    %v713 = vld [vmem:[#allocation2 + $0x330] sm:$0xff]
    %v714 = vld [vmem:[#allocation2 + $0x338] sm:$0xff]
    %v715 = vld [vmem:[#allocation2 + $0x340] sm:$0xff]
    %v716 = vld [vmem:[#allocation2 + $0x348] sm:$0xff]
    %v717 = vld [vmem:[#allocation2 + $0x350] sm:$0xff]
    %v718 = vld [vmem:[#allocation2 + $0x358] sm:$0xff]
    %v719 = vld [vmem:[#allocation2 + $0x360] sm:$0xff]
    %v720 = vld [vmem:[#allocation2 + $0x368] sm:$0xff]
    %v721 = vld [vmem:[#allocation2 + $0x370] sm:$0xff]
    %v722 = vld [vmem:[#allocation2 + $0x378] sm:$0xff]
    %v723 = vld [vmem:[#allocation2 + $0x380] sm:$0xff]
    %v724 = vld [vmem:[#allocation2 + $0x388] sm:$0xff]
    %v725 = vld [vmem:[#allocation2 + $0x390] sm:$0xff]
    %v726 = vld [vmem:[#allocation2 + $0x398] sm:$0xff]
    %v727 = vld [vmem:[#allocation2 + $0x3a0] sm:$0xff]
    %v728 = vld [vmem:[#allocation2 + $0x3a8] sm:$0xff]
    %v729 = vld [vmem:[#allocation2 + $0x3b0] sm:$0xff]
    %v730 = vld [vmem:[#allocation2 + $0x3b8] sm:$0xff]
    %v731 = vld [vmem:[#allocation2 + $0x3c0] sm:$0xff]
    %v732 = vld [vmem:[#allocation2 + $0x3c8] sm:$0xff]
    %v733 = vld [vmem:[#allocation2 + $0x3d0] sm:$0xff]
    %v734 = vld [vmem:[#allocation2 + $0x3d8] sm:$0xff]
    %v735 = vld [vmem:[#allocation2 + $0x3e0] sm:$0xff]
    %v736 = vld [vmem:[#allocation2 + $0x3e8] sm:$0xff]
    %v737 = vld [vmem:[#allocation2 + $0x3f0] sm:$0xff]
    %v738 = vld [vmem:[#allocation2 + $0x3f8] sm:$0xff]
    %v739 = vld [vmem:[#allocation2 + $0x400] sm:$0xff]
    %v740 = vld [vmem:[#allocation2 + $0x408] sm:$0xff]
    %v741 = vld [vmem:[#allocation2 + $0x410] sm:$0xff]
    %v742 = vld [vmem:[#allocation2 + $0x418] sm:$0xff]
    %v743 = vld [vmem:[#allocation2 + $0x420] sm:$0xff]
    %v744 = vld [vmem:[#allocation2 + $0x428] sm:$0xff]
    %v745 = vld [vmem:[#allocation2 + $0x430] sm:$0xff]
    %v746 = vld [vmem:[#allocation2 + $0x438] sm:$0xff]
    %v747 = vld [vmem:[#allocation2 + $0x440] sm:$0xff]
    %v748 = vld [vmem:[#allocation2 + $0x448] sm:$0xff]
    %v749 = vld [vmem:[#allocation2 + $0x450] sm:$0xff]
    %v750 = vld [vmem:[#allocation2 + $0x458] sm:$0xff]
    %v751 = vld [vmem:[#allocation2 + $0x460] sm:$0xff]
    %v752 = vld [vmem:[#allocation2 + $0x468] sm:$0xff]
    %v753 = vld [vmem:[#allocation2 + $0x470] sm:$0xff]
    %v754 = vld [vmem:[#allocation2 + $0x478] sm:$0xff]
    %v755 = vld [vmem:[#allocation2 + $0x480] sm:$0xff]
    %v756 = vld [vmem:[#allocation2 + $0x488] sm:$0xff]
    %v757 = vld [vmem:[#allocation2 + $0x490] sm:$0xff]
    %v758 = vld [vmem:[#allocation2 + $0x498] sm:$0xff]
    %v759 = vld [vmem:[#allocation2 + $0x4a0] sm:$0xff]
    %v760 = vld [vmem:[#allocation2 + $0x4a8] sm:$0xff]
    %v761 = vld [vmem:[#allocation2 + $0x4b0] sm:$0xff]
    %v762 = vld [vmem:[#allocation2 + $0x4b8] sm:$0xff]
    %v763 = vld [vmem:[#allocation2 + $0x4c0] sm:$0xff]
    %v764 = vld [vmem:[#allocation2 + $0x4c8] sm:$0xff]
    %v765 = vld [vmem:[#allocation2 + $0x4d0] sm:$0xff]
    %v766 = vld [vmem:[#allocation2 + $0x4d8] sm:$0xff]
    %v767 = vld [vmem:[#allocation2 + $0x4e0] sm:$0xff]
    %v768 = vld [vmem:[#allocation2 + $0x4e8] sm:$0xff]
    %v769 = vld [vmem:[#allocation2 + $0x4f0] sm:$0xff]
    %v770 = vld [vmem:[#allocation2 + $0x4f8] sm:$0xff]
    %v771 = vld [vmem:[#allocation2 + $0x500] sm:$0xff]
    %v772 = vld [vmem:[#allocation2 + $0x508] sm:$0xff]
    %v773 = vld [vmem:[#allocation2 + $0x510] sm:$0xff]
    %v774 = vld [vmem:[#allocation2 + $0x518] sm:$0xff]
    %v775 = vld [vmem:[#allocation2 + $0x520] sm:$0xff]
    %v776 = vld [vmem:[#allocation2 + $0x528] sm:$0xff]
    %v777 = vld [vmem:[#allocation2 + $0x530] sm:$0xff]
    %v778 = vld [vmem:[#allocation2 + $0x538] sm:$0xff]
    %v779 = vld [vmem:[#allocation2 + $0x540] sm:$0xff]
    %v780 = vld [vmem:[#allocation2 + $0x548] sm:$0xff]
    %v781 = vld [vmem:[#allocation2 + $0x550] sm:$0xff]
    %v782 = vld [vmem:[#allocation2 + $0x558] sm:$0xff]
    %v783 = vld [vmem:[#allocation2 + $0x560] sm:$0xff]
    %v784 = vld [vmem:[#allocation2 + $0x568] sm:$0xff]
    %v785 = vld [vmem:[#allocation2 + $0x570] sm:$0xff]
    %v786 = vld [vmem:[#allocation2 + $0x578] sm:$0xff]
    %v787 = vld [vmem:[#allocation2 + $0x580] sm:$0xff]
    %v788 = vld [vmem:[#allocation2 + $0x588] sm:$0xff]
    %v789 = vld [vmem:[#allocation2 + $0x590] sm:$0xff]
    %v790 = vld [vmem:[#allocation2 + $0x598] sm:$0xff]
    %v791 = vld [vmem:[#allocation2 + $0x5a0] sm:$0xff]
    %v792 = vld [vmem:[#allocation2 + $0x5a8] sm:$0xff]
    %v793 = vld [vmem:[#allocation2 + $0x5b0] sm:$0xff]
    %v794 = vld [vmem:[#allocation2 + $0x5b8] sm:$0xff]
    %v795 = vld [vmem:[#allocation2 + $0x5c0] sm:$0xff]
    %v796 = vld [vmem:[#allocation2 + $0x5c8] sm:$0xff]
    %v797 = vld [vmem:[#allocation2 + $0x5d0] sm:$0xff]
    %v798 = vld [vmem:[#allocation2 + $0x5d8] sm:$0xff]
    %v799 = vld [vmem:[#allocation2 + $0x5e0] sm:$0xff]
    %v800 = vld [vmem:[#allocation2 + $0x5e8] sm:$0xff]
    %v801 = vld [vmem:[#allocation2 + $0x5f0] sm:$0xff]
    %v802 = vld [vmem:[#allocation2 + $0x5f8] sm:$0xff]
    %v803 = vld [vmem:[#allocation2 + $0x600] sm:$0xff]
    %v804 = vld [vmem:[#allocation2 + $0x608] sm:$0xff]
    %v805 = vld [vmem:[#allocation2 + $0x610] sm:$0xff]
    %v806 = vld [vmem:[#allocation2 + $0x618] sm:$0xff]
    %v807 = vld [vmem:[#allocation2 + $0x620] sm:$0xff]
    %v808 = vld [vmem:[#allocation2 + $0x628] sm:$0xff]
    %v809 = vld [vmem:[#allocation2 + $0x630] sm:$0xff]
    %v810 = vld [vmem:[#allocation2 + $0x638] sm:$0xff]
    %v811 = vld [vmem:[#allocation2 + $0x640] sm:$0xff]
    %v812 = vld [vmem:[#allocation2 + $0x648] sm:$0xff]
    %v813 = vld [vmem:[#allocation2 + $0x650] sm:$0xff]
    %v814 = vld [vmem:[#allocation2 + $0x658] sm:$0xff]
    %v815 = vld [vmem:[#allocation2 + $0x660] sm:$0xff]
    %v816 = vld [vmem:[#allocation2 + $0x668] sm:$0xff]
    %v817 = vld [vmem:[#allocation2 + $0x670] sm:$0xff]
    %v818 = vld [vmem:[#allocation2 + $0x678] sm:$0xff]
    %v819 = vld [vmem:[#allocation2 + $0x680] sm:$0xff]
    %v820 = vld [vmem:[#allocation2 + $0x688] sm:$0xff]
    %v821 = vld [vmem:[#allocation2 + $0x690] sm:$0xff]
    %v822 = vld [vmem:[#allocation2 + $0x698] sm:$0xff]
    %v823 = vld [vmem:[#allocation2 + $0x6a0] sm:$0xff]
    %v824 = vld [vmem:[#allocation2 + $0x6a8] sm:$0xff]
    %v825 = vld [vmem:[#allocation2 + $0x6b0] sm:$0xff]
    %v826 = vld [vmem:[#allocation2 + $0x6b8] sm:$0xff]
    %v827 = vld [vmem:[#allocation2 + $0x6c0] sm:$0xff]
    %v828 = vld [vmem:[#allocation2 + $0x6c8] sm:$0xff]
    %v829 = vld [vmem:[#allocation2 + $0x6d0] sm:$0xff]
    %v830 = vld [vmem:[#allocation2 + $0x6d8] sm:$0xff]
    %v831 = vld [vmem:[#allocation2 + $0x6e0] sm:$0xff]
    %v832 = vld [vmem:[#allocation2 + $0x6e8] sm:$0xff]
    %v833 = vld [vmem:[#allocation2 + $0x6f0] sm:$0xff]
    %v834 = vld [vmem:[#allocation2 + $0x6f8] sm:$0xff]
    %v835 = vld [vmem:[#allocation2 + $0x700] sm:$0xff]
    %v836 = vld [vmem:[#allocation2 + $0x708] sm:$0xff]
    %v837 = vld [vmem:[#allocation2 + $0x710] sm:$0xff]
    %v838 = vld [vmem:[#allocation2 + $0x718] sm:$0xff]
    %v839 = vld [vmem:[#allocation2 + $0x720] sm:$0xff]
    %v840 = vld [vmem:[#allocation2 + $0x728] sm:$0xff]
    %v841 = vld [vmem:[#allocation2 + $0x730] sm:$0xff]
    %v842 = vld [vmem:[#allocation2 + $0x738] sm:$0xff]
    %v843 = vld [vmem:[#allocation2 + $0x740] sm:$0xff]
    %v844 = vld [vmem:[#allocation2 + $0x748] sm:$0xff]
    %v845 = vld [vmem:[#allocation2 + $0x750] sm:$0xff]
    %v846 = vld [vmem:[#allocation2 + $0x758] sm:$0xff]
    %v847 = vld [vmem:[#allocation2 + $0x760] sm:$0xff]
    %v848 = vld [vmem:[#allocation2 + $0x768] sm:$0xff]
    %v849 = vld [vmem:[#allocation2 + $0x770] sm:$0xff]
    %v850 = vld [vmem:[#allocation2 + $0x778] sm:$0xff]
    %v851 = vld [vmem:[#allocation2 + $0x780] sm:$0xff]
    %v852 = vld [vmem:[#allocation2 + $0x788] sm:$0xff]
    %v853 = vld [vmem:[#allocation2 + $0x790] sm:$0xff]
    %v854 = vld [vmem:[#allocation2 + $0x798] sm:$0xff]
    %v855 = vld [vmem:[#allocation2 + $0x7a0] sm:$0xff]
    %v856 = vld [vmem:[#allocation2 + $0x7a8] sm:$0xff]
    %v857 = vld [vmem:[#allocation2 + $0x7b0] sm:$0xff]
    %v858 = vld [vmem:[#allocation2 + $0x7b8] sm:$0xff]
    %v859 = vld [vmem:[#allocation2 + $0x7c0] sm:$0xff]
    %v860 = vld [vmem:[#allocation2 + $0x7c8] sm:$0xff]
    %v861 = vld [vmem:[#allocation2 + $0x7d0] sm:$0xff]
    %v862 = vld [vmem:[#allocation2 + $0x7d8] sm:$0xff]
    %v863 = vld [vmem:[#allocation2 + $0x7e0] sm:$0xff]
    %v864 = vld [vmem:[#allocation2 + $0x7e8] sm:$0xff]
    %v865 = vld [vmem:[#allocation2 + $0x7f0] sm:$0xff]
    %v866 = vld [vmem:[#allocation2 + $0x7f8] sm:$0xff]
    %v867 = vld [vmem:[#allocation2 + $0x800] sm:$0xff]
    %v868 = vld [vmem:[#allocation2 + $0x808] sm:$0xff]
    %v869 = vld [vmem:[#allocation2 + $0x810] sm:$0xff]
    %v870 = vld [vmem:[#allocation2 + $0x818] sm:$0xff]
    %v871 = vld [vmem:[#allocation2 + $0x820] sm:$0xff]
    %v872 = vld [vmem:[#allocation2 + $0x828] sm:$0xff]
    %v873 = vld [vmem:[#allocation2 + $0x830] sm:$0xff]
    %v874 = vld [vmem:[#allocation2 + $0x838] sm:$0xff]
    %v875 = vld [vmem:[#allocation2 + $0x840] sm:$0xff]
    %v876 = vld [vmem:[#allocation2 + $0x848] sm:$0xff]
    %v877 = vld [vmem:[#allocation2 + $0x850] sm:$0xff]
    %v878 = vld [vmem:[#allocation2 + $0x858] sm:$0xff]
    %v879 = vld [vmem:[#allocation2 + $0x860] sm:$0xff]
    %v880 = vld [vmem:[#allocation2 + $0x868] sm:$0xff]
    %v881 = vld [vmem:[#allocation2 + $0x870] sm:$0xff]
    %v882 = vld [vmem:[#allocation2 + $0x878] sm:$0xff]
    %v883 = vld [vmem:[#allocation2 + $0x880] sm:$0xff]
    %v884 = vld [vmem:[#allocation2 + $0x888] sm:$0xff]
    %v885 = vld [vmem:[#allocation2 + $0x890] sm:$0xff]
    %v886 = vld [vmem:[#allocation2 + $0x898] sm:$0xff]
    %v887 = vld [vmem:[#allocation2 + $0x8a0] sm:$0xff]
    %v888 = vld [vmem:[#allocation2 + $0x8a8] sm:$0xff]
    %v889 = vld [vmem:[#allocation2 + $0x8b0] sm:$0xff]
    %v890 = vld [vmem:[#allocation2 + $0x8b8] sm:$0xff]
    %v891 = vld [vmem:[#allocation2 + $0x8c0] sm:$0xff]
    %v892 = vld [vmem:[#allocation2 + $0x8c8] sm:$0xff]
    %v893 = vld [vmem:[#allocation2 + $0x8d0] sm:$0xff]
    %v894 = vld [vmem:[#allocation2 + $0x8d8] sm:$0xff]
    %v895 = vld [vmem:[#allocation2 + $0x8e0] sm:$0xff]
    %v896 = vld [vmem:[#allocation2 + $0x8e8] sm:$0xff]
    %v897 = vld [vmem:[#allocation2 + $0x8f0] sm:$0xff]
    %v898 = vld [vmem:[#allocation2 + $0x8f8] sm:$0xff]
    %vm899 = vcmp.ge.s32.totalorder %v35, 2576980377
    %vm900 = vcmp.ge.s32.totalorder %v36, 2576980377
    %vm901 = vcmp.ge.s32.totalorder %v37, 2576980377
    %vm902 = vcmp.ge.s32.totalorder %v38, 2576980377
    %vm903 = vcmp.ge.s32.totalorder %v39, 2576980377
    %vm904 = vcmp.ge.s32.totalorder %v40, 2576980377
    %vm905 = vcmp.ge.s32.totalorder %v41, 2576980377
    %vm906 = vcmp.ge.s32.totalorder %v42, 2576980377
    %vm907 = vcmp.ge.s32.totalorder %v43, 2576980377
    %vm908 = vcmp.ge.s32.totalorder %v44, 2576980377
    %vm909 = vcmp.ge.s32.totalorder %v45, 2576980377
    %vm910 = vcmp.ge.s32.totalorder %v46, 2576980377
    %vm911 = vcmp.ge.s32.totalorder %v47, 2576980377
    %vm912 = vcmp.ge.s32.totalorder %v48, 2576980377
    %vm913 = vcmp.ge.s32.totalorder %v49, 2576980377
    %vm914 = vcmp.ge.s32.totalorder %v50, 2576980377
    %vm915 = vcmp.ge.s32.totalorder %v51, 2576980377
    %vm916 = vcmp.ge.s32.totalorder %v52, 2576980377
    %vm917 = vcmp.ge.s32.totalorder %v53, 2576980377
    %vm918 = vcmp.ge.s32.totalorder %v54, 2576980377
    %vm919 = vcmp.ge.s32.totalorder %v55, 2576980377
    %vm920 = vcmp.ge.s32.totalorder %v56, 2576980377
    %vm921 = vcmp.ge.s32.totalorder %v57, 2576980377
    %vm922 = vcmp.ge.s32.totalorder %v58, 2576980377
    %vm923 = vcmp.ge.s32.totalorder %v59, 2576980377
    %vm924 = vcmp.ge.s32.totalorder %v60, 2576980377
    %vm925 = vcmp.ge.s32.totalorder %v61, 2576980377
    %vm926 = vcmp.ge.s32.totalorder %v62, 2576980377
    %vm927 = vcmp.ge.s32.totalorder %v63, 2576980377
    %vm928 = vcmp.ge.s32.totalorder %v64, 2576980377
    %vm929 = vcmp.ge.s32.totalorder %v65, 2576980377
    %vm930 = vcmp.ge.s32.totalorder %v66, 2576980377
    %vm931 = vcmp.ge.s32.totalorder %v67, 2576980377
    %vm932 = vcmp.ge.s32.totalorder %v68, 2576980377
    %vm933 = vcmp.ge.s32.totalorder %v69, 2576980377
    %vm934 = vcmp.ge.s32.totalorder %v70, 2576980377
    %vm935 = vcmp.ge.s32.totalorder %v71, 2576980377
    %vm936 = vcmp.ge.s32.totalorder %v72, 2576980377
    %vm937 = vcmp.ge.s32.totalorder %v73, 2576980377
    %vm938 = vcmp.ge.s32.totalorder %v74, 2576980377
    %vm939 = vcmp.ge.s32.totalorder %v75, 2576980377
    %vm940 = vcmp.ge.s32.totalorder %v76, 2576980377
    %vm941 = vcmp.ge.s32.totalorder %v77, 2576980377
    %vm942 = vcmp.ge.s32.totalorder %v78, 2576980377
    %vm943 = vcmp.ge.s32.totalorder %v79, 2576980377
    %vm944 = vcmp.ge.s32.totalorder %v80, 2576980377
    %vm945 = vcmp.ge.s32.totalorder %v81, 2576980377
    %vm946 = vcmp.ge.s32.totalorder %v82, 2576980377
    %vm947 = vcmp.ge.s32.totalorder %v83, 2576980377
    %vm948 = vcmp.ge.s32.totalorder %v84, 2576980377
    %vm949 = vcmp.ge.s32.totalorder %v85, 2576980377
    %vm950 = vcmp.ge.s32.totalorder %v86, 2576980377
    %vm951 = vcmp.ge.s32.totalorder %v87, 2576980377
    %vm952 = vcmp.ge.s32.totalorder %v88, 2576980377
    %vm953 = vcmp.ge.s32.totalorder %v89, 2576980377
    %vm954 = vcmp.ge.s32.totalorder %v90, 2576980377
    %vm955 = vcmp.ge.s32.totalorder %v91, 2576980377
    %vm956 = vcmp.ge.s32.totalorder %v92, 2576980377
    %vm957 = vcmp.ge.s32.totalorder %v93, 2576980377
    %vm958 = vcmp.ge.s32.totalorder %v94, 2576980377
    %vm959 = vcmp.ge.s32.totalorder %v95, 2576980377
    %vm960 = vcmp.ge.s32.totalorder %v96, 2576980377
    %vm961 = vcmp.ge.s32.totalorder %v97, 2576980377
    %vm962 = vcmp.ge.s32.totalorder %v98, 2576980377
    %vm963 = vcmp.ge.s32.totalorder %v99, 2576980377
    %vm964 = vcmp.ge.s32.totalorder %v100, 2576980377
    %vm965 = vcmp.ge.s32.totalorder %v101, 2576980377
    %vm966 = vcmp.ge.s32.totalorder %v102, 2576980377
    %vm967 = vcmp.ge.s32.totalorder %v103, 2576980377
    %vm968 = vcmp.ge.s32.totalorder %v104, 2576980377
    %vm969 = vcmp.ge.s32.totalorder %v105, 2576980377
    %vm970 = vcmp.ge.s32.totalorder %v106, 2576980377
    %vm971 = vcmp.ge.s32.totalorder %v107, 2576980377
    %vm972 = vcmp.ge.s32.totalorder %v108, 2576980377
    %vm973 = vcmp.ge.s32.totalorder %v109, 2576980377
    %vm974 = vcmp.ge.s32.totalorder %v110, 2576980377
    %vm975 = vcmp.ge.s32.totalorder %v111, 2576980377
    %vm976 = vcmp.ge.s32.totalorder %v112, 2576980377
    %vm977 = vcmp.ge.s32.totalorder %v113, 2576980377
    %vm978 = vcmp.ge.s32.totalorder %v114, 2576980377
    %vm979 = vcmp.ge.s32.totalorder %v115, 2576980377
    %vm980 = vcmp.ge.s32.totalorder %v116, 2576980377
    %vm981 = vcmp.ge.s32.totalorder %v117, 2576980377
    %vm982 = vcmp.ge.s32.totalorder %v118, 2576980377
    %vm983 = vcmp.ge.s32.totalorder %v119, 2576980377
    %vm984 = vcmp.ge.s32.totalorder %v120, 2576980377
    %vm985 = vcmp.ge.s32.totalorder %v121, 2576980377
    %vm986 = vcmp.ge.s32.totalorder %v122, 2576980377
    %vm987 = vcmp.ge.s32.totalorder %v123, 2576980377
    %vm988 = vcmp.ge.s32.totalorder %v124, 2576980377
    %vm989 = vcmp.ge.s32.totalorder %v125, 2576980377
    %vm990 = vcmp.ge.s32.totalorder %v126, 2576980377
    %vm991 = vcmp.ge.s32.totalorder %v127, 2576980377
    %vm992 = vcmp.ge.s32.totalorder %v128, 2576980377
    %vm993 = vcmp.ge.s32.totalorder %v129, 2576980377
    %vm994 = vcmp.ge.s32.totalorder %v130, 2576980377
    %vm995 = vcmp.ge.s32.totalorder %v131, 2576980377
    %vm996 = vcmp.ge.s32.totalorder %v132, 2576980377
    %vm997 = vcmp.ge.s32.totalorder %v133, 2576980377
    %vm998 = vcmp.ge.s32.totalorder %v134, 2576980377
    %vm999 = vcmp.ge.s32.totalorder %v135, 2576980377
    %vm1000 = vcmp.ge.s32.totalorder %v136, 2576980377
    %vm1001 = vcmp.ge.s32.totalorder %v137, 2576980377
    %vm1002 = vcmp.ge.s32.totalorder %v138, 2576980377
    %vm1003 = vcmp.ge.s32.totalorder %v139, 2576980377
    %vm1004 = vcmp.ge.s32.totalorder %v140, 2576980377
    %vm1005 = vcmp.ge.s32.totalorder %v141, 2576980377
    %vm1006 = vcmp.ge.s32.totalorder %v142, 2576980377
    %vm1007 = vcmp.ge.s32.totalorder %v143, 2576980377
    %vm1008 = vcmp.ge.s32.totalorder %v144, 2576980377
    %vm1009 = vcmp.ge.s32.totalorder %v145, 2576980377
    %vm1010 = vcmp.ge.s32.totalorder %v146, 2576980377
    %vm1011 = vcmp.ge.s32.totalorder %v147, 2576980377
    %vm1012 = vcmp.ge.s32.totalorder %v148, 2576980377
    %vm1013 = vcmp.ge.s32.totalorder %v149, 2576980377
    %vm1014 = vcmp.ge.s32.totalorder %v150, 2576980377
    %vm1015 = vcmp.ge.s32.totalorder %v151, 2576980377
    %vm1016 = vcmp.ge.s32.totalorder %v152, 2576980377
    %vm1017 = vcmp.ge.s32.totalorder %v153, 2576980377
    %vm1018 = vcmp.ge.s32.totalorder %v154, 2576980377
    %vm1019 = vcmp.ge.s32.totalorder %v155, 2576980377
    %vm1020 = vcmp.ge.s32.totalorder %v156, 2576980377
    %vm1021 = vcmp.ge.s32.totalorder %v157, 2576980377
    %vm1022 = vcmp.ge.s32.totalorder %v158, 2576980377
    %vm1023 = vcmp.ge.s32.totalorder %v159, 2576980377
    %vm1024 = vcmp.ge.s32.totalorder %v160, 2576980377
    %vm1025 = vcmp.ge.s32.totalorder %v161, 2576980377
    %vm1026 = vcmp.ge.s32.totalorder %v162, 2576980377
    %vm1027 = vcmp.ge.s32.totalorder %v163, 2576980377
    %vm1028 = vcmp.ge.s32.totalorder %v164, 2576980377
    %vm1029 = vcmp.ge.s32.totalorder %v165, 2576980377
    %vm1030 = vcmp.ge.s32.totalorder %v166, 2576980377
    %vm1031 = vcmp.ge.s32.totalorder %v167, 2576980377
    %vm1032 = vcmp.ge.s32.totalorder %v168, 2576980377
    %vm1033 = vcmp.ge.s32.totalorder %v169, 2576980377
    %vm1034 = vcmp.ge.s32.totalorder %v170, 2576980377
    %vm1035 = vcmp.ge.s32.totalorder %v171, 2576980377
    %vm1036 = vcmp.ge.s32.totalorder %v172, 2576980377
    %vm1037 = vcmp.ge.s32.totalorder %v173, 2576980377
    %vm1038 = vcmp.ge.s32.totalorder %v174, 2576980377
    %vm1039 = vcmp.ge.s32.totalorder %v175, 2576980377
    %vm1040 = vcmp.ge.s32.totalorder %v176, 2576980377
    %vm1041 = vcmp.ge.s32.totalorder %v177, 2576980377
    %vm1042 = vcmp.ge.s32.totalorder %v178, 2576980377
    %vm1043 = vcmp.ge.s32.totalorder %v179, 2576980377
    %vm1044 = vcmp.ge.s32.totalorder %v180, 2576980377
    %vm1045 = vcmp.ge.s32.totalorder %v181, 2576980377
    %vm1046 = vcmp.ge.s32.totalorder %v182, 2576980377
    %vm1047 = vcmp.ge.s32.totalorder %v183, 2576980377
    %vm1048 = vcmp.ge.s32.totalorder %v184, 2576980377
    %vm1049 = vcmp.ge.s32.totalorder %v185, 2576980377
    %vm1050 = vcmp.ge.s32.totalorder %v186, 2576980377
    %vm1051 = vcmp.ge.s32.totalorder %v187, 2576980377
    %vm1052 = vcmp.ge.s32.totalorder %v188, 2576980377
    %vm1053 = vcmp.ge.s32.totalorder %v189, 2576980377
    %vm1054 = vcmp.ge.s32.totalorder %v190, 2576980377
    %vm1055 = vcmp.ge.s32.totalorder %v191, 2576980377
    %vm1056 = vcmp.ge.s32.totalorder %v192, 2576980377
    %vm1057 = vcmp.ge.s32.totalorder %v193, 2576980377
    %vm1058 = vcmp.ge.s32.totalorder %v194, 2576980377
    %vm1059 = vcmp.ge.s32.totalorder %v195, 2576980377
    %vm1060 = vcmp.ge.s32.totalorder %v196, 2576980377
    %vm1061 = vcmp.ge.s32.totalorder %v197, 2576980377
    %vm1062 = vcmp.ge.s32.totalorder %v198, 2576980377
    %vm1063 = vcmp.ge.s32.totalorder %v199, 2576980377
    %vm1064 = vcmp.ge.s32.totalorder %v200, 2576980377
    %vm1065 = vcmp.ge.s32.totalorder %v201, 2576980377
    %vm1066 = vcmp.ge.s32.totalorder %v202, 2576980377
    %vm1067 = vcmp.ge.s32.totalorder %v203, 2576980377
    %vm1068 = vcmp.ge.s32.totalorder %v204, 2576980377
    %vm1069 = vcmp.ge.s32.totalorder %v205, 2576980377
    %vm1070 = vcmp.ge.s32.totalorder %v206, 2576980377
    %vm1071 = vcmp.ge.s32.totalorder %v207, 2576980377
    %vm1072 = vcmp.ge.s32.totalorder %v208, 2576980377
    %vm1073 = vcmp.ge.s32.totalorder %v209, 2576980377
    %vm1074 = vcmp.ge.s32.totalorder %v210, 2576980377
    %vm1075 = vcmp.ge.s32.totalorder %v211, 2576980377
    %vm1076 = vcmp.ge.s32.totalorder %v212, 2576980377
    %vm1077 = vcmp.ge.s32.totalorder %v213, 2576980377
    %vm1078 = vcmp.ge.s32.totalorder %v214, 2576980377
    %vm1079 = vcmp.ge.s32.totalorder %v215, 2576980377
    %vm1080 = vcmp.ge.s32.totalorder %v216, 2576980377
    %vm1081 = vcmp.ge.s32.totalorder %v217, 2576980377
    %vm1082 = vcmp.ge.s32.totalorder %v218, 2576980377
    %vm1083 = vcmp.ge.s32.totalorder %v219, 2576980377
    %vm1084 = vcmp.ge.s32.totalorder %v220, 2576980377
    %vm1085 = vcmp.ge.s32.totalorder %v221, 2576980377
    %vm1086 = vcmp.ge.s32.totalorder %v222, 2576980377
    %vm1087 = vcmp.ge.s32.totalorder %v223, 2576980377
    %vm1088 = vcmp.ge.s32.totalorder %v224, 2576980377
    %vm1089 = vcmp.ge.s32.totalorder %v225, 2576980377
    %vm1090 = vcmp.ge.s32.totalorder %v226, 2576980377
    %vm1091 = vcmp.ge.s32.totalorder %v227, 2576980377
    %vm1092 = vcmp.ge.s32.totalorder %v228, 2576980377
    %vm1093 = vcmp.ge.s32.totalorder %v229, 2576980377
    %vm1094 = vcmp.ge.s32.totalorder %v230, 2576980377
    %vm1095 = vcmp.ge.s32.totalorder %v231, 2576980377
    %vm1096 = vcmp.ge.s32.totalorder %v232, 2576980377
    %vm1097 = vcmp.ge.s32.totalorder %v233, 2576980377
    %vm1098 = vcmp.ge.s32.totalorder %v234, 2576980377
    %vm1099 = vcmp.ge.s32.totalorder %v235, 2576980377
    %vm1100 = vcmp.ge.s32.totalorder %v236, 2576980377
    %vm1101 = vcmp.ge.s32.totalorder %v237, 2576980377
    %vm1102 = vcmp.ge.s32.totalorder %v238, 2576980377
    %vm1103 = vcmp.ge.s32.totalorder %v239, 2576980377
    %vm1104 = vcmp.ge.s32.totalorder %v240, 2576980377
    %vm1105 = vcmp.ge.s32.totalorder %v241, 2576980377
    %vm1106 = vcmp.ge.s32.totalorder %v242, 2576980377
    %vm1107 = vcmp.ge.s32.totalorder %v243, 2576980377
    %vm1108 = vcmp.ge.s32.totalorder %v244, 2576980377
    %vm1109 = vcmp.ge.s32.totalorder %v245, 2576980377
    %vm1110 = vcmp.ge.s32.totalorder %v246, 2576980377
    %vm1111 = vcmp.ge.s32.totalorder %v247, 2576980377
    %vm1112 = vcmp.ge.s32.totalorder %v248, 2576980377
    %vm1113 = vcmp.ge.s32.totalorder %v249, 2576980377
    %vm1114 = vcmp.ge.s32.totalorder %v250, 2576980377
    %vm1115 = vcmp.ge.s32.totalorder %v251, 2576980377
    %vm1116 = vcmp.ge.s32.totalorder %v252, 2576980377
    %vm1117 = vcmp.ge.s32.totalorder %v253, 2576980377
    %vm1118 = vcmp.ge.s32.totalorder %v254, 2576980377
    %vm1119 = vcmp.ge.s32.totalorder %v255, 2576980377
    %vm1120 = vcmp.ge.s32.totalorder %v256, 2576980377
    %vm1121 = vcmp.ge.s32.totalorder %v257, 2576980377
    %vm1122 = vcmp.ge.s32.totalorder %v258, 2576980377
    %vm1123 = vcmp.ge.s32.totalorder %v259, 2576980377
    %vm1124 = vcmp.ge.s32.totalorder %v260, 2576980377
    %vm1125 = vcmp.ge.s32.totalorder %v261, 2576980377
    %vm1126 = vcmp.ge.s32.totalorder %v262, 2576980377
    %vm1127 = vcmp.ge.s32.totalorder %v263, 2576980377
    %vm1128 = vcmp.ge.s32.totalorder %v264, 2576980377
    %vm1129 = vcmp.ge.s32.totalorder %v265, 2576980377
    %vm1130 = vcmp.ge.s32.totalorder %v266, 2576980377
    %vm1131 = vcmp.ge.s32.totalorder %v267, 2576980377
    %vm1132 = vcmp.ge.s32.totalorder %v268, 2576980377
    %vm1133 = vcmp.ge.s32.totalorder %v269, 2576980377
    %vm1134 = vcmp.ge.s32.totalorder %v270, 2576980377
    %vm1135 = vcmp.ge.s32.totalorder %v271, 2576980377
    %vm1136 = vcmp.ge.s32.totalorder %v272, 2576980377
    %vm1137 = vcmp.ge.s32.totalorder %v273, 2576980377
    %vm1138 = vcmp.ge.s32.totalorder %v274, 2576980377
    %vm1139 = vcmp.ge.s32.totalorder %v275, 2576980377
    %vm1140 = vcmp.ge.s32.totalorder %v276, 2576980377
    %vm1141 = vcmp.ge.s32.totalorder %v277, 2576980377
    %vm1142 = vcmp.ge.s32.totalorder %v278, 2576980377
    %vm1143 = vcmp.ge.s32.totalorder %v279, 2576980377
    %vm1144 = vcmp.ge.s32.totalorder %v280, 2576980377
    %vm1145 = vcmp.ge.s32.totalorder %v281, 2576980377
    %vm1146 = vcmp.ge.s32.totalorder %v282, 2576980377
    %vm1147 = vcmp.ge.s32.totalorder %v283, 2576980377
    %vm1148 = vcmp.ge.s32.totalorder %v284, 2576980377
    %vm1149 = vcmp.ge.s32.totalorder %v285, 2576980377
    %vm1150 = vcmp.ge.s32.totalorder %v286, 2576980377
    %vm1151 = vcmp.ge.s32.totalorder %v287, 2576980377
    %vm1152 = vcmp.ge.s32.totalorder %v288, 2576980377
    %vm1153 = vcmp.ge.s32.totalorder %v289, 2576980377
    %vm1154 = vcmp.ge.s32.totalorder %v290, 2576980377
    %vm1155 = vcmp.ge.s32.totalorder %v291, 2576980377
    %vm1156 = vcmp.ge.s32.totalorder %v292, 2576980377
    %vm1157 = vcmp.ge.s32.totalorder %v293, 2576980377
    %vm1158 = vcmp.ge.s32.totalorder %v294, 2576980377
    %vm1159 = vcmp.ge.s32.totalorder %v295, 2576980377
    %vm1160 = vcmp.ge.s32.totalorder %v296, 2576980377
    %vm1161 = vcmp.ge.s32.totalorder %v297, 2576980377
    %vm1162 = vcmp.ge.s32.totalorder %v298, 2576980377
    %vm1163 = vcmp.ge.s32.totalorder %v299, 2576980377
    %vm1164 = vcmp.ge.s32.totalorder %v300, 2576980377
    %vm1165 = vcmp.ge.s32.totalorder %v301, 2576980377
    %vm1166 = vcmp.ge.s32.totalorder %v302, 2576980377
    %vm1167 = vcmp.ge.s32.totalorder %v303, 2576980377
    %vm1168 = vcmp.ge.s32.totalorder %v304, 2576980377
    %vm1169 = vcmp.ge.s32.totalorder %v305, 2576980377
    %vm1170 = vcmp.ge.s32.totalorder %v306, 2576980377
    %vm1171 = vcmp.ge.s32.totalorder %v307, 2576980377
    %vm1172 = vcmp.ge.s32.totalorder %v308, 2576980377
    %vm1173 = vcmp.ge.s32.totalorder %v309, 2576980377
    %vm1174 = vcmp.ge.s32.totalorder %v310, 2576980377
    %vm1175 = vcmp.ge.s32.totalorder %v311, 2576980377
    %vm1176 = vcmp.ge.s32.totalorder %v312, 2576980377
    %vm1177 = vcmp.ge.s32.totalorder %v313, 2576980377
    %vm1178 = vcmp.ge.s32.totalorder %v314, 2576980377
    %vm1179 = vcmp.ge.s32.totalorder %v315, 2576980377
    %vm1180 = vcmp.ge.s32.totalorder %v316, 2576980377
    %vm1181 = vcmp.ge.s32.totalorder %v317, 2576980377
    %vm1182 = vcmp.ge.s32.totalorder %v318, 2576980377
    %vm1183 = vcmp.ge.s32.totalorder %v319, 2576980377
    %vm1184 = vcmp.ge.s32.totalorder %v320, 2576980377
    %vm1185 = vcmp.ge.s32.totalorder %v321, 2576980377
    %vm1186 = vcmp.ge.s32.totalorder %v322, 2576980377
    %v1187 = vmul.f32 %v323, 1.1111112
    %v1188 = vmul.f32 %v324, 1.1111112
    %v1189 = vmul.f32 %v325, 1.1111112
    %v1190 = vmul.f32 %v326, 1.1111112
    %v1191 = vmul.f32 %v327, 1.1111112
    %v1192 = vmul.f32 %v328, 1.1111112
    %v1193 = vmul.f32 %v329, 1.1111112
    %v1194 = vmul.f32 %v330, 1.1111112
    %v1195 = vmul.f32 %v331, 1.1111112
    %v1196 = vmul.f32 %v332, 1.1111112
    %v1197 = vmul.f32 %v333, 1.1111112
    %v1198 = vmul.f32 %v334, 1.1111112
    %v1199 = vmul.f32 %v335, 1.1111112
    %v1200 = vmul.f32 %v336, 1.1111112
    %v1201 = vmul.f32 %v337, 1.1111112
    %v1202 = vmul.f32 %v338, 1.1111112
    %v1203 = vmul.f32 %v339, 1.1111112
    %v1204 = vmul.f32 %v340, 1.1111112
    %v1205 = vmul.f32 %v341, 1.1111112
    %v1206 = vmul.f32 %v342, 1.1111112
    %v1207 = vmul.f32 %v343, 1.1111112
    %v1208 = vmul.f32 %v344, 1.1111112
    %v1209 = vmul.f32 %v345, 1.1111112
    %v1210 = vmul.f32 %v346, 1.1111112
    %v1211 = vmul.f32 %v347, 1.1111112
    %v1212 = vmul.f32 %v348, 1.1111112
    %v1213 = vmul.f32 %v349, 1.1111112
    %v1214 = vmul.f32 %v350, 1.1111112
    %v1215 = vmul.f32 %v351, 1.1111112
    %v1216 = vmul.f32 %v352, 1.1111112
    %v1217 = vmul.f32 %v353, 1.1111112
    %v1218 = vmul.f32 %v354, 1.1111112
    %v1219 = vmul.f32 %v355, 1.1111112
    %v1220 = vmul.f32 %v356, 1.1111112
    %v1221 = vmul.f32 %v357, 1.1111112
    %v1222 = vmul.f32 %v358, 1.1111112
    %v1223 = vmul.f32 %v359, 1.1111112
    %v1224 = vmul.f32 %v360, 1.1111112
    %v1225 = vmul.f32 %v361, 1.1111112
    %v1226 = vmul.f32 %v362, 1.1111112
    %v1227 = vmul.f32 %v363, 1.1111112
    %v1228 = vmul.f32 %v364, 1.1111112
    %v1229 = vmul.f32 %v365, 1.1111112
    %v1230 = vmul.f32 %v366, 1.1111112
    %v1231 = vmul.f32 %v367, 1.1111112
    %v1232 = vmul.f32 %v368, 1.1111112
    %v1233 = vmul.f32 %v369, 1.1111112
    %v1234 = vmul.f32 %v370, 1.1111112
    %v1235 = vmul.f32 %v371, 1.1111112
    %v1236 = vmul.f32 %v372, 1.1111112
    %v1237 = vmul.f32 %v373, 1.1111112
    %v1238 = vmul.f32 %v374, 1.1111112
    %v1239 = vmul.f32 %v375, 1.1111112
    %v1240 = vmul.f32 %v376, 1.1111112
    %v1241 = vmul.f32 %v377, 1.1111112
    %v1242 = vmul.f32 %v378, 1.1111112
    %v1243 = vmul.f32 %v379, 1.1111112
    %v1244 = vmul.f32 %v380, 1.1111112
    %v1245 = vmul.f32 %v381, 1.1111112
    %v1246 = vmul.f32 %v382, 1.1111112
    %v1247 = vmul.f32 %v383, 1.1111112
    %v1248 = vmul.f32 %v384, 1.1111112
    %v1249 = vmul.f32 %v385, 1.1111112
    %v1250 = vmul.f32 %v386, 1.1111112
    %v1251 = vmul.f32 %v387, 1.1111112
    %v1252 = vmul.f32 %v388, 1.1111112
    %v1253 = vmul.f32 %v389, 1.1111112
    %v1254 = vmul.f32 %v390, 1.1111112
    %v1255 = vmul.f32 %v391, 1.1111112
    %v1256 = vmul.f32 %v392, 1.1111112
    %v1257 = vmul.f32 %v393, 1.1111112
    %v1258 = vmul.f32 %v394, 1.1111112
    %v1259 = vmul.f32 %v395, 1.1111112
    %v1260 = vmul.f32 %v396, 1.1111112
    %v1261 = vmul.f32 %v397, 1.1111112
    %v1262 = vmul.f32 %v398, 1.1111112
    %v1263 = vmul.f32 %v399, 1.1111112
    %v1264 = vmul.f32 %v400, 1.1111112
    %v1265 = vmul.f32 %v401, 1.1111112
    %v1266 = vmul.f32 %v402, 1.1111112
    %v1267 = vmul.f32 %v403, 1.1111112
    %v1268 = vmul.f32 %v404, 1.1111112
    %v1269 = vmul.f32 %v405, 1.1111112
    %v1270 = vmul.f32 %v406, 1.1111112
    %v1271 = vmul.f32 %v407, 1.1111112
    %v1272 = vmul.f32 %v408, 1.1111112
    %v1273 = vmul.f32 %v409, 1.1111112
    %v1274 = vmul.f32 %v410, 1.1111112
    %v1275 = vmul.f32 %v411, 1.1111112
    %v1276 = vmul.f32 %v412, 1.1111112
    %v1277 = vmul.f32 %v413, 1.1111112
    %v1278 = vmul.f32 %v414, 1.1111112
    %v1279 = vmul.f32 %v415, 1.1111112
    %v1280 = vmul.f32 %v416, 1.1111112
    %v1281 = vmul.f32 %v417, 1.1111112
    %v1282 = vmul.f32 %v418, 1.1111112
    %v1283 = vmul.f32 %v419, 1.1111112
    %v1284 = vmul.f32 %v420, 1.1111112
    %v1285 = vmul.f32 %v421, 1.1111112
    %v1286 = vmul.f32 %v422, 1.1111112
    %v1287 = vmul.f32 %v423, 1.1111112
    %v1288 = vmul.f32 %v424, 1.1111112
    %v1289 = vmul.f32 %v425, 1.1111112
    %v1290 = vmul.f32 %v426, 1.1111112
    %v1291 = vmul.f32 %v427, 1.1111112
    %v1292 = vmul.f32 %v428, 1.1111112
    %v1293 = vmul.f32 %v429, 1.1111112
    %v1294 = vmul.f32 %v430, 1.1111112
    %v1295 = vmul.f32 %v431, 1.1111112
    %v1296 = vmul.f32 %v432, 1.1111112
    %v1297 = vmul.f32 %v433, 1.1111112
    %v1298 = vmul.f32 %v434, 1.1111112
    %v1299 = vmul.f32 %v435, 1.1111112
    %v1300 = vmul.f32 %v436, 1.1111112
    %v1301 = vmul.f32 %v437, 1.1111112
    %v1302 = vmul.f32 %v438, 1.1111112
    %v1303 = vmul.f32 %v439, 1.1111112
    %v1304 = vmul.f32 %v440, 1.1111112
    %v1305 = vmul.f32 %v441, 1.1111112
    %v1306 = vmul.f32 %v442, 1.1111112
    %v1307 = vmul.f32 %v443, 1.1111112
    %v1308 = vmul.f32 %v444, 1.1111112
    %v1309 = vmul.f32 %v445, 1.1111112
    %v1310 = vmul.f32 %v446, 1.1111112
    %v1311 = vmul.f32 %v447, 1.1111112
    %v1312 = vmul.f32 %v448, 1.1111112
    %v1313 = vmul.f32 %v449, 1.1111112
    %v1314 = vmul.f32 %v450, 1.1111112
    %v1315 = vmul.f32 %v451, 1.1111112
    %v1316 = vmul.f32 %v452, 1.1111112
    %v1317 = vmul.f32 %v453, 1.1111112
    %v1318 = vmul.f32 %v454, 1.1111112
    %v1319 = vmul.f32 %v455, 1.1111112
    %v1320 = vmul.f32 %v456, 1.1111112
    %v1321 = vmul.f32 %v457, 1.1111112
    %v1322 = vmul.f32 %v458, 1.1111112
    %v1323 = vmul.f32 %v459, 1.1111112
    %v1324 = vmul.f32 %v460, 1.1111112
    %v1325 = vmul.f32 %v461, 1.1111112
    %v1326 = vmul.f32 %v462, 1.1111112
    %v1327 = vmul.f32 %v463, 1.1111112
    %v1328 = vmul.f32 %v464, 1.1111112
    %v1329 = vmul.f32 %v465, 1.1111112
    %v1330 = vmul.f32 %v466, 1.1111112
    %v1331 = vmul.f32 %v467, 1.1111112
    %v1332 = vmul.f32 %v468, 1.1111112
    %v1333 = vmul.f32 %v469, 1.1111112
    %v1334 = vmul.f32 %v470, 1.1111112
    %v1335 = vmul.f32 %v471, 1.1111112
    %v1336 = vmul.f32 %v472, 1.1111112
    %v1337 = vmul.f32 %v473, 1.1111112
    %v1338 = vmul.f32 %v474, 1.1111112
    %v1339 = vmul.f32 %v475, 1.1111112
    %v1340 = vmul.f32 %v476, 1.1111112
    %v1341 = vmul.f32 %v477, 1.1111112
    %v1342 = vmul.f32 %v478, 1.1111112
    %v1343 = vmul.f32 %v479, 1.1111112
    %v1344 = vmul.f32 %v480, 1.1111112
    %v1345 = vmul.f32 %v481, 1.1111112
    %v1346 = vmul.f32 %v482, 1.1111112
    %v1347 = vmul.f32 %v483, 1.1111112
    %v1348 = vmul.f32 %v484, 1.1111112
    %v1349 = vmul.f32 %v485, 1.1111112
    %v1350 = vmul.f32 %v486, 1.1111112
    %v1351 = vmul.f32 %v487, 1.1111112
    %v1352 = vmul.f32 %v488, 1.1111112
    %v1353 = vmul.f32 %v489, 1.1111112
    %v1354 = vmul.f32 %v490, 1.1111112
    %v1355 = vmul.f32 %v491, 1.1111112
    %v1356 = vmul.f32 %v492, 1.1111112
    %v1357 = vmul.f32 %v493, 1.1111112
    %v1358 = vmul.f32 %v494, 1.1111112
    %v1359 = vmul.f32 %v495, 1.1111112
    %v1360 = vmul.f32 %v496, 1.1111112
    %v1361 = vmul.f32 %v497, 1.1111112
    %v1362 = vmul.f32 %v498, 1.1111112
    %v1363 = vmul.f32 %v499, 1.1111112
    %v1364 = vmul.f32 %v500, 1.1111112
    %v1365 = vmul.f32 %v501, 1.1111112
    %v1366 = vmul.f32 %v502, 1.1111112
    %v1367 = vmul.f32 %v503, 1.1111112
    %v1368 = vmul.f32 %v504, 1.1111112
    %v1369 = vmul.f32 %v505, 1.1111112
    %v1370 = vmul.f32 %v506, 1.1111112
    %v1371 = vmul.f32 %v507, 1.1111112
    %v1372 = vmul.f32 %v508, 1.1111112
    %v1373 = vmul.f32 %v509, 1.1111112
    %v1374 = vmul.f32 %v510, 1.1111112
    %v1375 = vmul.f32 %v511, 1.1111112
    %v1376 = vmul.f32 %v512, 1.1111112
    %v1377 = vmul.f32 %v513, 1.1111112
    %v1378 = vmul.f32 %v514, 1.1111112
    %v1379 = vmul.f32 %v515, 1.1111112
    %v1380 = vmul.f32 %v516, 1.1111112
    %v1381 = vmul.f32 %v517, 1.1111112
    %v1382 = vmul.f32 %v518, 1.1111112
    %v1383 = vmul.f32 %v519, 1.1111112
    %v1384 = vmul.f32 %v520, 1.1111112
    %v1385 = vmul.f32 %v521, 1.1111112
    %v1386 = vmul.f32 %v522, 1.1111112
    %v1387 = vmul.f32 %v523, 1.1111112
    %v1388 = vmul.f32 %v524, 1.1111112
    %v1389 = vmul.f32 %v525, 1.1111112
    %v1390 = vmul.f32 %v526, 1.1111112
    %v1391 = vmul.f32 %v527, 1.1111112
    %v1392 = vmul.f32 %v528, 1.1111112
    %v1393 = vmul.f32 %v529, 1.1111112
    %v1394 = vmul.f32 %v530, 1.1111112
    %v1395 = vmul.f32 %v531, 1.1111112
    %v1396 = vmul.f32 %v532, 1.1111112
    %v1397 = vmul.f32 %v533, 1.1111112
    %v1398 = vmul.f32 %v534, 1.1111112
    %v1399 = vmul.f32 %v535, 1.1111112
    %v1400 = vmul.f32 %v536, 1.1111112
    %v1401 = vmul.f32 %v537, 1.1111112
    %v1402 = vmul.f32 %v538, 1.1111112
    %v1403 = vmul.f32 %v539, 1.1111112
    %v1404 = vmul.f32 %v540, 1.1111112
    %v1405 = vmul.f32 %v541, 1.1111112
    %v1406 = vmul.f32 %v542, 1.1111112
    %v1407 = vmul.f32 %v543, 1.1111112
    %v1408 = vmul.f32 %v544, 1.1111112
    %v1409 = vmul.f32 %v545, 1.1111112
    %v1410 = vmul.f32 %v546, 1.1111112
    %v1411 = vmul.f32 %v547, 1.1111112
    %v1412 = vmul.f32 %v548, 1.1111112
    %v1413 = vmul.f32 %v549, 1.1111112
    %v1414 = vmul.f32 %v550, 1.1111112
    %v1415 = vmul.f32 %v551, 1.1111112
    %v1416 = vmul.f32 %v552, 1.1111112
    %v1417 = vmul.f32 %v553, 1.1111112
    %v1418 = vmul.f32 %v554, 1.1111112
    %v1419 = vmul.f32 %v555, 1.1111112
    %v1420 = vmul.f32 %v556, 1.1111112
    %v1421 = vmul.f32 %v557, 1.1111112
    %v1422 = vmul.f32 %v558, 1.1111112
    %v1423 = vmul.f32 %v559, 1.1111112
    %v1424 = vmul.f32 %v560, 1.1111112
    %v1425 = vmul.f32 %v561, 1.1111112
    %v1426 = vmul.f32 %v562, 1.1111112
    %v1427 = vmul.f32 %v563, 1.1111112
    %v1428 = vmul.f32 %v564, 1.1111112
    %v1429 = vmul.f32 %v565, 1.1111112
    %v1430 = vmul.f32 %v566, 1.1111112
    %v1431 = vmul.f32 %v567, 1.1111112
    %v1432 = vmul.f32 %v568, 1.1111112
    %v1433 = vmul.f32 %v569, 1.1111112
    %v1434 = vmul.f32 %v570, 1.1111112
    %v1435 = vmul.f32 %v571, 1.1111112
    %v1436 = vmul.f32 %v572, 1.1111112
    %v1437 = vmul.f32 %v573, 1.1111112
    %v1438 = vmul.f32 %v574, 1.1111112
    %v1439 = vmul.f32 %v575, 1.1111112
    %v1440 = vmul.f32 %v576, 1.1111112
    %v1441 = vmul.f32 %v577, 1.1111112
    %v1442 = vmul.f32 %v578, 1.1111112
    %v1443 = vmul.f32 %v579, 1.1111112
    %v1444 = vmul.f32 %v580, 1.1111112
    %v1445 = vmul.f32 %v581, 1.1111112
    %v1446 = vmul.f32 %v582, 1.1111112
    %v1447 = vmul.f32 %v583, 1.1111112
    %v1448 = vmul.f32 %v584, 1.1111112
    %v1449 = vmul.f32 %v585, 1.1111112
    %v1450 = vmul.f32 %v586, 1.1111112
    %v1451 = vmul.f32 %v587, 1.1111112
    %v1452 = vmul.f32 %v588, 1.1111112
    %v1453 = vmul.f32 %v589, 1.1111112
    %v1454 = vmul.f32 %v590, 1.1111112
    %v1455 = vmul.f32 %v591, 1.1111112
    %v1456 = vmul.f32 %v592, 1.1111112
    %v1457 = vmul.f32 %v593, 1.1111112
    %v1458 = vmul.f32 %v594, 1.1111112
    %v1459 = vmul.f32 %v595, 1.1111112
    %v1460 = vmul.f32 %v596, 1.1111112
    %v1461 = vmul.f32 %v597, 1.1111112
    %v1462 = vmul.f32 %v598, 1.1111112
    %v1463 = vmul.f32 %v599, 1.1111112
    %v1464 = vmul.f32 %v600, 1.1111112
    %v1465 = vmul.f32 %v601, 1.1111112
    %v1466 = vmul.f32 %v602, 1.1111112
    %v1467 = vmul.f32 %v603, 1.1111112
    %v1468 = vmul.f32 %v604, 1.1111112
    %v1469 = vmul.f32 %v605, 1.1111112
    %v1470 = vmul.f32 %v606, 1.1111112
    %v1471 = vmul.f32 %v607, 1.1111112
    %v1472 = vmul.f32 %v608, 1.1111112
    %v1473 = vmul.f32 %v609, 1.1111112
    %v1474 = vmul.f32 %v610, 1.1111112
    %v1475 = vsel %vm899, %v1187, 0.0
    %v1476 = vsel %vm900, %v1188, 0.0
    %v1477 = vsel %vm901, %v1189, 0.0
    %v1478 = vsel %vm902, %v1190, 0.0
    %v1479 = vsel %vm903, %v1191, 0.0
    %v1480 = vsel %vm904, %v1192, 0.0
    %v1481 = vsel %vm905, %v1193, 0.0
    %v1482 = vsel %vm906, %v1194, 0.0
    %v1483 = vsel %vm907, %v1195, 0.0
    %v1484 = vsel %vm908, %v1196, 0.0
    %v1485 = vsel %vm909, %v1197, 0.0
    %v1486 = vsel %vm910, %v1198, 0.0
    %v1487 = vsel %vm911, %v1199, 0.0
    %v1488 = vsel %vm912, %v1200, 0.0
    %v1489 = vsel %vm913, %v1201, 0.0
    %v1490 = vsel %vm914, %v1202, 0.0
    %v1491 = vsel %vm915, %v1203, 0.0
    %v1492 = vsel %vm916, %v1204, 0.0
    %v1493 = vsel %vm917, %v1205, 0.0
    %v1494 = vsel %vm918, %v1206, 0.0
    %v1495 = vsel %vm919, %v1207, 0.0
    %v1496 = vsel %vm920, %v1208, 0.0
    %v1497 = vsel %vm921, %v1209, 0.0
    %v1498 = vsel %vm922, %v1210, 0.0
    %v1499 = vsel %vm923, %v1211, 0.0
    %v1500 = vsel %vm924, %v1212, 0.0
    %v1501 = vsel %vm925, %v1213, 0.0
    %v1502 = vsel %vm926, %v1214, 0.0
    %v1503 = vsel %vm927, %v1215, 0.0
    %v1504 = vsel %vm928, %v1216, 0.0
    %v1505 = vsel %vm929, %v1217, 0.0
    %v1506 = vsel %vm930, %v1218, 0.0
    %v1507 = vsel %vm931, %v1219, 0.0
    %v1508 = vsel %vm932, %v1220, 0.0
    %v1509 = vsel %vm933, %v1221, 0.0
    %v1510 = vsel %vm934, %v1222, 0.0
    %v1511 = vsel %vm935, %v1223, 0.0
    %v1512 = vsel %vm936, %v1224, 0.0
    %v1513 = vsel %vm937, %v1225, 0.0
    %v1514 = vsel %vm938, %v1226, 0.0
    %v1515 = vsel %vm939, %v1227, 0.0
    %v1516 = vsel %vm940, %v1228, 0.0
    %v1517 = vsel %vm941, %v1229, 0.0
    %v1518 = vsel %vm942, %v1230, 0.0
    %v1519 = vsel %vm943, %v1231, 0.0
    %v1520 = vsel %vm944, %v1232, 0.0
    %v1521 = vsel %vm945, %v1233, 0.0
    %v1522 = vsel %vm946, %v1234, 0.0
    %v1523 = vsel %vm947, %v1235, 0.0
    %v1524 = vsel %vm948, %v1236, 0.0
    %v1525 = vsel %vm949, %v1237, 0.0
    %v1526 = vsel %vm950, %v1238, 0.0
    %v1527 = vsel %vm951, %v1239, 0.0
    %v1528 = vsel %vm952, %v1240, 0.0
    %v1529 = vsel %vm953, %v1241, 0.0
    %v1530 = vsel %vm954, %v1242, 0.0
    %v1531 = vsel %vm955, %v1243, 0.0
    %v1532 = vsel %vm956, %v1244, 0.0
    %v1533 = vsel %vm957, %v1245, 0.0
    %v1534 = vsel %vm958, %v1246, 0.0
    %v1535 = vsel %vm959, %v1247, 0.0
    %v1536 = vsel %vm960, %v1248, 0.0
    %v1537 = vsel %vm961, %v1249, 0.0
    %v1538 = vsel %vm962, %v1250, 0.0
    %v1539 = vsel %vm963, %v1251, 0.0
    %v1540 = vsel %vm964, %v1252, 0.0
    %v1541 = vsel %vm965, %v1253, 0.0
    %v1542 = vsel %vm966, %v1254, 0.0
    %v1543 = vsel %vm967, %v1255, 0.0
    %v1544 = vsel %vm968, %v1256, 0.0
    %v1545 = vsel %vm969, %v1257, 0.0
    %v1546 = vsel %vm970, %v1258, 0.0
    %v1547 = vsel %vm971, %v1259, 0.0
    %v1548 = vsel %vm972, %v1260, 0.0
    %v1549 = vsel %vm973, %v1261, 0.0
    %v1550 = vsel %vm974, %v1262, 0.0
    %v1551 = vsel %vm975, %v1263, 0.0
    %v1552 = vsel %vm976, %v1264, 0.0
    %v1553 = vsel %vm977, %v1265, 0.0
    %v1554 = vsel %vm978, %v1266, 0.0
    %v1555 = vsel %vm979, %v1267, 0.0
    %v1556 = vsel %vm980, %v1268, 0.0
    %v1557 = vsel %vm981, %v1269, 0.0
    %v1558 = vsel %vm982, %v1270, 0.0
    %v1559 = vsel %vm983, %v1271, 0.0
    %v1560 = vsel %vm984, %v1272, 0.0
    %v1561 = vsel %vm985, %v1273, 0.0
    %v1562 = vsel %vm986, %v1274, 0.0
    %v1563 = vsel %vm987, %v1275, 0.0
    %v1564 = vsel %vm988, %v1276, 0.0
    %v1565 = vsel %vm989, %v1277, 0.0
    %v1566 = vsel %vm990, %v1278, 0.0
    %v1567 = vsel %vm991, %v1279, 0.0
    %v1568 = vsel %vm992, %v1280, 0.0
    %v1569 = vsel %vm993, %v1281, 0.0
    %v1570 = vsel %vm994, %v1282, 0.0
    %v1571 = vsel %vm995, %v1283, 0.0
    %v1572 = vsel %vm996, %v1284, 0.0
    %v1573 = vsel %vm997, %v1285, 0.0
    %v1574 = vsel %vm998, %v1286, 0.0
    %v1575 = vsel %vm999, %v1287, 0.0
    %v1576 = vsel %vm1000, %v1288, 0.0
    %v1577 = vsel %vm1001, %v1289, 0.0
    %v1578 = vsel %vm1002, %v1290, 0.0
    %v1579 = vsel %vm1003, %v1291, 0.0
    %v1580 = vsel %vm1004, %v1292, 0.0
    %v1581 = vsel %vm1005, %v1293, 0.0
    %v1582 = vsel %vm1006, %v1294, 0.0
    %v1583 = vsel %vm1007, %v1295, 0.0
    %v1584 = vsel %vm1008, %v1296, 0.0
    %v1585 = vsel %vm1009, %v1297, 0.0
    %v1586 = vsel %vm1010, %v1298, 0.0
    %v1587 = vsel %vm1011, %v1299, 0.0
    %v1588 = vsel %vm1012, %v1300, 0.0
    %v1589 = vsel %vm1013, %v1301, 0.0
    %v1590 = vsel %vm1014, %v1302, 0.0
    %v1591 = vsel %vm1015, %v1303, 0.0
    %v1592 = vsel %vm1016, %v1304, 0.0
    %v1593 = vsel %vm1017, %v1305, 0.0
    %v1594 = vsel %vm1018, %v1306, 0.0
    %v1595 = vsel %vm1019, %v1307, 0.0
    %v1596 = vsel %vm1020, %v1308, 0.0
    %v1597 = vsel %vm1021, %v1309, 0.0
    %v1598 = vsel %vm1022, %v1310, 0.0
    %v1599 = vsel %vm1023, %v1311, 0.0
    %v1600 = vsel %vm1024, %v1312, 0.0
    %v1601 = vsel %vm1025, %v1313, 0.0
    %v1602 = vsel %vm1026, %v1314, 0.0
    %v1603 = vsel %vm1027, %v1315, 0.0
    %v1604 = vsel %vm1028, %v1316, 0.0
    %v1605 = vsel %vm1029, %v1317, 0.0
    %v1606 = vsel %vm1030, %v1318, 0.0
    %v1607 = vsel %vm1031, %v1319, 0.0
    %v1608 = vsel %vm1032, %v1320, 0.0
    %v1609 = vsel %vm1033, %v1321, 0.0
    %v1610 = vsel %vm1034, %v1322, 0.0
    %v1611 = vsel %vm1035, %v1323, 0.0
    %v1612 = vsel %vm1036, %v1324, 0.0
    %v1613 = vsel %vm1037, %v1325, 0.0
    %v1614 = vsel %vm1038, %v1326, 0.0
    %v1615 = vsel %vm1039, %v1327, 0.0
    %v1616 = vsel %vm1040, %v1328, 0.0
    %v1617 = vsel %vm1041, %v1329, 0.0
    %v1618 = vsel %vm1042, %v1330, 0.0
    %v1619 = vsel %vm1043, %v1331, 0.0
    %v1620 = vsel %vm1044, %v1332, 0.0
    %v1621 = vsel %vm1045, %v1333, 0.0
    %v1622 = vsel %vm1046, %v1334, 0.0
    %v1623 = vsel %vm1047, %v1335, 0.0
    %v1624 = vsel %vm1048, %v1336, 0.0
    %v1625 = vsel %vm1049, %v1337, 0.0
    %v1626 = vsel %vm1050, %v1338, 0.0
    %v1627 = vsel %vm1051, %v1339, 0.0
    %v1628 = vsel %vm1052, %v1340, 0.0
    %v1629 = vsel %vm1053, %v1341, 0.0
    %v1630 = vsel %vm1054, %v1342, 0.0
    %v1631 = vsel %vm1055, %v1343, 0.0
    %v1632 = vsel %vm1056, %v1344, 0.0
    %v1633 = vsel %vm1057, %v1345, 0.0
    %v1634 = vsel %vm1058, %v1346, 0.0
    %v1635 = vsel %vm1059, %v1347, 0.0
    %v1636 = vsel %vm1060, %v1348, 0.0
    %v1637 = vsel %vm1061, %v1349, 0.0
    %v1638 = vsel %vm1062, %v1350, 0.0
    %v1639 = vsel %vm1063, %v1351, 0.0
    %v1640 = vsel %vm1064, %v1352, 0.0
    %v1641 = vsel %vm1065, %v1353, 0.0
    %v1642 = vsel %vm1066, %v1354, 0.0
    %v1643 = vsel %vm1067, %v1355, 0.0
    %v1644 = vsel %vm1068, %v1356, 0.0
    %v1645 = vsel %vm1069, %v1357, 0.0
    %v1646 = vsel %vm1070, %v1358, 0.0
    %v1647 = vsel %vm1071, %v1359, 0.0
    %v1648 = vsel %vm1072, %v1360, 0.0
    %v1649 = vsel %vm1073, %v1361, 0.0
    %v1650 = vsel %vm1074, %v1362, 0.0
    %v1651 = vsel %vm1075, %v1363, 0.0
    %v1652 = vsel %vm1076, %v1364, 0.0
    %v1653 = vsel %vm1077, %v1365, 0.0
    %v1654 = vsel %vm1078, %v1366, 0.0
    %v1655 = vsel %vm1079, %v1367, 0.0
    %v1656 = vsel %vm1080, %v1368, 0.0
    %v1657 = vsel %vm1081, %v1369, 0.0
    %v1658 = vsel %vm1082, %v1370, 0.0
    %v1659 = vsel %vm1083, %v1371, 0.0
    %v1660 = vsel %vm1084, %v1372, 0.0
    %v1661 = vsel %vm1085, %v1373, 0.0
    %v1662 = vsel %vm1086, %v1374, 0.0
    %v1663 = vsel %vm1087, %v1375, 0.0
    %v1664 = vsel %vm1088, %v1376, 0.0
    %v1665 = vsel %vm1089, %v1377, 0.0
    %v1666 = vsel %vm1090, %v1378, 0.0
    %v1667 = vsel %vm1091, %v1379, 0.0
    %v1668 = vsel %vm1092, %v1380, 0.0
    %v1669 = vsel %vm1093, %v1381, 0.0
    %v1670 = vsel %vm1094, %v1382, 0.0
    %v1671 = vsel %vm1095, %v1383, 0.0
    %v1672 = vsel %vm1096, %v1384, 0.0
    %v1673 = vsel %vm1097, %v1385, 0.0
    %v1674 = vsel %vm1098, %v1386, 0.0
    %v1675 = vsel %vm1099, %v1387, 0.0
    %v1676 = vsel %vm1100, %v1388, 0.0
    %v1677 = vsel %vm1101, %v1389, 0.0
    %v1678 = vsel %vm1102, %v1390, 0.0
    %v1679 = vsel %vm1103, %v1391, 0.0
    %v1680 = vsel %vm1104, %v1392, 0.0
    %v1681 = vsel %vm1105, %v1393, 0.0
    %v1682 = vsel %vm1106, %v1394, 0.0
    %v1683 = vsel %vm1107, %v1395, 0.0
    %v1684 = vsel %vm1108, %v1396, 0.0
    %v1685 = vsel %vm1109, %v1397, 0.0
    %v1686 = vsel %vm1110, %v1398, 0.0
    %v1687 = vsel %vm1111, %v1399, 0.0
    %v1688 = vsel %vm1112, %v1400, 0.0
    %v1689 = vsel %vm1113, %v1401, 0.0
    %v1690 = vsel %vm1114, %v1402, 0.0
    %v1691 = vsel %vm1115, %v1403, 0.0
    %v1692 = vsel %vm1116, %v1404, 0.0
    %v1693 = vsel %vm1117, %v1405, 0.0
    %v1694 = vsel %vm1118, %v1406, 0.0
    %v1695 = vsel %vm1119, %v1407, 0.0
    %v1696 = vsel %vm1120, %v1408, 0.0
    %v1697 = vsel %vm1121, %v1409, 0.0
    %v1698 = vsel %vm1122, %v1410, 0.0
    %v1699 = vsel %vm1123, %v1411, 0.0
    %v1700 = vsel %vm1124, %v1412, 0.0
    %v1701 = vsel %vm1125, %v1413, 0.0
    %v1702 = vsel %vm1126, %v1414, 0.0
    %v1703 = vsel %vm1127, %v1415, 0.0
    %v1704 = vsel %vm1128, %v1416, 0.0
    %v1705 = vsel %vm1129, %v1417, 0.0
    %v1706 = vsel %vm1130, %v1418, 0.0
    %v1707 = vsel %vm1131, %v1419, 0.0
    %v1708 = vsel %vm1132, %v1420, 0.0
    %v1709 = vsel %vm1133, %v1421, 0.0
    %v1710 = vsel %vm1134, %v1422, 0.0
    %v1711 = vsel %vm1135, %v1423, 0.0
    %v1712 = vsel %vm1136, %v1424, 0.0
    %v1713 = vsel %vm1137, %v1425, 0.0
    %v1714 = vsel %vm1138, %v1426, 0.0
    %v1715 = vsel %vm1139, %v1427, 0.0
    %v1716 = vsel %vm1140, %v1428, 0.0
    %v1717 = vsel %vm1141, %v1429, 0.0
    %v1718 = vsel %vm1142, %v1430, 0.0
    %v1719 = vsel %vm1143, %v1431, 0.0
    %v1720 = vsel %vm1144, %v1432, 0.0
    %v1721 = vsel %vm1145, %v1433, 0.0
    %v1722 = vsel %vm1146, %v1434, 0.0
    %v1723 = vsel %vm1147, %v1435, 0.0
    %v1724 = vsel %vm1148, %v1436, 0.0
    %v1725 = vsel %vm1149, %v1437, 0.0
    %v1726 = vsel %vm1150, %v1438, 0.0
    %v1727 = vsel %vm1151, %v1439, 0.0
    %v1728 = vsel %vm1152, %v1440, 0.0
    %v1729 = vsel %vm1153, %v1441, 0.0
    %v1730 = vsel %vm1154, %v1442, 0.0
    %v1731 = vsel %vm1155, %v1443, 0.0
    %v1732 = vsel %vm1156, %v1444, 0.0
    %v1733 = vsel %vm1157, %v1445, 0.0
    %v1734 = vsel %vm1158, %v1446, 0.0
    %v1735 = vsel %vm1159, %v1447, 0.0
    %v1736 = vsel %vm1160, %v1448, 0.0
    %v1737 = vsel %vm1161, %v1449, 0.0
    %v1738 = vsel %vm1162, %v1450, 0.0
    %v1739 = vsel %vm1163, %v1451, 0.0
    %v1740 = vsel %vm1164, %v1452, 0.0
    %v1741 = vsel %vm1165, %v1453, 0.0
    %v1742 = vsel %vm1166, %v1454, 0.0
    %v1743 = vsel %vm1167, %v1455, 0.0
    %v1744 = vsel %vm1168, %v1456, 0.0
    %v1745 = vsel %vm1169, %v1457, 0.0
    %v1746 = vsel %vm1170, %v1458, 0.0
    %v1747 = vsel %vm1171, %v1459, 0.0
    %v1748 = vsel %vm1172, %v1460, 0.0
    %v1749 = vsel %vm1173, %v1461, 0.0
    %v1750 = vsel %vm1174, %v1462, 0.0
    %v1751 = vsel %vm1175, %v1463, 0.0
    %v1752 = vsel %vm1176, %v1464, 0.0
    %v1753 = vsel %vm1177, %v1465, 0.0
    %v1754 = vsel %vm1178, %v1466, 0.0
    %v1755 = vsel %vm1179, %v1467, 0.0
    %v1756 = vsel %vm1180, %v1468, 0.0
    %v1757 = vsel %vm1181, %v1469, 0.0
    %v1758 = vsel %vm1182, %v1470, 0.0
    %v1759 = vsel %vm1183, %v1471, 0.0
    %v1760 = vsel %vm1184, %v1472, 0.0
    %v1761 = vsel %vm1185, %v1473, 0.0
    %v1762 = vsel %vm1186, %v1474, 0.0
    %v1763 = vadd.f32 %v611, %v1475
    %v1764 = vadd.f32 %v612, %v1476
    %v1765 = vadd.f32 %v613, %v1477
    %v1766 = vadd.f32 %v614, %v1478
    %v1767 = vadd.f32 %v615, %v1479
    %v1768 = vadd.f32 %v616, %v1480
    %v1769 = vadd.f32 %v617, %v1481
    %v1770 = vadd.f32 %v618, %v1482
    %v1771 = vadd.f32 %v619, %v1483
    %v1772 = vadd.f32 %v620, %v1484
    %v1773 = vadd.f32 %v621, %v1485
    %v1774 = vadd.f32 %v622, %v1486
    %v1775 = vadd.f32 %v623, %v1487
    %v1776 = vadd.f32 %v624, %v1488
    %v1777 = vadd.f32 %v625, %v1489
    %v1778 = vadd.f32 %v626, %v1490
    %v1779 = vadd.f32 %v627, %v1491
    %v1780 = vadd.f32 %v628, %v1492
    %v1781 = vadd.f32 %v629, %v1493
    %v1782 = vadd.f32 %v630, %v1494
    %v1783 = vadd.f32 %v631, %v1495
    %v1784 = vadd.f32 %v632, %v1496
    %v1785 = vadd.f32 %v633, %v1497
    %v1786 = vadd.f32 %v634, %v1498
    %v1787 = vadd.f32 %v635, %v1499
    %v1788 = vadd.f32 %v636, %v1500
    %v1789 = vadd.f32 %v637, %v1501
    %v1790 = vadd.f32 %v638, %v1502
    %v1791 = vadd.f32 %v639, %v1503
    %v1792 = vadd.f32 %v640, %v1504
    %v1793 = vadd.f32 %v641, %v1505
    %v1794 = vadd.f32 %v642, %v1506
    %v1795 = vadd.f32 %v643, %v1507
    %v1796 = vadd.f32 %v644, %v1508
    %v1797 = vadd.f32 %v645, %v1509
    %v1798 = vadd.f32 %v646, %v1510
    %v1799 = vadd.f32 %v647, %v1511
    %v1800 = vadd.f32 %v648, %v1512
    %v1801 = vadd.f32 %v649, %v1513
    %v1802 = vadd.f32 %v650, %v1514
    %v1803 = vadd.f32 %v651, %v1515
    %v1804 = vadd.f32 %v652, %v1516
    %v1805 = vadd.f32 %v653, %v1517
    %v1806 = vadd.f32 %v654, %v1518
    %v1807 = vadd.f32 %v655, %v1519
    %v1808 = vadd.f32 %v656, %v1520
    %v1809 = vadd.f32 %v657, %v1521
    %v1810 = vadd.f32 %v658, %v1522
    %v1811 = vadd.f32 %v659, %v1523
    %v1812 = vadd.f32 %v660, %v1524
    %v1813 = vadd.f32 %v661, %v1525
    %v1814 = vadd.f32 %v662, %v1526
    %v1815 = vadd.f32 %v663, %v1527
    %v1816 = vadd.f32 %v664, %v1528
    %v1817 = vadd.f32 %v665, %v1529
    %v1818 = vadd.f32 %v666, %v1530
    %v1819 = vadd.f32 %v667, %v1531
    %v1820 = vadd.f32 %v668, %v1532
    %v1821 = vadd.f32 %v669, %v1533
    %v1822 = vadd.f32 %v670, %v1534
    %v1823 = vadd.f32 %v671, %v1535
    %v1824 = vadd.f32 %v672, %v1536
    %v1825 = vadd.f32 %v673, %v1537
    %v1826 = vadd.f32 %v674, %v1538
    %v1827 = vadd.f32 %v675, %v1539
    %v1828 = vadd.f32 %v676, %v1540
    %v1829 = vadd.f32 %v677, %v1541
    %v1830 = vadd.f32 %v678, %v1542
    %v1831 = vadd.f32 %v679, %v1543
    %v1832 = vadd.f32 %v680, %v1544
    %v1833 = vadd.f32 %v681, %v1545
    %v1834 = vadd.f32 %v682, %v1546
    %v1835 = vadd.f32 %v683, %v1547
    %v1836 = vadd.f32 %v684, %v1548
    %v1837 = vadd.f32 %v685, %v1549
    %v1838 = vadd.f32 %v686, %v1550
    %v1839 = vadd.f32 %v687, %v1551
    %v1840 = vadd.f32 %v688, %v1552
    %v1841 = vadd.f32 %v689, %v1553
    %v1842 = vadd.f32 %v690, %v1554
    %v1843 = vadd.f32 %v691, %v1555
    %v1844 = vadd.f32 %v692, %v1556
    %v1845 = vadd.f32 %v693, %v1557
    %v1846 = vadd.f32 %v694, %v1558
    %v1847 = vadd.f32 %v695, %v1559
    %v1848 = vadd.f32 %v696, %v1560
    %v1849 = vadd.f32 %v697, %v1561
    %v1850 = vadd.f32 %v698, %v1562
    %v1851 = vadd.f32 %v699, %v1563
    %v1852 = vadd.f32 %v700, %v1564
    %v1853 = vadd.f32 %v701, %v1565
    %v1854 = vadd.f32 %v702, %v1566
    %v1855 = vadd.f32 %v703, %v1567
    %v1856 = vadd.f32 %v704, %v1568
    %v1857 = vadd.f32 %v705, %v1569
    %v1858 = vadd.f32 %v706, %v1570
    %v1859 = vadd.f32 %v707, %v1571
    %v1860 = vadd.f32 %v708, %v1572
    %v1861 = vadd.f32 %v709, %v1573
    %v1862 = vadd.f32 %v710, %v1574
    %v1863 = vadd.f32 %v711, %v1575
    %v1864 = vadd.f32 %v712, %v1576
    %v1865 = vadd.f32 %v713, %v1577
    %v1866 = vadd.f32 %v714, %v1578
    %v1867 = vadd.f32 %v715, %v1579
    %v1868 = vadd.f32 %v716, %v1580
    %v1869 = vadd.f32 %v717, %v1581
    %v1870 = vadd.f32 %v718, %v1582
    %v1871 = vadd.f32 %v719, %v1583
    %v1872 = vadd.f32 %v720, %v1584
    %v1873 = vadd.f32 %v721, %v1585
    %v1874 = vadd.f32 %v722, %v1586
    %v1875 = vadd.f32 %v723, %v1587
    %v1876 = vadd.f32 %v724, %v1588
    %v1877 = vadd.f32 %v725, %v1589
    %v1878 = vadd.f32 %v726, %v1590
    %v1879 = vadd.f32 %v727, %v1591
    %v1880 = vadd.f32 %v728, %v1592
    %v1881 = vadd.f32 %v729, %v1593
    %v1882 = vadd.f32 %v730, %v1594
    %v1883 = vadd.f32 %v731, %v1595
    %v1884 = vadd.f32 %v732, %v1596
    %v1885 = vadd.f32 %v733, %v1597
    %v1886 = vadd.f32 %v734, %v1598
    %v1887 = vadd.f32 %v735, %v1599
    %v1888 = vadd.f32 %v736, %v1600
    %v1889 = vadd.f32 %v737, %v1601
    %v1890 = vadd.f32 %v738, %v1602
    %v1891 = vadd.f32 %v739, %v1603
    %v1892 = vadd.f32 %v740, %v1604
    %v1893 = vadd.f32 %v741, %v1605
    %v1894 = vadd.f32 %v742, %v1606
    %v1895 = vadd.f32 %v743, %v1607
    %v1896 = vadd.f32 %v744, %v1608
    %v1897 = vadd.f32 %v745, %v1609
    %v1898 = vadd.f32 %v746, %v1610
    %v1899 = vadd.f32 %v747, %v1611
    %v1900 = vadd.f32 %v748, %v1612
    %v1901 = vadd.f32 %v749, %v1613
    %v1902 = vadd.f32 %v750, %v1614
    %v1903 = vadd.f32 %v751, %v1615
    %v1904 = vadd.f32 %v752, %v1616
    %v1905 = vadd.f32 %v753, %v1617
    %v1906 = vadd.f32 %v754, %v1618
    %v1907 = vadd.f32 %v755, %v1619
    %v1908 = vadd.f32 %v756, %v1620
    %v1909 = vadd.f32 %v757, %v1621
    %v1910 = vadd.f32 %v758, %v1622
    %v1911 = vadd.f32 %v759, %v1623
    %v1912 = vadd.f32 %v760, %v1624
    %v1913 = vadd.f32 %v761, %v1625
    %v1914 = vadd.f32 %v762, %v1626
    %v1915 = vadd.f32 %v763, %v1627
    %v1916 = vadd.f32 %v764, %v1628
    %v1917 = vadd.f32 %v765, %v1629
    %v1918 = vadd.f32 %v766, %v1630
    %v1919 = vadd.f32 %v767, %v1631
    %v1920 = vadd.f32 %v768, %v1632
    %v1921 = vadd.f32 %v769, %v1633
    %v1922 = vadd.f32 %v770, %v1634
    %v1923 = vadd.f32 %v771, %v1635
    %v1924 = vadd.f32 %v772, %v1636
    %v1925 = vadd.f32 %v773, %v1637
    %v1926 = vadd.f32 %v774, %v1638
    %v1927 = vadd.f32 %v775, %v1639
    %v1928 = vadd.f32 %v776, %v1640
    %v1929 = vadd.f32 %v777, %v1641
    %v1930 = vadd.f32 %v778, %v1642
    %v1931 = vadd.f32 %v779, %v1643
    %v1932 = vadd.f32 %v780, %v1644
    %v1933 = vadd.f32 %v781, %v1645
    %v1934 = vadd.f32 %v782, %v1646
    %v1935 = vadd.f32 %v783, %v1647
    %v1936 = vadd.f32 %v784, %v1648
    %v1937 = vadd.f32 %v785, %v1649
    %v1938 = vadd.f32 %v786, %v1650
    %v1939 = vadd.f32 %v787, %v1651
    %v1940 = vadd.f32 %v788, %v1652
    %v1941 = vadd.f32 %v789, %v1653
    %v1942 = vadd.f32 %v790, %v1654
    %v1943 = vadd.f32 %v791, %v1655
    %v1944 = vadd.f32 %v792, %v1656
    %v1945 = vadd.f32 %v793, %v1657
    %v1946 = vadd.f32 %v794, %v1658
    %v1947 = vadd.f32 %v795, %v1659
    %v1948 = vadd.f32 %v796, %v1660
    %v1949 = vadd.f32 %v797, %v1661
    %v1950 = vadd.f32 %v798, %v1662
    %v1951 = vadd.f32 %v799, %v1663
    %v1952 = vadd.f32 %v800, %v1664
    %v1953 = vadd.f32 %v801, %v1665
    %v1954 = vadd.f32 %v802, %v1666
    %v1955 = vadd.f32 %v803, %v1667
    %v1956 = vadd.f32 %v804, %v1668
    %v1957 = vadd.f32 %v805, %v1669
    %v1958 = vadd.f32 %v806, %v1670
    %v1959 = vadd.f32 %v807, %v1671
    %v1960 = vadd.f32 %v808, %v1672
    %v1961 = vadd.f32 %v809, %v1673
    %v1962 = vadd.f32 %v810, %v1674
    %v1963 = vadd.f32 %v811, %v1675
    %v1964 = vadd.f32 %v812, %v1676
    %v1965 = vadd.f32 %v813, %v1677
    %v1966 = vadd.f32 %v814, %v1678
    %v1967 = vadd.f32 %v815, %v1679
    %v1968 = vadd.f32 %v816, %v1680
    %v1969 = vadd.f32 %v817, %v1681
    %v1970 = vadd.f32 %v818, %v1682
    %v1971 = vadd.f32 %v819, %v1683
    %v1972 = vadd.f32 %v820, %v1684
    %v1973 = vadd.f32 %v821, %v1685
    %v1974 = vadd.f32 %v822, %v1686
    %v1975 = vadd.f32 %v823, %v1687
    %v1976 = vadd.f32 %v824, %v1688
    %v1977 = vadd.f32 %v825, %v1689
    %v1978 = vadd.f32 %v826, %v1690
    %v1979 = vadd.f32 %v827, %v1691
    %v1980 = vadd.f32 %v828, %v1692
    %v1981 = vadd.f32 %v829, %v1693
    %v1982 = vadd.f32 %v830, %v1694
    %v1983 = vadd.f32 %v831, %v1695
    %v1984 = vadd.f32 %v832, %v1696
    %v1985 = vadd.f32 %v833, %v1697
    %v1986 = vadd.f32 %v834, %v1698
    %v1987 = vadd.f32 %v835, %v1699
    %v1988 = vadd.f32 %v836, %v1700
    %v1989 = vadd.f32 %v837, %v1701
    %v1990 = vadd.f32 %v838, %v1702
    %v1991 = vadd.f32 %v839, %v1703
    %v1992 = vadd.f32 %v840, %v1704
    %v1993 = vadd.f32 %v841, %v1705
    %v1994 = vadd.f32 %v842, %v1706
    %v1995 = vadd.f32 %v843, %v1707
    %v1996 = vadd.f32 %v844, %v1708
    %v1997 = vadd.f32 %v845, %v1709
    %v1998 = vadd.f32 %v846, %v1710
    %v1999 = vadd.f32 %v847, %v1711
    %v2000 = vadd.f32 %v848, %v1712
    %v2001 = vadd.f32 %v849, %v1713
    %v2002 = vadd.f32 %v850, %v1714
    %v2003 = vadd.f32 %v851, %v1715
    %v2004 = vadd.f32 %v852, %v1716
    %v2005 = vadd.f32 %v853, %v1717
    %v2006 = vadd.f32 %v854, %v1718
    %v2007 = vadd.f32 %v855, %v1719
    %v2008 = vadd.f32 %v856, %v1720
    %v2009 = vadd.f32 %v857, %v1721
    %v2010 = vadd.f32 %v858, %v1722
    %v2011 = vadd.f32 %v859, %v1723
    %v2012 = vadd.f32 %v860, %v1724
    %v2013 = vadd.f32 %v861, %v1725
    %v2014 = vadd.f32 %v862, %v1726
    %v2015 = vadd.f32 %v863, %v1727
    %v2016 = vadd.f32 %v864, %v1728
    %v2017 = vadd.f32 %v865, %v1729
    %v2018 = vadd.f32 %v866, %v1730
    %v2019 = vadd.f32 %v867, %v1731
    %v2020 = vadd.f32 %v868, %v1732
    %v2021 = vadd.f32 %v869, %v1733
    %v2022 = vadd.f32 %v870, %v1734
    %v2023 = vadd.f32 %v871, %v1735
    %v2024 = vadd.f32 %v872, %v1736
    %v2025 = vadd.f32 %v873, %v1737
    %v2026 = vadd.f32 %v874, %v1738
    %v2027 = vadd.f32 %v875, %v1739
    %v2028 = vadd.f32 %v876, %v1740
    %v2029 = vadd.f32 %v877, %v1741
    %v2030 = vadd.f32 %v878, %v1742
    %v2031 = vadd.f32 %v879, %v1743
    %v2032 = vadd.f32 %v880, %v1744
    %v2033 = vadd.f32 %v881, %v1745
    %v2034 = vadd.f32 %v882, %v1746
    %v2035 = vadd.f32 %v883, %v1747
    %v2036 = vadd.f32 %v884, %v1748
    %v2037 = vadd.f32 %v885, %v1749
    %v2038 = vadd.f32 %v886, %v1750
    %v2039 = vadd.f32 %v887, %v1751
    %v2040 = vadd.f32 %v888, %v1752
    %v2041 = vadd.f32 %v889, %v1753
    %v2042 = vadd.f32 %v890, %v1754
    %v2043 = vadd.f32 %v891, %v1755
    %v2044 = vadd.f32 %v892, %v1756
    %v2045 = vadd.f32 %v893, %v1757
    %v2046 = vadd.f32 %v894, %v1758
    %v2047 = vadd.f32 %v895, %v1759
    %v2048 = vadd.f32 %v896, %v1760
    %v2049 = vadd.f32 %v897, %v1761
    %v2050 = vadd.f32 %v898, %v1762
    %v2051 = vadd.f32 %v1763, %v1764
    %v2052 = vadd.f32 %v2051, %v1765
    %v2053 = vadd.f32 %v2052, %v1766
    %v2054 = vadd.f32 %v2053, %v1767
    %v2055 = vadd.f32 %v2054, %v1768
    %2056 = vadd.xlane.f32.xlu0 %v2055
    %v2057 = vpop.xlane.xlu0 %2056
    %v2058 = vadd.f32 %v1769, %v1770
    %v2059 = vadd.f32 %v2058, %v1771
    %v2060 = vadd.f32 %v2059, %v1772
    %v2061 = vadd.f32 %v2060, %v1773
    %v2062 = vadd.f32 %v2061, %v1774
    %2063 = vadd.xlane.f32.xlu0 %v2062
    %v2064 = vpop.xlane.xlu0 %2063
    %v2065 = vadd.f32 %v1775, %v1776
    %v2066 = vadd.f32 %v2065, %v1777
    %v2067 = vadd.f32 %v2066, %v1778
    %v2068 = vadd.f32 %v2067, %v1779
    %v2069 = vadd.f32 %v2068, %v1780
    %2070 = vadd.xlane.f32.xlu0 %v2069
    %v2071 = vpop.xlane.xlu0 %2070
    %v2072 = vadd.f32 %v1781, %v1782
    %v2073 = vadd.f32 %v2072, %v1783
    %v2074 = vadd.f32 %v2073, %v1784
    %v2075 = vadd.f32 %v2074, %v1785
    %v2076 = vadd.f32 %v2075, %v1786
    %2077 = vadd.xlane.f32.xlu0 %v2076
    %v2078 = vpop.xlane.xlu0 %2077
    %v2079 = vadd.f32 %v1787, %v1788
    %v2080 = vadd.f32 %v2079, %v1789
    %v2081 = vadd.f32 %v2080, %v1790
    %v2082 = vadd.f32 %v2081, %v1791
    %v2083 = vadd.f32 %v2082, %v1792
    %2084 = vadd.xlane.f32.xlu0 %v2083
    %v2085 = vpop.xlane.xlu0 %2084
    %v2086 = vadd.f32 %v1793, %v1794
    %v2087 = vadd.f32 %v2086, %v1795
    %v2088 = vadd.f32 %v2087, %v1796
    %v2089 = vadd.f32 %v2088, %v1797
    %v2090 = vadd.f32 %v2089, %v1798
    %2091 = vadd.xlane.f32.xlu0 %v2090
    %v2092 = vpop.xlane.xlu0 %2091
    %v2093 = vadd.f32 %v1799, %v1800
    %v2094 = vadd.f32 %v2093, %v1801
    %v2095 = vadd.f32 %v2094, %v1802
    %v2096 = vadd.f32 %v2095, %v1803
    %v2097 = vadd.f32 %v2096, %v1804
    %2098 = vadd.xlane.f32.xlu0 %v2097
    %v2099 = vpop.xlane.xlu0 %2098
    %v2100 = vadd.f32 %v1805, %v1806
    %v2101 = vadd.f32 %v2100, %v1807
    %v2102 = vadd.f32 %v2101, %v1808
    %v2103 = vadd.f32 %v2102, %v1809
    %v2104 = vadd.f32 %v2103, %v1810
    %2105 = vadd.xlane.f32.xlu0 %v2104
    %v2106 = vpop.xlane.xlu0 %2105
    %v2107 = vadd.f32 %v1811, %v1812
    %v2108 = vadd.f32 %v2107, %v1813
    %v2109 = vadd.f32 %v2108, %v1814
    %v2110 = vadd.f32 %v2109, %v1815
    %v2111 = vadd.f32 %v2110, %v1816
    %2112 = vadd.xlane.f32.xlu0 %v2111
    %v2113 = vpop.xlane.xlu0 %2112
    %v2114 = vadd.f32 %v1817, %v1818
    %v2115 = vadd.f32 %v2114, %v1819
    %v2116 = vadd.f32 %v2115, %v1820
    %v2117 = vadd.f32 %v2116, %v1821
    %v2118 = vadd.f32 %v2117, %v1822
    %2119 = vadd.xlane.f32.xlu0 %v2118
    %v2120 = vpop.xlane.xlu0 %2119
    %v2121 = vadd.f32 %v1823, %v1824
    %v2122 = vadd.f32 %v2121, %v1825
    %v2123 = vadd.f32 %v2122, %v1826
    %v2124 = vadd.f32 %v2123, %v1827
    %v2125 = vadd.f32 %v2124, %v1828
    %2126 = vadd.xlane.f32.xlu0 %v2125
    %v2127 = vpop.xlane.xlu0 %2126
    %v2128 = vadd.f32 %v1829, %v1830
    %v2129 = vadd.f32 %v2128, %v1831
    %v2130 = vadd.f32 %v2129, %v1832
    %v2131 = vadd.f32 %v2130, %v1833
    %v2132 = vadd.f32 %v2131, %v1834
    %2133 = vadd.xlane.f32.xlu0 %v2132
    %v2134 = vpop.xlane.xlu0 %2133
    %v2135 = vadd.f32 %v1835, %v1836
    %v2136 = vadd.f32 %v2135, %v1837
    %v2137 = vadd.f32 %v2136, %v1838
    %v2138 = vadd.f32 %v2137, %v1839
    %v2139 = vadd.f32 %v2138, %v1840
    %2140 = vadd.xlane.f32.xlu0 %v2139
    %v2141 = vpop.xlane.xlu0 %2140
    %v2142 = vadd.f32 %v1841, %v1842
    %v2143 = vadd.f32 %v2142, %v1843
    %v2144 = vadd.f32 %v2143, %v1844
    %v2145 = vadd.f32 %v2144, %v1845
    %v2146 = vadd.f32 %v2145, %v1846
    %2147 = vadd.xlane.f32.xlu0 %v2146
    %v2148 = vpop.xlane.xlu0 %2147
    %v2149 = vadd.f32 %v1847, %v1848
    %v2150 = vadd.f32 %v2149, %v1849
    %v2151 = vadd.f32 %v2150, %v1850
    %v2152 = vadd.f32 %v2151, %v1851
    %v2153 = vadd.f32 %v2152, %v1852
    %2154 = vadd.xlane.f32.xlu0 %v2153
    %v2155 = vpop.xlane.xlu0 %2154
    %v2156 = vadd.f32 %v1853, %v1854
    %v2157 = vadd.f32 %v2156, %v1855
    %v2158 = vadd.f32 %v2157, %v1856
    %v2159 = vadd.f32 %v2158, %v1857
    %v2160 = vadd.f32 %v2159, %v1858
    %2161 = vadd.xlane.f32.xlu0 %v2160
    %v2162 = vpop.xlane.xlu0 %2161
    %v2163 = vadd.f32 %v1859, %v1860
    %v2164 = vadd.f32 %v2163, %v1861
    %v2165 = vadd.f32 %v2164, %v1862
    %v2166 = vadd.f32 %v2165, %v1863
    %v2167 = vadd.f32 %v2166, %v1864
    %2168 = vadd.xlane.f32.xlu0 %v2167
    %v2169 = vpop.xlane.xlu0 %2168
    %v2170 = vadd.f32 %v1865, %v1866
    %v2171 = vadd.f32 %v2170, %v1867
    %v2172 = vadd.f32 %v2171, %v1868
    %v2173 = vadd.f32 %v2172, %v1869
    %v2174 = vadd.f32 %v2173, %v1870
    %2175 = vadd.xlane.f32.xlu0 %v2174
    %v2176 = vpop.xlane.xlu0 %2175
    %v2177 = vadd.f32 %v1871, %v1872
    %v2178 = vadd.f32 %v2177, %v1873
    %v2179 = vadd.f32 %v2178, %v1874
    %v2180 = vadd.f32 %v2179, %v1875
    %v2181 = vadd.f32 %v2180, %v1876
    %2182 = vadd.xlane.f32.xlu0 %v2181
    %v2183 = vpop.xlane.xlu0 %2182
    %v2184 = vadd.f32 %v1877, %v1878
    %v2185 = vadd.f32 %v2184, %v1879
    %v2186 = vadd.f32 %v2185, %v1880
    %v2187 = vadd.f32 %v2186, %v1881
    %v2188 = vadd.f32 %v2187, %v1882
    %2189 = vadd.xlane.f32.xlu0 %v2188
    %v2190 = vpop.xlane.xlu0 %2189
    %v2191 = vadd.f32 %v1883, %v1884
    %v2192 = vadd.f32 %v2191, %v1885
    %v2193 = vadd.f32 %v2192, %v1886
    %v2194 = vadd.f32 %v2193, %v1887
    %v2195 = vadd.f32 %v2194, %v1888
    %2196 = vadd.xlane.f32.xlu0 %v2195
    %v2197 = vpop.xlane.xlu0 %2196
    %v2198 = vadd.f32 %v1889, %v1890
    %v2199 = vadd.f32 %v2198, %v1891
    %v2200 = vadd.f32 %v2199, %v1892
    %v2201 = vadd.f32 %v2200, %v1893
    %v2202 = vadd.f32 %v2201, %v1894
    %2203 = vadd.xlane.f32.xlu0 %v2202
    %v2204 = vpop.xlane.xlu0 %2203
    %v2205 = vadd.f32 %v1895, %v1896
    %v2206 = vadd.f32 %v2205, %v1897
    %v2207 = vadd.f32 %v2206, %v1898
    %v2208 = vadd.f32 %v2207, %v1899
    %v2209 = vadd.f32 %v2208, %v1900
    %2210 = vadd.xlane.f32.xlu0 %v2209
    %v2211 = vpop.xlane.xlu0 %2210
    %v2212 = vadd.f32 %v1901, %v1902
    %v2213 = vadd.f32 %v2212, %v1903
    %v2214 = vadd.f32 %v2213, %v1904
    %v2215 = vadd.f32 %v2214, %v1905
    %v2216 = vadd.f32 %v2215, %v1906
    %2217 = vadd.xlane.f32.xlu0 %v2216
    %v2218 = vpop.xlane.xlu0 %2217
    %v2219 = vadd.f32 %v1907, %v1908
    %v2220 = vadd.f32 %v2219, %v1909
    %v2221 = vadd.f32 %v2220, %v1910
    %v2222 = vadd.f32 %v2221, %v1911
    %v2223 = vadd.f32 %v2222, %v1912
    %2224 = vadd.xlane.f32.xlu0 %v2223
    %v2225 = vpop.xlane.xlu0 %2224
    %v2226 = vadd.f32 %v1913, %v1914
    %v2227 = vadd.f32 %v2226, %v1915
    %v2228 = vadd.f32 %v2227, %v1916
    %v2229 = vadd.f32 %v2228, %v1917
    %v2230 = vadd.f32 %v2229, %v1918
    %2231 = vadd.xlane.f32.xlu0 %v2230
    %v2232 = vpop.xlane.xlu0 %2231
    %v2233 = vadd.f32 %v1919, %v1920
    %v2234 = vadd.f32 %v2233, %v1921
    %v2235 = vadd.f32 %v2234, %v1922
    %v2236 = vadd.f32 %v2235, %v1923
    %v2237 = vadd.f32 %v2236, %v1924
    %2238 = vadd.xlane.f32.xlu0 %v2237
    %v2239 = vpop.xlane.xlu0 %2238
    %v2240 = vadd.f32 %v1925, %v1926
    %v2241 = vadd.f32 %v2240, %v1927
    %v2242 = vadd.f32 %v2241, %v1928
    %v2243 = vadd.f32 %v2242, %v1929
    %v2244 = vadd.f32 %v2243, %v1930
    %2245 = vadd.xlane.f32.xlu0 %v2244
    %v2246 = vpop.xlane.xlu0 %2245
    %v2247 = vadd.f32 %v1931, %v1932
    %v2248 = vadd.f32 %v2247, %v1933
    %v2249 = vadd.f32 %v2248, %v1934
    %v2250 = vadd.f32 %v2249, %v1935
    %v2251 = vadd.f32 %v2250, %v1936
    %2252 = vadd.xlane.f32.xlu0 %v2251
    %v2253 = vpop.xlane.xlu0 %2252
    %v2254 = vadd.f32 %v1937, %v1938
    %v2255 = vadd.f32 %v2254, %v1939
    %v2256 = vadd.f32 %v2255, %v1940
    %v2257 = vadd.f32 %v2256, %v1941
    %v2258 = vadd.f32 %v2257, %v1942
    %2259 = vadd.xlane.f32.xlu0 %v2258
    %v2260 = vpop.xlane.xlu0 %2259
    %v2261 = vadd.f32 %v1943, %v1944
    %v2262 = vadd.f32 %v2261, %v1945
    %v2263 = vadd.f32 %v2262, %v1946
    %v2264 = vadd.f32 %v2263, %v1947
    %v2265 = vadd.f32 %v2264, %v1948
    %2266 = vadd.xlane.f32.xlu0 %v2265
    %v2267 = vpop.xlane.xlu0 %2266
    %v2268 = vadd.f32 %v1949, %v1950
    %v2269 = vadd.f32 %v2268, %v1951
    %v2270 = vadd.f32 %v2269, %v1952
    %v2271 = vadd.f32 %v2270, %v1953
    %v2272 = vadd.f32 %v2271, %v1954
    %2273 = vadd.xlane.f32.xlu0 %v2272
    %v2274 = vpop.xlane.xlu0 %2273
    %v2275 = vadd.f32 %v1955, %v1956
    %v2276 = vadd.f32 %v2275, %v1957
    %v2277 = vadd.f32 %v2276, %v1958
    %v2278 = vadd.f32 %v2277, %v1959
    %v2279 = vadd.f32 %v2278, %v1960
    %2280 = vadd.xlane.f32.xlu0 %v2279
    %v2281 = vpop.xlane.xlu0 %2280
    %v2282 = vadd.f32 %v1961, %v1962
    %v2283 = vadd.f32 %v2282, %v1963
    %v2284 = vadd.f32 %v2283, %v1964
    %v2285 = vadd.f32 %v2284, %v1965
    %v2286 = vadd.f32 %v2285, %v1966
    %2287 = vadd.xlane.f32.xlu0 %v2286
    %v2288 = vpop.xlane.xlu0 %2287
    %v2289 = vadd.f32 %v1967, %v1968
    %v2290 = vadd.f32 %v2289, %v1969
    %v2291 = vadd.f32 %v2290, %v1970
    %v2292 = vadd.f32 %v2291, %v1971
    %v2293 = vadd.f32 %v2292, %v1972
    %2294 = vadd.xlane.f32.xlu0 %v2293
    %v2295 = vpop.xlane.xlu0 %2294
    %v2296 = vadd.f32 %v1973, %v1974
    %v2297 = vadd.f32 %v2296, %v1975
    %v2298 = vadd.f32 %v2297, %v1976
    %v2299 = vadd.f32 %v2298, %v1977
    %v2300 = vadd.f32 %v2299, %v1978
    %2301 = vadd.xlane.f32.xlu0 %v2300
    %v2302 = vpop.xlane.xlu0 %2301
    %v2303 = vadd.f32 %v1979, %v1980
    %v2304 = vadd.f32 %v2303, %v1981
    %v2305 = vadd.f32 %v2304, %v1982
    %v2306 = vadd.f32 %v2305, %v1983
    %v2307 = vadd.f32 %v2306, %v1984
    %2308 = vadd.xlane.f32.xlu0 %v2307
    %v2309 = vpop.xlane.xlu0 %2308
    %v2310 = vadd.f32 %v1985, %v1986
    %v2311 = vadd.f32 %v2310, %v1987
    %v2312 = vadd.f32 %v2311, %v1988
    %v2313 = vadd.f32 %v2312, %v1989
    %v2314 = vadd.f32 %v2313, %v1990
    %2315 = vadd.xlane.f32.xlu0 %v2314
    %v2316 = vpop.xlane.xlu0 %2315
    %v2317 = vadd.f32 %v1991, %v1992
    %v2318 = vadd.f32 %v2317, %v1993
    %v2319 = vadd.f32 %v2318, %v1994
    %v2320 = vadd.f32 %v2319, %v1995
    %v2321 = vadd.f32 %v2320, %v1996
    %2322 = vadd.xlane.f32.xlu0 %v2321
    %v2323 = vpop.xlane.xlu0 %2322
    %v2324 = vadd.f32 %v1997, %v1998
    %v2325 = vadd.f32 %v2324, %v1999
    %v2326 = vadd.f32 %v2325, %v2000
    %v2327 = vadd.f32 %v2326, %v2001
    %v2328 = vadd.f32 %v2327, %v2002
    %2329 = vadd.xlane.f32.xlu0 %v2328
    %v2330 = vpop.xlane.xlu0 %2329
    %v2331 = vadd.f32 %v2003, %v2004
    %v2332 = vadd.f32 %v2331, %v2005
    %v2333 = vadd.f32 %v2332, %v2006
    %v2334 = vadd.f32 %v2333, %v2007
    %v2335 = vadd.f32 %v2334, %v2008
    %2336 = vadd.xlane.f32.xlu0 %v2335
    %v2337 = vpop.xlane.xlu0 %2336
    %v2338 = vadd.f32 %v2009, %v2010
    %v2339 = vadd.f32 %v2338, %v2011
    %v2340 = vadd.f32 %v2339, %v2012
    %v2341 = vadd.f32 %v2340, %v2013
    %v2342 = vadd.f32 %v2341, %v2014
    %2343 = vadd.xlane.f32.xlu0 %v2342
    %v2344 = vpop.xlane.xlu0 %2343
    %v2345 = vadd.f32 %v2015, %v2016
    %v2346 = vadd.f32 %v2345, %v2017
    %v2347 = vadd.f32 %v2346, %v2018
    %v2348 = vadd.f32 %v2347, %v2019
    %v2349 = vadd.f32 %v2348, %v2020
    %2350 = vadd.xlane.f32.xlu0 %v2349
    %v2351 = vpop.xlane.xlu0 %2350
    %v2352 = vadd.f32 %v2021, %v2022
    %v2353 = vadd.f32 %v2352, %v2023
    %v2354 = vadd.f32 %v2353, %v2024
    %v2355 = vadd.f32 %v2354, %v2025
    %v2356 = vadd.f32 %v2355, %v2026
    %2357 = vadd.xlane.f32.xlu0 %v2356
    %v2358 = vpop.xlane.xlu0 %2357
    %v2359 = vadd.f32 %v2027, %v2028
    %v2360 = vadd.f32 %v2359, %v2029
    %v2361 = vadd.f32 %v2360, %v2030
    %v2362 = vadd.f32 %v2361, %v2031
    %v2363 = vadd.f32 %v2362, %v2032
    %2364 = vadd.xlane.f32.xlu0 %v2363
    %v2365 = vpop.xlane.xlu0 %2364
    %v2366 = vadd.f32 %v2033, %v2034
    %v2367 = vadd.f32 %v2366, %v2035
    %v2368 = vadd.f32 %v2367, %v2036
    %v2369 = vadd.f32 %v2368, %v2037
    %v2370 = vadd.f32 %v2369, %v2038
    %2371 = vadd.xlane.f32.xlu0 %v2370
    %v2372 = vpop.xlane.xlu0 %2371
    %v2373 = vadd.f32 %v2039, %v2040
    %v2374 = vadd.f32 %v2373, %v2041
    %v2375 = vadd.f32 %v2374, %v2042
    %v2376 = vadd.f32 %v2375, %v2043
    %v2377 = vadd.f32 %v2376, %v2044
    %2378 = vadd.xlane.f32.xlu0 %v2377
    %v2379 = vpop.xlane.xlu0 %2378
    %v2380 = vadd.f32 %v2045, %v2046
    %v2381 = vadd.f32 %v2380, %v2047
    %v2382 = vadd.f32 %v2381, %v2048
    %v2383 = vadd.f32 %v2382, %v2049
    %v2384 = vadd.f32 %v2383, %v2050
    %2385 = vadd.xlane.f32.xlu0 %v2384
    %v2386 = vpop.xlane.xlu0 %2385
    %v2387 = vrcp.pop 768.0
    %v2388 = vmul.f32 %v2057, %v2387
    %v2389 = vmul.f32 %v2064, %v2387
    %v2390 = vmul.f32 %v2071, %v2387
    %v2391 = vmul.f32 %v2078, %v2387
    %v2392 = vmul.f32 %v2085, %v2387
    %v2393 = vmul.f32 %v2092, %v2387
    %v2394 = vmul.f32 %v2099, %v2387
    %v2395 = vmul.f32 %v2106, %v2387
    %v2396 = vmul.f32 %v2113, %v2387
    %v2397 = vmul.f32 %v2120, %v2387
    %v2398 = vmul.f32 %v2127, %v2387
    %v2399 = vmul.f32 %v2134, %v2387
    %v2400 = vmul.f32 %v2141, %v2387
    %v2401 = vmul.f32 %v2148, %v2387
    %v2402 = vmul.f32 %v2155, %v2387
    %v2403 = vmul.f32 %v2162, %v2387
    %v2404 = vmul.f32 %v2169, %v2387
    %v2405 = vmul.f32 %v2176, %v2387
    %v2406 = vmul.f32 %v2183, %v2387
    %v2407 = vmul.f32 %v2190, %v2387
    %v2408 = vmul.f32 %v2197, %v2387
    %v2409 = vmul.f32 %v2204, %v2387
    %v2410 = vmul.f32 %v2211, %v2387
    %v2411 = vmul.f32 %v2218, %v2387
    %v2412 = vmul.f32 %v2225, %v2387
    %v2413 = vmul.f32 %v2232, %v2387
    %v2414 = vmul.f32 %v2239, %v2387
    %v2415 = vmul.f32 %v2246, %v2387
    %v2416 = vmul.f32 %v2253, %v2387
    %v2417 = vmul.f32 %v2260, %v2387
    %v2418 = vmul.f32 %v2267, %v2387
    %v2419 = vmul.f32 %v2274, %v2387
    %v2420 = vmul.f32 %v2281, %v2387
    %v2421 = vmul.f32 %v2288, %v2387
    %v2422 = vmul.f32 %v2295, %v2387
    %v2423 = vmul.f32 %v2302, %v2387
    %v2424 = vmul.f32 %v2309, %v2387
    %v2425 = vmul.f32 %v2316, %v2387
    %v2426 = vmul.f32 %v2323, %v2387
    %v2427 = vmul.f32 %v2330, %v2387
    %v2428 = vmul.f32 %v2337, %v2387
    %v2429 = vmul.f32 %v2344, %v2387
    %v2430 = vmul.f32 %v2351, %v2387
    %v2431 = vmul.f32 %v2358, %v2387
    %v2432 = vmul.f32 %v2365, %v2387
    %v2433 = vmul.f32 %v2372, %v2387
    %v2434 = vmul.f32 %v2379, %v2387
    %v2435 = vmul.f32 %v2386, %v2387
    %v2436 = vsub.f32 %v1763, %v2388
    %v2437 = vsub.f32 %v1764, %v2388
    %v2438 = vsub.f32 %v1765, %v2388
    %v2439 = vsub.f32 %v1766, %v2388
    %v2440 = vsub.f32 %v1767, %v2388
    %v2441 = vsub.f32 %v1768, %v2388
    %v2442 = vsub.f32 %v1769, %v2389
    %v2443 = vsub.f32 %v1770, %v2389
    %v2444 = vsub.f32 %v1771, %v2389
    %v2445 = vsub.f32 %v1772, %v2389
    %v2446 = vsub.f32 %v1773, %v2389
    %v2447 = vsub.f32 %v1774, %v2389
    %v2448 = vsub.f32 %v1775, %v2390
    %v2449 = vsub.f32 %v1776, %v2390
    %v2450 = vsub.f32 %v1777, %v2390
    %v2451 = vsub.f32 %v1778, %v2390
    %v2452 = vsub.f32 %v1779, %v2390
    %v2453 = vsub.f32 %v1780, %v2390
    %v2454 = vsub.f32 %v1781, %v2391
    %v2455 = vsub.f32 %v1782, %v2391
    %v2456 = vsub.f32 %v1783, %v2391
    %v2457 = vsub.f32 %v1784, %v2391
    %v2458 = vsub.f32 %v1785, %v2391
    %v2459 = vsub.f32 %v1786, %v2391
    %v2460 = vsub.f32 %v1787, %v2392
    %v2461 = vsub.f32 %v1788, %v2392
    %v2462 = vsub.f32 %v1789, %v2392
    %v2463 = vsub.f32 %v1790, %v2392
    %v2464 = vsub.f32 %v1791, %v2392
    %v2465 = vsub.f32 %v1792, %v2392
    %v2466 = vsub.f32 %v1793, %v2393
    %v2467 = vsub.f32 %v1794, %v2393
    %v2468 = vsub.f32 %v1795, %v2393
    %v2469 = vsub.f32 %v1796, %v2393
    %v2470 = vsub.f32 %v1797, %v2393
    %v2471 = vsub.f32 %v1798, %v2393
    %v2472 = vsub.f32 %v1799, %v2394
    %v2473 = vsub.f32 %v1800, %v2394
    %v2474 = vsub.f32 %v1801, %v2394
    %v2475 = vsub.f32 %v1802, %v2394
    %v2476 = vsub.f32 %v1803, %v2394
    %v2477 = vsub.f32 %v1804, %v2394
    %v2478 = vsub.f32 %v1805, %v2395
    %v2479 = vsub.f32 %v1806, %v2395
    %v2480 = vsub.f32 %v1807, %v2395
    %v2481 = vsub.f32 %v1808, %v2395
    %v2482 = vsub.f32 %v1809, %v2395
    %v2483 = vsub.f32 %v1810, %v2395
    %v2484 = vsub.f32 %v1811, %v2396
    %v2485 = vsub.f32 %v1812, %v2396
    %v2486 = vsub.f32 %v1813, %v2396
    %v2487 = vsub.f32 %v1814, %v2396
    %v2488 = vsub.f32 %v1815, %v2396
    %v2489 = vsub.f32 %v1816, %v2396
    %v2490 = vsub.f32 %v1817, %v2397
    %v2491 = vsub.f32 %v1818, %v2397
    %v2492 = vsub.f32 %v1819, %v2397
    %v2493 = vsub.f32 %v1820, %v2397
    %v2494 = vsub.f32 %v1821, %v2397
    %v2495 = vsub.f32 %v1822, %v2397
    %v2496 = vsub.f32 %v1823, %v2398
    %v2497 = vsub.f32 %v1824, %v2398
    %v2498 = vsub.f32 %v1825, %v2398
    %v2499 = vsub.f32 %v1826, %v2398
    %v2500 = vsub.f32 %v1827, %v2398
    %v2501 = vsub.f32 %v1828, %v2398
    %v2502 = vsub.f32 %v1829, %v2399
    %v2503 = vsub.f32 %v1830, %v2399
    %v2504 = vsub.f32 %v1831, %v2399
    %v2505 = vsub.f32 %v1832, %v2399
    %v2506 = vsub.f32 %v1833, %v2399
    %v2507 = vsub.f32 %v1834, %v2399
    %v2508 = vsub.f32 %v1835, %v2400
    %v2509 = vsub.f32 %v1836, %v2400
    %v2510 = vsub.f32 %v1837, %v2400
    %v2511 = vsub.f32 %v1838, %v2400
    %v2512 = vsub.f32 %v1839, %v2400
    %v2513 = vsub.f32 %v1840, %v2400
    %v2514 = vsub.f32 %v1841, %v2401
    %v2515 = vsub.f32 %v1842, %v2401
    %v2516 = vsub.f32 %v1843, %v2401
    %v2517 = vsub.f32 %v1844, %v2401
    %v2518 = vsub.f32 %v1845, %v2401
    %v2519 = vsub.f32 %v1846, %v2401
    %v2520 = vsub.f32 %v1847, %v2402
    %v2521 = vsub.f32 %v1848, %v2402
    %v2522 = vsub.f32 %v1849, %v2402
    %v2523 = vsub.f32 %v1850, %v2402
    %v2524 = vsub.f32 %v1851, %v2402
    %v2525 = vsub.f32 %v1852, %v2402
    %v2526 = vsub.f32 %v1853, %v2403
    %v2527 = vsub.f32 %v1854, %v2403
    %v2528 = vsub.f32 %v1855, %v2403
    %v2529 = vsub.f32 %v1856, %v2403
    %v2530 = vsub.f32 %v1857, %v2403
    %v2531 = vsub.f32 %v1858, %v2403
    %v2532 = vsub.f32 %v1859, %v2404
    %v2533 = vsub.f32 %v1860, %v2404
    %v2534 = vsub.f32 %v1861, %v2404
    %v2535 = vsub.f32 %v1862, %v2404
    %v2536 = vsub.f32 %v1863, %v2404
    %v2537 = vsub.f32 %v1864, %v2404
    %v2538 = vsub.f32 %v1865, %v2405
    %v2539 = vsub.f32 %v1866, %v2405
    %v2540 = vsub.f32 %v1867, %v2405
    %v2541 = vsub.f32 %v1868, %v2405
    %v2542 = vsub.f32 %v1869, %v2405
    %v2543 = vsub.f32 %v1870, %v2405
    %v2544 = vsub.f32 %v1871, %v2406
    %v2545 = vsub.f32 %v1872, %v2406
    %v2546 = vsub.f32 %v1873, %v2406
    %v2547 = vsub.f32 %v1874, %v2406
    %v2548 = vsub.f32 %v1875, %v2406
    %v2549 = vsub.f32 %v1876, %v2406
    %v2550 = vsub.f32 %v1877, %v2407
    %v2551 = vsub.f32 %v1878, %v2407
    %v2552 = vsub.f32 %v1879, %v2407
    %v2553 = vsub.f32 %v1880, %v2407
    %v2554 = vsub.f32 %v1881, %v2407
    %v2555 = vsub.f32 %v1882, %v2407
    %v2556 = vsub.f32 %v1883, %v2408
    %v2557 = vsub.f32 %v1884, %v2408
    %v2558 = vsub.f32 %v1885, %v2408
    %v2559 = vsub.f32 %v1886, %v2408
    %v2560 = vsub.f32 %v1887, %v2408
    %v2561 = vsub.f32 %v1888, %v2408
    %v2562 = vsub.f32 %v1889, %v2409
    %v2563 = vsub.f32 %v1890, %v2409
    %v2564 = vsub.f32 %v1891, %v2409
    %v2565 = vsub.f32 %v1892, %v2409
    %v2566 = vsub.f32 %v1893, %v2409
    %v2567 = vsub.f32 %v1894, %v2409
    %v2568 = vsub.f32 %v1895, %v2410
    %v2569 = vsub.f32 %v1896, %v2410
    %v2570 = vsub.f32 %v1897, %v2410
    %v2571 = vsub.f32 %v1898, %v2410
    %v2572 = vsub.f32 %v1899, %v2410
    %v2573 = vsub.f32 %v1900, %v2410
    %v2574 = vsub.f32 %v1901, %v2411
    %v2575 = vsub.f32 %v1902, %v2411
    %v2576 = vsub.f32 %v1903, %v2411
    %v2577 = vsub.f32 %v1904, %v2411
    %v2578 = vsub.f32 %v1905, %v2411
    %v2579 = vsub.f32 %v1906, %v2411
    %v2580 = vsub.f32 %v1907, %v2412
    %v2581 = vsub.f32 %v1908, %v2412
    %v2582 = vsub.f32 %v1909, %v2412
    %v2583 = vsub.f32 %v1910, %v2412
    %v2584 = vsub.f32 %v1911, %v2412
    %v2585 = vsub.f32 %v1912, %v2412
    %v2586 = vsub.f32 %v1913, %v2413
    %v2587 = vsub.f32 %v1914, %v2413
    %v2588 = vsub.f32 %v1915, %v2413
    %v2589 = vsub.f32 %v1916, %v2413
    %v2590 = vsub.f32 %v1917, %v2413
    %v2591 = vsub.f32 %v1918, %v2413
    %v2592 = vsub.f32 %v1919, %v2414
    %v2593 = vsub.f32 %v1920, %v2414
    %v2594 = vsub.f32 %v1921, %v2414
    %v2595 = vsub.f32 %v1922, %v2414
    %v2596 = vsub.f32 %v1923, %v2414
    %v2597 = vsub.f32 %v1924, %v2414
    %v2598 = vsub.f32 %v1925, %v2415
    %v2599 = vsub.f32 %v1926, %v2415
    %v2600 = vsub.f32 %v1927, %v2415
    %v2601 = vsub.f32 %v1928, %v2415
    %v2602 = vsub.f32 %v1929, %v2415
    %v2603 = vsub.f32 %v1930, %v2415
    %v2604 = vsub.f32 %v1931, %v2416
    %v2605 = vsub.f32 %v1932, %v2416
    %v2606 = vsub.f32 %v1933, %v2416
    %v2607 = vsub.f32 %v1934, %v2416
    %v2608 = vsub.f32 %v1935, %v2416
    %v2609 = vsub.f32 %v1936, %v2416
    %v2610 = vsub.f32 %v1937, %v2417
    %v2611 = vsub.f32 %v1938, %v2417
    %v2612 = vsub.f32 %v1939, %v2417
    %v2613 = vsub.f32 %v1940, %v2417
    %v2614 = vsub.f32 %v1941, %v2417
    %v2615 = vsub.f32 %v1942, %v2417
    %v2616 = vsub.f32 %v1943, %v2418
    %v2617 = vsub.f32 %v1944, %v2418
    %v2618 = vsub.f32 %v1945, %v2418
    %v2619 = vsub.f32 %v1946, %v2418
    %v2620 = vsub.f32 %v1947, %v2418
    %v2621 = vsub.f32 %v1948, %v2418
    %v2622 = vsub.f32 %v1949, %v2419
    %v2623 = vsub.f32 %v1950, %v2419
    %v2624 = vsub.f32 %v1951, %v2419
    %v2625 = vsub.f32 %v1952, %v2419
    %v2626 = vsub.f32 %v1953, %v2419
    %v2627 = vsub.f32 %v1954, %v2419
    %v2628 = vsub.f32 %v1955, %v2420
    %v2629 = vsub.f32 %v1956, %v2420
    %v2630 = vsub.f32 %v1957, %v2420
    %v2631 = vsub.f32 %v1958, %v2420
    %v2632 = vsub.f32 %v1959, %v2420
    %v2633 = vsub.f32 %v1960, %v2420
    %v2634 = vsub.f32 %v1961, %v2421
    %v2635 = vsub.f32 %v1962, %v2421
    %v2636 = vsub.f32 %v1963, %v2421
    %v2637 = vsub.f32 %v1964, %v2421
    %v2638 = vsub.f32 %v1965, %v2421
    %v2639 = vsub.f32 %v1966, %v2421
    %v2640 = vsub.f32 %v1967, %v2422
    %v2641 = vsub.f32 %v1968, %v2422
    %v2642 = vsub.f32 %v1969, %v2422
    %v2643 = vsub.f32 %v1970, %v2422
    %v2644 = vsub.f32 %v1971, %v2422
    %v2645 = vsub.f32 %v1972, %v2422
    %v2646 = vsub.f32 %v1973, %v2423
    %v2647 = vsub.f32 %v1974, %v2423
    %v2648 = vsub.f32 %v1975, %v2423
    %v2649 = vsub.f32 %v1976, %v2423
    %v2650 = vsub.f32 %v1977, %v2423
    %v2651 = vsub.f32 %v1978, %v2423
    %v2652 = vsub.f32 %v1979, %v2424
    %v2653 = vsub.f32 %v1980, %v2424
    %v2654 = vsub.f32 %v1981, %v2424
    %v2655 = vsub.f32 %v1982, %v2424
    %v2656 = vsub.f32 %v1983, %v2424
    %v2657 = vsub.f32 %v1984, %v2424
    %v2658 = vsub.f32 %v1985, %v2425
    %v2659 = vsub.f32 %v1986, %v2425
    %v2660 = vsub.f32 %v1987, %v2425
    %v2661 = vsub.f32 %v1988, %v2425
    %v2662 = vsub.f32 %v1989, %v2425
    %v2663 = vsub.f32 %v1990, %v2425
    %v2664 = vsub.f32 %v1991, %v2426
    %v2665 = vsub.f32 %v1992, %v2426
    %v2666 = vsub.f32 %v1993, %v2426
    %v2667 = vsub.f32 %v1994, %v2426
    %v2668 = vsub.f32 %v1995, %v2426
    %v2669 = vsub.f32 %v1996, %v2426
    %v2670 = vsub.f32 %v1997, %v2427
    %v2671 = vsub.f32 %v1998, %v2427
    %v2672 = vsub.f32 %v1999, %v2427
    %v2673 = vsub.f32 %v2000, %v2427
    %v2674 = vsub.f32 %v2001, %v2427
    %v2675 = vsub.f32 %v2002, %v2427
    %v2676 = vsub.f32 %v2003, %v2428
    %v2677 = vsub.f32 %v2004, %v2428
    %v2678 = vsub.f32 %v2005, %v2428
    %v2679 = vsub.f32 %v2006, %v2428
    %v2680 = vsub.f32 %v2007, %v2428
    %v2681 = vsub.f32 %v2008, %v2428
    %v2682 = vsub.f32 %v2009, %v2429
    %v2683 = vsub.f32 %v2010, %v2429
    %v2684 = vsub.f32 %v2011, %v2429
    %v2685 = vsub.f32 %v2012, %v2429
    %v2686 = vsub.f32 %v2013, %v2429
    %v2687 = vsub.f32 %v2014, %v2429
    %v2688 = vsub.f32 %v2015, %v2430
    %v2689 = vsub.f32 %v2016, %v2430
    %v2690 = vsub.f32 %v2017, %v2430
    %v2691 = vsub.f32 %v2018, %v2430
    %v2692 = vsub.f32 %v2019, %v2430
    %v2693 = vsub.f32 %v2020, %v2430
    %v2694 = vsub.f32 %v2021, %v2431
    %v2695 = vsub.f32 %v2022, %v2431
    %v2696 = vsub.f32 %v2023, %v2431
    %v2697 = vsub.f32 %v2024, %v2431
    %v2698 = vsub.f32 %v2025, %v2431
    %v2699 = vsub.f32 %v2026, %v2431
    %v2700 = vsub.f32 %v2027, %v2432
    %v2701 = vsub.f32 %v2028, %v2432
    %v2702 = vsub.f32 %v2029, %v2432
    %v2703 = vsub.f32 %v2030, %v2432
    %v2704 = vsub.f32 %v2031, %v2432
    %v2705 = vsub.f32 %v2032, %v2432
    %v2706 = vsub.f32 %v2033, %v2433
    %v2707 = vsub.f32 %v2034, %v2433
    %v2708 = vsub.f32 %v2035, %v2433
    %v2709 = vsub.f32 %v2036, %v2433
    %v2710 = vsub.f32 %v2037, %v2433
    %v2711 = vsub.f32 %v2038, %v2433
    %v2712 = vsub.f32 %v2039, %v2434
    %v2713 = vsub.f32 %v2040, %v2434
    %v2714 = vsub.f32 %v2041, %v2434
    %v2715 = vsub.f32 %v2042, %v2434
    %v2716 = vsub.f32 %v2043, %v2434
    %v2717 = vsub.f32 %v2044, %v2434
    %v2718 = vsub.f32 %v2045, %v2435
    %v2719 = vsub.f32 %v2046, %v2435
    %v2720 = vsub.f32 %v2047, %v2435
    %v2721 = vsub.f32 %v2048, %v2435
    %v2722 = vsub.f32 %v2049, %v2435
    %v2723 = vsub.f32 %v2050, %v2435
    %v2724 = vmul.f32 %v2436, %v2436
    %v2725 = vmul.f32 %v2437, %v2437
    %v2726 = vmul.f32 %v2438, %v2438
    %v2727 = vmul.f32 %v2439, %v2439
    %v2728 = vmul.f32 %v2440, %v2440
    %v2729 = vmul.f32 %v2441, %v2441
    %v2730 = vmul.f32 %v2442, %v2442
    %v2731 = vmul.f32 %v2443, %v2443
    %v2732 = vmul.f32 %v2444, %v2444
    %v2733 = vmul.f32 %v2445, %v2445
    %v2734 = vmul.f32 %v2446, %v2446
    %v2735 = vmul.f32 %v2447, %v2447
    %v2736 = vmul.f32 %v2448, %v2448
    %v2737 = vmul.f32 %v2449, %v2449
    %v2738 = vmul.f32 %v2450, %v2450
    %v2739 = vmul.f32 %v2451, %v2451
    %v2740 = vmul.f32 %v2452, %v2452
    %v2741 = vmul.f32 %v2453, %v2453
    %v2742 = vmul.f32 %v2454, %v2454
    %v2743 = vmul.f32 %v2455, %v2455
    %v2744 = vmul.f32 %v2456, %v2456
    %v2745 = vmul.f32 %v2457, %v2457
    %v2746 = vmul.f32 %v2458, %v2458
    %v2747 = vmul.f32 %v2459, %v2459
    %v2748 = vmul.f32 %v2460, %v2460
    %v2749 = vmul.f32 %v2461, %v2461
    %v2750 = vmul.f32 %v2462, %v2462
    %v2751 = vmul.f32 %v2463, %v2463
    %v2752 = vmul.f32 %v2464, %v2464
    %v2753 = vmul.f32 %v2465, %v2465
    %v2754 = vmul.f32 %v2466, %v2466
    %v2755 = vmul.f32 %v2467, %v2467
    %v2756 = vmul.f32 %v2468, %v2468
    %v2757 = vmul.f32 %v2469, %v2469
    %v2758 = vmul.f32 %v2470, %v2470
    %v2759 = vmul.f32 %v2471, %v2471
    %v2760 = vmul.f32 %v2472, %v2472
    %v2761 = vmul.f32 %v2473, %v2473
    %v2762 = vmul.f32 %v2474, %v2474
    %v2763 = vmul.f32 %v2475, %v2475
    %v2764 = vmul.f32 %v2476, %v2476
    %v2765 = vmul.f32 %v2477, %v2477
    %v2766 = vmul.f32 %v2478, %v2478
    %v2767 = vmul.f32 %v2479, %v2479
    %v2768 = vmul.f32 %v2480, %v2480
    %v2769 = vmul.f32 %v2481, %v2481
    %v2770 = vmul.f32 %v2482, %v2482
    %v2771 = vmul.f32 %v2483, %v2483
    %v2772 = vmul.f32 %v2484, %v2484
    %v2773 = vmul.f32 %v2485, %v2485
    %v2774 = vmul.f32 %v2486, %v2486
    %v2775 = vmul.f32 %v2487, %v2487
    %v2776 = vmul.f32 %v2488, %v2488
    %v2777 = vmul.f32 %v2489, %v2489
    %v2778 = vmul.f32 %v2490, %v2490
    %v2779 = vmul.f32 %v2491, %v2491
    %v2780 = vmul.f32 %v2492, %v2492
    %v2781 = vmul.f32 %v2493, %v2493
    %v2782 = vmul.f32 %v2494, %v2494
    %v2783 = vmul.f32 %v2495, %v2495
    %v2784 = vmul.f32 %v2496, %v2496
    %v2785 = vmul.f32 %v2497, %v2497
    %v2786 = vmul.f32 %v2498, %v2498
    %v2787 = vmul.f32 %v2499, %v2499
    %v2788 = vmul.f32 %v2500, %v2500
    %v2789 = vmul.f32 %v2501, %v2501
    %v2790 = vmul.f32 %v2502, %v2502
    %v2791 = vmul.f32 %v2503, %v2503
    %v2792 = vmul.f32 %v2504, %v2504
    %v2793 = vmul.f32 %v2505, %v2505
    %v2794 = vmul.f32 %v2506, %v2506
    %v2795 = vmul.f32 %v2507, %v2507
    %v2796 = vmul.f32 %v2508, %v2508
    %v2797 = vmul.f32 %v2509, %v2509
    %v2798 = vmul.f32 %v2510, %v2510
    %v2799 = vmul.f32 %v2511, %v2511
    %v2800 = vmul.f32 %v2512, %v2512
    %v2801 = vmul.f32 %v2513, %v2513
    %v2802 = vmul.f32 %v2514, %v2514
    %v2803 = vmul.f32 %v2515, %v2515
    %v2804 = vmul.f32 %v2516, %v2516
    %v2805 = vmul.f32 %v2517, %v2517
    %v2806 = vmul.f32 %v2518, %v2518
    %v2807 = vmul.f32 %v2519, %v2519
    %v2808 = vmul.f32 %v2520, %v2520
    %v2809 = vmul.f32 %v2521, %v2521
    %v2810 = vmul.f32 %v2522, %v2522
    %v2811 = vmul.f32 %v2523, %v2523
    %v2812 = vmul.f32 %v2524, %v2524
    %v2813 = vmul.f32 %v2525, %v2525
    %v2814 = vmul.f32 %v2526, %v2526
    %v2815 = vmul.f32 %v2527, %v2527
    %v2816 = vmul.f32 %v2528, %v2528
    %v2817 = vmul.f32 %v2529, %v2529
    %v2818 = vmul.f32 %v2530, %v2530
    %v2819 = vmul.f32 %v2531, %v2531
    %v2820 = vmul.f32 %v2532, %v2532
    %v2821 = vmul.f32 %v2533, %v2533
    %v2822 = vmul.f32 %v2534, %v2534
    %v2823 = vmul.f32 %v2535, %v2535
    %v2824 = vmul.f32 %v2536, %v2536
    %v2825 = vmul.f32 %v2537, %v2537
    %v2826 = vmul.f32 %v2538, %v2538
    %v2827 = vmul.f32 %v2539, %v2539
    %v2828 = vmul.f32 %v2540, %v2540
    %v2829 = vmul.f32 %v2541, %v2541
    %v2830 = vmul.f32 %v2542, %v2542
    %v2831 = vmul.f32 %v2543, %v2543
    %v2832 = vmul.f32 %v2544, %v2544
    %v2833 = vmul.f32 %v2545, %v2545
    %v2834 = vmul.f32 %v2546, %v2546
    %v2835 = vmul.f32 %v2547, %v2547
    %v2836 = vmul.f32 %v2548, %v2548
    %v2837 = vmul.f32 %v2549, %v2549
    %v2838 = vmul.f32 %v2550, %v2550
    %v2839 = vmul.f32 %v2551, %v2551
    %v2840 = vmul.f32 %v2552, %v2552
    %v2841 = vmul.f32 %v2553, %v2553
    %v2842 = vmul.f32 %v2554, %v2554
    %v2843 = vmul.f32 %v2555, %v2555
    %v2844 = vmul.f32 %v2556, %v2556
    %v2845 = vmul.f32 %v2557, %v2557
    %v2846 = vmul.f32 %v2558, %v2558
    %v2847 = vmul.f32 %v2559, %v2559
    %v2848 = vmul.f32 %v2560, %v2560
    %v2849 = vmul.f32 %v2561, %v2561
    %v2850 = vmul.f32 %v2562, %v2562
    %v2851 = vmul.f32 %v2563, %v2563
    %v2852 = vmul.f32 %v2564, %v2564
    %v2853 = vmul.f32 %v2565, %v2565
    %v2854 = vmul.f32 %v2566, %v2566
    %v2855 = vmul.f32 %v2567, %v2567
    %v2856 = vmul.f32 %v2568, %v2568
    %v2857 = vmul.f32 %v2569, %v2569
    %v2858 = vmul.f32 %v2570, %v2570
    %v2859 = vmul.f32 %v2571, %v2571
    %v2860 = vmul.f32 %v2572, %v2572
    %v2861 = vmul.f32 %v2573, %v2573
    %v2862 = vmul.f32 %v2574, %v2574
    %v2863 = vmul.f32 %v2575, %v2575
    %v2864 = vmul.f32 %v2576, %v2576
    %v2865 = vmul.f32 %v2577, %v2577
    %v2866 = vmul.f32 %v2578, %v2578
    %v2867 = vmul.f32 %v2579, %v2579
    %v2868 = vmul.f32 %v2580, %v2580
    %v2869 = vmul.f32 %v2581, %v2581
    %v2870 = vmul.f32 %v2582, %v2582
    %v2871 = vmul.f32 %v2583, %v2583
    %v2872 = vmul.f32 %v2584, %v2584
    %v2873 = vmul.f32 %v2585, %v2585
    %v2874 = vmul.f32 %v2586, %v2586
    %v2875 = vmul.f32 %v2587, %v2587
    %v2876 = vmul.f32 %v2588, %v2588
    %v2877 = vmul.f32 %v2589, %v2589
    %v2878 = vmul.f32 %v2590, %v2590
    %v2879 = vmul.f32 %v2591, %v2591
    %v2880 = vmul.f32 %v2592, %v2592
    %v2881 = vmul.f32 %v2593, %v2593
    %v2882 = vmul.f32 %v2594, %v2594
    %v2883 = vmul.f32 %v2595, %v2595
    %v2884 = vmul.f32 %v2596, %v2596
    %v2885 = vmul.f32 %v2597, %v2597
    %v2886 = vmul.f32 %v2598, %v2598
    %v2887 = vmul.f32 %v2599, %v2599
    %v2888 = vmul.f32 %v2600, %v2600
    %v2889 = vmul.f32 %v2601, %v2601
    %v2890 = vmul.f32 %v2602, %v2602
    %v2891 = vmul.f32 %v2603, %v2603
    %v2892 = vmul.f32 %v2604, %v2604
    %v2893 = vmul.f32 %v2605, %v2605
    %v2894 = vmul.f32 %v2606, %v2606
    %v2895 = vmul.f32 %v2607, %v2607
    %v2896 = vmul.f32 %v2608, %v2608
    %v2897 = vmul.f32 %v2609, %v2609
    %v2898 = vmul.f32 %v2610, %v2610
    %v2899 = vmul.f32 %v2611, %v2611
    %v2900 = vmul.f32 %v2612, %v2612
    %v2901 = vmul.f32 %v2613, %v2613
    %v2902 = vmul.f32 %v2614, %v2614
    %v2903 = vmul.f32 %v2615, %v2615
    %v2904 = vmul.f32 %v2616, %v2616
    %v2905 = vmul.f32 %v2617, %v2617
    %v2906 = vmul.f32 %v2618, %v2618
    %v2907 = vmul.f32 %v2619, %v2619
    %v2908 = vmul.f32 %v2620, %v2620
    %v2909 = vmul.f32 %v2621, %v2621
    %v2910 = vmul.f32 %v2622, %v2622
    %v2911 = vmul.f32 %v2623, %v2623
    %v2912 = vmul.f32 %v2624, %v2624
    %v2913 = vmul.f32 %v2625, %v2625
    %v2914 = vmul.f32 %v2626, %v2626
    %v2915 = vmul.f32 %v2627, %v2627
    %v2916 = vmul.f32 %v2628, %v2628
    %v2917 = vmul.f32 %v2629, %v2629
    %v2918 = vmul.f32 %v2630, %v2630
    %v2919 = vmul.f32 %v2631, %v2631
    %v2920 = vmul.f32 %v2632, %v2632
    %v2921 = vmul.f32 %v2633, %v2633
    %v2922 = vmul.f32 %v2634, %v2634
    %v2923 = vmul.f32 %v2635, %v2635
    %v2924 = vmul.f32 %v2636, %v2636
    %v2925 = vmul.f32 %v2637, %v2637
    %v2926 = vmul.f32 %v2638, %v2638
    %v2927 = vmul.f32 %v2639, %v2639
    %v2928 = vmul.f32 %v2640, %v2640
    %v2929 = vmul.f32 %v2641, %v2641
    %v2930 = vmul.f32 %v2642, %v2642
    %v2931 = vmul.f32 %v2643, %v2643
    %v2932 = vmul.f32 %v2644, %v2644
    %v2933 = vmul.f32 %v2645, %v2645
    %v2934 = vmul.f32 %v2646, %v2646
    %v2935 = vmul.f32 %v2647, %v2647
    %v2936 = vmul.f32 %v2648, %v2648
    %v2937 = vmul.f32 %v2649, %v2649
    %v2938 = vmul.f32 %v2650, %v2650
    %v2939 = vmul.f32 %v2651, %v2651
    %v2940 = vmul.f32 %v2652, %v2652
    %v2941 = vmul.f32 %v2653, %v2653
    %v2942 = vmul.f32 %v2654, %v2654
    %v2943 = vmul.f32 %v2655, %v2655
    %v2944 = vmul.f32 %v2656, %v2656
    %v2945 = vmul.f32 %v2657, %v2657
    %v2946 = vmul.f32 %v2658, %v2658
    %v2947 = vmul.f32 %v2659, %v2659
    %v2948 = vmul.f32 %v2660, %v2660
    %v2949 = vmul.f32 %v2661, %v2661
    %v2950 = vmul.f32 %v2662, %v2662
    %v2951 = vmul.f32 %v2663, %v2663
    %v2952 = vmul.f32 %v2664, %v2664
    %v2953 = vmul.f32 %v2665, %v2665
    %v2954 = vmul.f32 %v2666, %v2666
    %v2955 = vmul.f32 %v2667, %v2667
    %v2956 = vmul.f32 %v2668, %v2668
    %v2957 = vmul.f32 %v2669, %v2669
    %v2958 = vmul.f32 %v2670, %v2670
    %v2959 = vmul.f32 %v2671, %v2671
    %v2960 = vmul.f32 %v2672, %v2672
    %v2961 = vmul.f32 %v2673, %v2673
    %v2962 = vmul.f32 %v2674, %v2674
    %v2963 = vmul.f32 %v2675, %v2675
    %v2964 = vmul.f32 %v2676, %v2676
    %v2965 = vmul.f32 %v2677, %v2677
    %v2966 = vmul.f32 %v2678, %v2678
    %v2967 = vmul.f32 %v2679, %v2679
    %v2968 = vmul.f32 %v2680, %v2680
    %v2969 = vmul.f32 %v2681, %v2681
    %v2970 = vmul.f32 %v2682, %v2682
    %v2971 = vmul.f32 %v2683, %v2683
    %v2972 = vmul.f32 %v2684, %v2684
    %v2973 = vmul.f32 %v2685, %v2685
    %v2974 = vmul.f32 %v2686, %v2686
    %v2975 = vmul.f32 %v2687, %v2687
    %v2976 = vmul.f32 %v2688, %v2688
    %v2977 = vmul.f32 %v2689, %v2689
    %v2978 = vmul.f32 %v2690, %v2690
    %v2979 = vmul.f32 %v2691, %v2691
    %v2980 = vmul.f32 %v2692, %v2692
    %v2981 = vmul.f32 %v2693, %v2693
    %v2982 = vmul.f32 %v2694, %v2694
    %v2983 = vmul.f32 %v2695, %v2695
    %v2984 = vmul.f32 %v2696, %v2696
    %v2985 = vmul.f32 %v2697, %v2697
    %v2986 = vmul.f32 %v2698, %v2698
    %v2987 = vmul.f32 %v2699, %v2699
    %v2988 = vmul.f32 %v2700, %v2700
    %v2989 = vmul.f32 %v2701, %v2701
    %v2990 = vmul.f32 %v2702, %v2702
    %v2991 = vmul.f32 %v2703, %v2703
    %v2992 = vmul.f32 %v2704, %v2704
    %v2993 = vmul.f32 %v2705, %v2705
    %v2994 = vmul.f32 %v2706, %v2706
    %v2995 = vmul.f32 %v2707, %v2707
    %v2996 = vmul.f32 %v2708, %v2708
    %v2997 = vmul.f32 %v2709, %v2709
    %v2998 = vmul.f32 %v2710, %v2710
    %v2999 = vmul.f32 %v2711, %v2711
    %v3000 = vmul.f32 %v2712, %v2712
    %v3001 = vmul.f32 %v2713, %v2713
    %v3002 = vmul.f32 %v2714, %v2714
    %v3003 = vmul.f32 %v2715, %v2715
    %v3004 = vmul.f32 %v2716, %v2716
    %v3005 = vmul.f32 %v2717, %v2717
    %v3006 = vmul.f32 %v2718, %v2718
    %v3007 = vmul.f32 %v2719, %v2719
    %v3008 = vmul.f32 %v2720, %v2720
    %v3009 = vmul.f32 %v2721, %v2721
    %v3010 = vmul.f32 %v2722, %v2722
    %v3011 = vmul.f32 %v2723, %v2723
    %v3012 = vadd.f32 %v2724, %v2725
    %v3013 = vadd.f32 %v3012, %v2726
    %v3014 = vadd.f32 %v3013, %v2727
    %v3015 = vadd.f32 %v3014, %v2728
    %v3016 = vadd.f32 %v3015, %v2729
    %3017 = vadd.xlane.f32.xlu0 %v3016
    %v3018 = vpop.xlane.xlu0 %3017
    %v3019 = vadd.f32 %v2730, %v2731
    %v3020 = vadd.f32 %v3019, %v2732
    %v3021 = vadd.f32 %v3020, %v2733
    %v3022 = vadd.f32 %v3021, %v2734
    %v3023 = vadd.f32 %v3022, %v2735
    %3024 = vadd.xlane.f32.xlu0 %v3023
    %v3025 = vpop.xlane.xlu0 %3024
    %v3026 = vadd.f32 %v2736, %v2737
    %v3027 = vadd.f32 %v3026, %v2738
    %v3028 = vadd.f32 %v3027, %v2739
    %v3029 = vadd.f32 %v3028, %v2740
    %v3030 = vadd.f32 %v3029, %v2741
    %3031 = vadd.xlane.f32.xlu0 %v3030
    %v3032 = vpop.xlane.xlu0 %3031
    %v3033 = vadd.f32 %v2742, %v2743
    %v3034 = vadd.f32 %v3033, %v2744
    %v3035 = vadd.f32 %v3034, %v2745
    %v3036 = vadd.f32 %v3035, %v2746
    %v3037 = vadd.f32 %v3036, %v2747
    %3038 = vadd.xlane.f32.xlu0 %v3037
    %v3039 = vpop.xlane.xlu0 %3038
    %v3040 = vadd.f32 %v2748, %v2749
    %v3041 = vadd.f32 %v3040, %v2750
    %v3042 = vadd.f32 %v3041, %v2751
    %v3043 = vadd.f32 %v3042, %v2752
    %v3044 = vadd.f32 %v3043, %v2753
    %3045 = vadd.xlane.f32.xlu0 %v3044
    %v3046 = vpop.xlane.xlu0 %3045
    %v3047 = vadd.f32 %v2754, %v2755
    %v3048 = vadd.f32 %v3047, %v2756
    %v3049 = vadd.f32 %v3048, %v2757
    %v3050 = vadd.f32 %v3049, %v2758
    %v3051 = vadd.f32 %v3050, %v2759
    %3052 = vadd.xlane.f32.xlu0 %v3051
    %v3053 = vpop.xlane.xlu0 %3052
    %v3054 = vadd.f32 %v2760, %v2761
    %v3055 = vadd.f32 %v3054, %v2762
    %v3056 = vadd.f32 %v3055, %v2763
    %v3057 = vadd.f32 %v3056, %v2764
    %v3058 = vadd.f32 %v3057, %v2765
    %3059 = vadd.xlane.f32.xlu0 %v3058
    %v3060 = vpop.xlane.xlu0 %3059
    %v3061 = vadd.f32 %v2766, %v2767
    %v3062 = vadd.f32 %v3061, %v2768
    %v3063 = vadd.f32 %v3062, %v2769
    %v3064 = vadd.f32 %v3063, %v2770
    %v3065 = vadd.f32 %v3064, %v2771
    %3066 = vadd.xlane.f32.xlu0 %v3065
    %v3067 = vpop.xlane.xlu0 %3066
    %v3068 = vadd.f32 %v2772, %v2773
    %v3069 = vadd.f32 %v3068, %v2774
    %v3070 = vadd.f32 %v3069, %v2775
    %v3071 = vadd.f32 %v3070, %v2776
    %v3072 = vadd.f32 %v3071, %v2777
    %3073 = vadd.xlane.f32.xlu0 %v3072
    %v3074 = vpop.xlane.xlu0 %3073
    %v3075 = vadd.f32 %v2778, %v2779
    %v3076 = vadd.f32 %v3075, %v2780
    %v3077 = vadd.f32 %v3076, %v2781
    %v3078 = vadd.f32 %v3077, %v2782
    %v3079 = vadd.f32 %v3078, %v2783
    %3080 = vadd.xlane.f32.xlu0 %v3079
    %v3081 = vpop.xlane.xlu0 %3080
    %v3082 = vadd.f32 %v2784, %v2785
    %v3083 = vadd.f32 %v3082, %v2786
    %v3084 = vadd.f32 %v3083, %v2787
    %v3085 = vadd.f32 %v3084, %v2788
    %v3086 = vadd.f32 %v3085, %v2789
    %3087 = vadd.xlane.f32.xlu0 %v3086
    %v3088 = vpop.xlane.xlu0 %3087
    %v3089 = vadd.f32 %v2790, %v2791
    %v3090 = vadd.f32 %v3089, %v2792
    %v3091 = vadd.f32 %v3090, %v2793
    %v3092 = vadd.f32 %v3091, %v2794
    %v3093 = vadd.f32 %v3092, %v2795
    %3094 = vadd.xlane.f32.xlu0 %v3093
    %v3095 = vpop.xlane.xlu0 %3094
    %v3096 = vadd.f32 %v2796, %v2797
    %v3097 = vadd.f32 %v3096, %v2798
    %v3098 = vadd.f32 %v3097, %v2799
    %v3099 = vadd.f32 %v3098, %v2800
    %v3100 = vadd.f32 %v3099, %v2801
    %3101 = vadd.xlane.f32.xlu0 %v3100
    %v3102 = vpop.xlane.xlu0 %3101
    %v3103 = vadd.f32 %v2802, %v2803
    %v3104 = vadd.f32 %v3103, %v2804
    %v3105 = vadd.f32 %v3104, %v2805
    %v3106 = vadd.f32 %v3105, %v2806
    %v3107 = vadd.f32 %v3106, %v2807
    %3108 = vadd.xlane.f32.xlu0 %v3107
    %v3109 = vpop.xlane.xlu0 %3108
    %v3110 = vadd.f32 %v2808, %v2809
    %v3111 = vadd.f32 %v3110, %v2810
    %v3112 = vadd.f32 %v3111, %v2811
    %v3113 = vadd.f32 %v3112, %v2812
    %v3114 = vadd.f32 %v3113, %v2813
    %3115 = vadd.xlane.f32.xlu0 %v3114
    %v3116 = vpop.xlane.xlu0 %3115
    %v3117 = vadd.f32 %v2814, %v2815
    %v3118 = vadd.f32 %v3117, %v2816
    %v3119 = vadd.f32 %v3118, %v2817
    %v3120 = vadd.f32 %v3119, %v2818
    %v3121 = vadd.f32 %v3120, %v2819
    %3122 = vadd.xlane.f32.xlu0 %v3121
    %v3123 = vpop.xlane.xlu0 %3122
    %v3124 = vadd.f32 %v2820, %v2821
    %v3125 = vadd.f32 %v3124, %v2822
    %v3126 = vadd.f32 %v3125, %v2823
    %v3127 = vadd.f32 %v3126, %v2824
    %v3128 = vadd.f32 %v3127, %v2825
    %3129 = vadd.xlane.f32.xlu0 %v3128
    %v3130 = vpop.xlane.xlu0 %3129
    %v3131 = vadd.f32 %v2826, %v2827
    %v3132 = vadd.f32 %v3131, %v2828
    %v3133 = vadd.f32 %v3132, %v2829
    %v3134 = vadd.f32 %v3133, %v2830
    %v3135 = vadd.f32 %v3134, %v2831
    %3136 = vadd.xlane.f32.xlu0 %v3135
    %v3137 = vpop.xlane.xlu0 %3136
    %v3138 = vadd.f32 %v2832, %v2833
    %v3139 = vadd.f32 %v3138, %v2834
    %v3140 = vadd.f32 %v3139, %v2835
    %v3141 = vadd.f32 %v3140, %v2836
    %v3142 = vadd.f32 %v3141, %v2837
    %3143 = vadd.xlane.f32.xlu0 %v3142
    %v3144 = vpop.xlane.xlu0 %3143
    %v3145 = vadd.f32 %v2838, %v2839
    %v3146 = vadd.f32 %v3145, %v2840
    %v3147 = vadd.f32 %v3146, %v2841
    %v3148 = vadd.f32 %v3147, %v2842
    %v3149 = vadd.f32 %v3148, %v2843
    %3150 = vadd.xlane.f32.xlu0 %v3149
    %v3151 = vpop.xlane.xlu0 %3150
    %v3152 = vadd.f32 %v2844, %v2845
    %v3153 = vadd.f32 %v3152, %v2846
    %v3154 = vadd.f32 %v3153, %v2847
    %v3155 = vadd.f32 %v3154, %v2848
    %v3156 = vadd.f32 %v3155, %v2849
    %3157 = vadd.xlane.f32.xlu0 %v3156
    %v3158 = vpop.xlane.xlu0 %3157
    %v3159 = vadd.f32 %v2850, %v2851
    %v3160 = vadd.f32 %v3159, %v2852
    %v3161 = vadd.f32 %v3160, %v2853
    %v3162 = vadd.f32 %v3161, %v2854
    %v3163 = vadd.f32 %v3162, %v2855
    %3164 = vadd.xlane.f32.xlu0 %v3163
    %v3165 = vpop.xlane.xlu0 %3164
    %v3166 = vadd.f32 %v2856, %v2857
    %v3167 = vadd.f32 %v3166, %v2858
    %v3168 = vadd.f32 %v3167, %v2859
    %v3169 = vadd.f32 %v3168, %v2860
    %v3170 = vadd.f32 %v3169, %v2861
    %3171 = vadd.xlane.f32.xlu0 %v3170
    %v3172 = vpop.xlane.xlu0 %3171
    %v3173 = vadd.f32 %v2862, %v2863
    %v3174 = vadd.f32 %v3173, %v2864
    %v3175 = vadd.f32 %v3174, %v2865
    %v3176 = vadd.f32 %v3175, %v2866
    %v3177 = vadd.f32 %v3176, %v2867
    %3178 = vadd.xlane.f32.xlu0 %v3177
    %v3179 = vpop.xlane.xlu0 %3178
    %v3180 = vadd.f32 %v2868, %v2869
    %v3181 = vadd.f32 %v3180, %v2870
    %v3182 = vadd.f32 %v3181, %v2871
    %v3183 = vadd.f32 %v3182, %v2872
    %v3184 = vadd.f32 %v3183, %v2873
    %3185 = vadd.xlane.f32.xlu0 %v3184
    %v3186 = vpop.xlane.xlu0 %3185
    %v3187 = vadd.f32 %v2874, %v2875
    %v3188 = vadd.f32 %v3187, %v2876
    %v3189 = vadd.f32 %v3188, %v2877
    %v3190 = vadd.f32 %v3189, %v2878
    %v3191 = vadd.f32 %v3190, %v2879
    %3192 = vadd.xlane.f32.xlu0 %v3191
    %v3193 = vpop.xlane.xlu0 %3192
    %v3194 = vadd.f32 %v2880, %v2881
    %v3195 = vadd.f32 %v3194, %v2882
    %v3196 = vadd.f32 %v3195, %v2883
    %v3197 = vadd.f32 %v3196, %v2884
    %v3198 = vadd.f32 %v3197, %v2885
    %3199 = vadd.xlane.f32.xlu0 %v3198
    %v3200 = vpop.xlane.xlu0 %3199
    %v3201 = vadd.f32 %v2886, %v2887
    %v3202 = vadd.f32 %v3201, %v2888
    %v3203 = vadd.f32 %v3202, %v2889
    %v3204 = vadd.f32 %v3203, %v2890
    %v3205 = vadd.f32 %v3204, %v2891
    %3206 = vadd.xlane.f32.xlu0 %v3205
    %v3207 = vpop.xlane.xlu0 %3206
    %v3208 = vadd.f32 %v2892, %v2893
    %v3209 = vadd.f32 %v3208, %v2894
    %v3210 = vadd.f32 %v3209, %v2895
    %v3211 = vadd.f32 %v3210, %v2896
    %v3212 = vadd.f32 %v3211, %v2897
    %3213 = vadd.xlane.f32.xlu0 %v3212
    %v3214 = vpop.xlane.xlu0 %3213
    %v3215 = vadd.f32 %v2898, %v2899
    %v3216 = vadd.f32 %v3215, %v2900
    %v3217 = vadd.f32 %v3216, %v2901
    %v3218 = vadd.f32 %v3217, %v2902
    %v3219 = vadd.f32 %v3218, %v2903
    %3220 = vadd.xlane.f32.xlu0 %v3219
    %v3221 = vpop.xlane.xlu0 %3220
    %v3222 = vadd.f32 %v2904, %v2905
    %v3223 = vadd.f32 %v3222, %v2906
    %v3224 = vadd.f32 %v3223, %v2907
    %v3225 = vadd.f32 %v3224, %v2908
    %v3226 = vadd.f32 %v3225, %v2909
    %3227 = vadd.xlane.f32.xlu0 %v3226
    %v3228 = vpop.xlane.xlu0 %3227
    %v3229 = vadd.f32 %v2910, %v2911
    %v3230 = vadd.f32 %v3229, %v2912
    %v3231 = vadd.f32 %v3230, %v2913
    %v3232 = vadd.f32 %v3231, %v2914
    %v3233 = vadd.f32 %v3232, %v2915
    %3234 = vadd.xlane.f32.xlu0 %v3233
    %v3235 = vpop.xlane.xlu0 %3234
    %v3236 = vadd.f32 %v2916, %v2917
    %v3237 = vadd.f32 %v3236, %v2918
    %v3238 = vadd.f32 %v3237, %v2919
    %v3239 = vadd.f32 %v3238, %v2920
    %v3240 = vadd.f32 %v3239, %v2921
    %3241 = vadd.xlane.f32.xlu0 %v3240
    %v3242 = vpop.xlane.xlu0 %3241
    %v3243 = vadd.f32 %v2922, %v2923
    %v3244 = vadd.f32 %v3243, %v2924
    %v3245 = vadd.f32 %v3244, %v2925
    %v3246 = vadd.f32 %v3245, %v2926
    %v3247 = vadd.f32 %v3246, %v2927
    %3248 = vadd.xlane.f32.xlu0 %v3247
    %v3249 = vpop.xlane.xlu0 %3248
    %v3250 = vadd.f32 %v2928, %v2929
    %v3251 = vadd.f32 %v3250, %v2930
    %v3252 = vadd.f32 %v3251, %v2931
    %v3253 = vadd.f32 %v3252, %v2932
    %v3254 = vadd.f32 %v3253, %v2933
    %3255 = vadd.xlane.f32.xlu0 %v3254
    %v3256 = vpop.xlane.xlu0 %3255
    %v3257 = vadd.f32 %v2934, %v2935
    %v3258 = vadd.f32 %v3257, %v2936
    %v3259 = vadd.f32 %v3258, %v2937
    %v3260 = vadd.f32 %v3259, %v2938
    %v3261 = vadd.f32 %v3260, %v2939
    %3262 = vadd.xlane.f32.xlu0 %v3261
    %v3263 = vpop.xlane.xlu0 %3262
    %v3264 = vadd.f32 %v2940, %v2941
    %v3265 = vadd.f32 %v3264, %v2942
    %v3266 = vadd.f32 %v3265, %v2943
    %v3267 = vadd.f32 %v3266, %v2944
    %v3268 = vadd.f32 %v3267, %v2945
    %3269 = vadd.xlane.f32.xlu0 %v3268
    %v3270 = vpop.xlane.xlu0 %3269
    %v3271 = vadd.f32 %v2946, %v2947
    %v3272 = vadd.f32 %v3271, %v2948
    %v3273 = vadd.f32 %v3272, %v2949
    %v3274 = vadd.f32 %v3273, %v2950
    %v3275 = vadd.f32 %v3274, %v2951
    %3276 = vadd.xlane.f32.xlu0 %v3275
    %v3277 = vpop.xlane.xlu0 %3276
    %v3278 = vadd.f32 %v2952, %v2953
    %v3279 = vadd.f32 %v3278, %v2954
    %v3280 = vadd.f32 %v3279, %v2955
    %v3281 = vadd.f32 %v3280, %v2956
    %v3282 = vadd.f32 %v3281, %v2957
    %3283 = vadd.xlane.f32.xlu0 %v3282
    %v3284 = vpop.xlane.xlu0 %3283
    %v3285 = vadd.f32 %v2958, %v2959
    %v3286 = vadd.f32 %v3285, %v2960
    %v3287 = vadd.f32 %v3286, %v2961
    %v3288 = vadd.f32 %v3287, %v2962
    %v3289 = vadd.f32 %v3288, %v2963
    %3290 = vadd.xlane.f32.xlu0 %v3289
    %v3291 = vpop.xlane.xlu0 %3290
    %v3292 = vadd.f32 %v2964, %v2965
    %v3293 = vadd.f32 %v3292, %v2966
    %v3294 = vadd.f32 %v3293, %v2967
    %v3295 = vadd.f32 %v3294, %v2968
    %v3296 = vadd.f32 %v3295, %v2969
    %3297 = vadd.xlane.f32.xlu0 %v3296
    %v3298 = vpop.xlane.xlu0 %3297
    %v3299 = vadd.f32 %v2970, %v2971
    %v3300 = vadd.f32 %v3299, %v2972
    %v3301 = vadd.f32 %v3300, %v2973
    %v3302 = vadd.f32 %v3301, %v2974
    %v3303 = vadd.f32 %v3302, %v2975
    %3304 = vadd.xlane.f32.xlu0 %v3303
    %v3305 = vpop.xlane.xlu0 %3304
    %v3306 = vadd.f32 %v2976, %v2977
    %v3307 = vadd.f32 %v3306, %v2978
    %v3308 = vadd.f32 %v3307, %v2979
    %v3309 = vadd.f32 %v3308, %v2980
    %v3310 = vadd.f32 %v3309, %v2981
    %3311 = vadd.xlane.f32.xlu0 %v3310
    %v3312 = vpop.xlane.xlu0 %3311
    %v3313 = vadd.f32 %v2982, %v2983
    %v3314 = vadd.f32 %v3313, %v2984
    %v3315 = vadd.f32 %v3314, %v2985
    %v3316 = vadd.f32 %v3315, %v2986
    %v3317 = vadd.f32 %v3316, %v2987
    %3318 = vadd.xlane.f32.xlu0 %v3317
    %v3319 = vpop.xlane.xlu0 %3318
    %v3320 = vadd.f32 %v2988, %v2989
    %v3321 = vadd.f32 %v3320, %v2990
    %v3322 = vadd.f32 %v3321, %v2991
    %v3323 = vadd.f32 %v3322, %v2992
    %v3324 = vadd.f32 %v3323, %v2993
    %3325 = vadd.xlane.f32.xlu0 %v3324
    %v3326 = vpop.xlane.xlu0 %3325
    %v3327 = vadd.f32 %v2994, %v2995
    %v3328 = vadd.f32 %v3327, %v2996
    %v3329 = vadd.f32 %v3328, %v2997
    %v3330 = vadd.f32 %v3329, %v2998
    %v3331 = vadd.f32 %v3330, %v2999
    %3332 = vadd.xlane.f32.xlu0 %v3331
    %v3333 = vpop.xlane.xlu0 %3332
    %v3334 = vadd.f32 %v3000, %v3001
    %v3335 = vadd.f32 %v3334, %v3002
    %v3336 = vadd.f32 %v3335, %v3003
    %v3337 = vadd.f32 %v3336, %v3004
    %v3338 = vadd.f32 %v3337, %v3005
    %3339 = vadd.xlane.f32.xlu0 %v3338
    %v3340 = vpop.xlane.xlu0 %3339
    %v3341 = vadd.f32 %v3006, %v3007
    %v3342 = vadd.f32 %v3341, %v3008
    %v3343 = vadd.f32 %v3342, %v3009
    %v3344 = vadd.f32 %v3343, %v3010
    %v3345 = vadd.f32 %v3344, %v3011
    %3346 = vadd.xlane.f32.xlu0 %v3345
    %v3347 = vpop.xlane.xlu0 %3346
    %v3348 = vmul.f32 %v3018, %v2387
    %v3349 = vmul.f32 %v3025, %v2387
    %v3350 = vmul.f32 %v3032, %v2387
    %v3351 = vmul.f32 %v3039, %v2387
    %v3352 = vmul.f32 %v3046, %v2387
    %v3353 = vmul.f32 %v3053, %v2387
    %v3354 = vmul.f32 %v3060, %v2387
    %v3355 = vmul.f32 %v3067, %v2387
    %v3356 = vmul.f32 %v3074, %v2387
    %v3357 = vmul.f32 %v3081, %v2387
    %v3358 = vmul.f32 %v3088, %v2387
    %v3359 = vmul.f32 %v3095, %v2387
    %v3360 = vmul.f32 %v3102, %v2387
    %v3361 = vmul.f32 %v3109, %v2387
    %v3362 = vmul.f32 %v3116, %v2387
    %v3363 = vmul.f32 %v3123, %v2387
    %v3364 = vmul.f32 %v3130, %v2387
    %v3365 = vmul.f32 %v3137, %v2387
    %v3366 = vmul.f32 %v3144, %v2387
    %v3367 = vmul.f32 %v3151, %v2387
    %v3368 = vmul.f32 %v3158, %v2387
    %v3369 = vmul.f32 %v3165, %v2387
    %v3370 = vmul.f32 %v3172, %v2387
    %v3371 = vmul.f32 %v3179, %v2387
    %v3372 = vmul.f32 %v3186, %v2387
    %v3373 = vmul.f32 %v3193, %v2387
    %v3374 = vmul.f32 %v3200, %v2387
    %v3375 = vmul.f32 %v3207, %v2387
    %v3376 = vmul.f32 %v3214, %v2387
    %v3377 = vmul.f32 %v3221, %v2387
    %v3378 = vmul.f32 %v3228, %v2387
    %v3379 = vmul.f32 %v3235, %v2387
    %v3380 = vmul.f32 %v3242, %v2387
    %v3381 = vmul.f32 %v3249, %v2387
    %v3382 = vmul.f32 %v3256, %v2387
    %v3383 = vmul.f32 %v3263, %v2387
    %v3384 = vmul.f32 %v3270, %v2387
    %v3385 = vmul.f32 %v3277, %v2387
    %v3386 = vmul.f32 %v3284, %v2387
    %v3387 = vmul.f32 %v3291, %v2387
    %v3388 = vmul.f32 %v3298, %v2387
    %v3389 = vmul.f32 %v3305, %v2387
    %v3390 = vmul.f32 %v3312, %v2387
    %v3391 = vmul.f32 %v3319, %v2387
    %v3392 = vmul.f32 %v3326, %v2387
    %v3393 = vmul.f32 %v3333, %v2387
    %v3394 = vmul.f32 %v3340, %v2387
    %v3395 = vmul.f32 %v3347, %v2387
    %v3396 = vadd.f32 %v3348, 1e-12
    %v3397 = vadd.f32 %v3349, 1e-12
    %v3398 = vadd.f32 %v3350, 1e-12
    %v3399 = vadd.f32 %v3351, 1e-12
    %v3400 = vadd.f32 %v3352, 1e-12
    %v3401 = vadd.f32 %v3353, 1e-12
    %v3402 = vadd.f32 %v3354, 1e-12
    %v3403 = vadd.f32 %v3355, 1e-12
    %v3404 = vadd.f32 %v3356, 1e-12
    %v3405 = vadd.f32 %v3357, 1e-12
    %v3406 = vadd.f32 %v3358, 1e-12
    %v3407 = vadd.f32 %v3359, 1e-12
    %v3408 = vadd.f32 %v3360, 1e-12
    %v3409 = vadd.f32 %v3361, 1e-12
    %v3410 = vadd.f32 %v3362, 1e-12
    %v3411 = vadd.f32 %v3363, 1e-12
    %v3412 = vadd.f32 %v3364, 1e-12
    %v3413 = vadd.f32 %v3365, 1e-12
    %v3414 = vadd.f32 %v3366, 1e-12
    %v3415 = vadd.f32 %v3367, 1e-12
    %v3416 = vadd.f32 %v3368, 1e-12
    %v3417 = vadd.f32 %v3369, 1e-12
    %v3418 = vadd.f32 %v3370, 1e-12
    %v3419 = vadd.f32 %v3371, 1e-12
    %v3420 = vadd.f32 %v3372, 1e-12
    %v3421 = vadd.f32 %v3373, 1e-12
    %v3422 = vadd.f32 %v3374, 1e-12
    %v3423 = vadd.f32 %v3375, 1e-12
    %v3424 = vadd.f32 %v3376, 1e-12
    %v3425 = vadd.f32 %v3377, 1e-12
    %v3426 = vadd.f32 %v3378, 1e-12
    %v3427 = vadd.f32 %v3379, 1e-12
    %v3428 = vadd.f32 %v3380, 1e-12
    %v3429 = vadd.f32 %v3381, 1e-12
    %v3430 = vadd.f32 %v3382, 1e-12
    %v3431 = vadd.f32 %v3383, 1e-12
    %v3432 = vadd.f32 %v3384, 1e-12
    %v3433 = vadd.f32 %v3385, 1e-12
    %v3434 = vadd.f32 %v3386, 1e-12
    %v3435 = vadd.f32 %v3387, 1e-12
    %v3436 = vadd.f32 %v3388, 1e-12
    %v3437 = vadd.f32 %v3389, 1e-12
    %v3438 = vadd.f32 %v3390, 1e-12
    %v3439 = vadd.f32 %v3391, 1e-12
    %v3440 = vadd.f32 %v3392, 1e-12
    %v3441 = vadd.f32 %v3393, 1e-12
    %v3442 = vadd.f32 %v3394, 1e-12
    %v3443 = vadd.f32 %v3395, 1e-12
    %v3444 = vrsqrt.pop %v3396
    %v3445 = vrsqrt.pop %v3397
    %v3446 = vrsqrt.pop %v3398
    %v3447 = vrsqrt.pop %v3399
    %v3448 = vrsqrt.pop %v3400
    %v3449 = vrsqrt.pop %v3401
    %v3450 = vrsqrt.pop %v3402
    %v3451 = vrsqrt.pop %v3403
    %v3452 = vrsqrt.pop %v3404
    %v3453 = vrsqrt.pop %v3405
    %v3454 = vrsqrt.pop %v3406
    %v3455 = vrsqrt.pop %v3407
    %v3456 = vrsqrt.pop %v3408
    %v3457 = vrsqrt.pop %v3409
    %v3458 = vrsqrt.pop %v3410
    %v3459 = vrsqrt.pop %v3411
    %v3460 = vrsqrt.pop %v3412
    %v3461 = vrsqrt.pop %v3413
    %v3462 = vrsqrt.pop %v3414
    %v3463 = vrsqrt.pop %v3415
    %v3464 = vrsqrt.pop %v3416
    %v3465 = vrsqrt.pop %v3417
    %v3466 = vrsqrt.pop %v3418
    %v3467 = vrsqrt.pop %v3419
    %v3468 = vrsqrt.pop %v3420
    %v3469 = vrsqrt.pop %v3421
    %v3470 = vrsqrt.pop %v3422
    %v3471 = vrsqrt.pop %v3423
    %v3472 = vrsqrt.pop %v3424
    %v3473 = vrsqrt.pop %v3425
    %v3474 = vrsqrt.pop %v3426
    %v3475 = vrsqrt.pop %v3427
    %v3476 = vrsqrt.pop %v3428
    %v3477 = vrsqrt.pop %v3429
    %v3478 = vrsqrt.pop %v3430
    %v3479 = vrsqrt.pop %v3431
    %v3480 = vrsqrt.pop %v3432
    %v3481 = vrsqrt.pop %v3433
    %v3482 = vrsqrt.pop %v3434
    %v3483 = vrsqrt.pop %v3435
    %v3484 = vrsqrt.pop %v3436
    %v3485 = vrsqrt.pop %v3437
    %v3486 = vrsqrt.pop %v3438
    %v3487 = vrsqrt.pop %v3439
    %v3488 = vrsqrt.pop %v3440
    %v3489 = vrsqrt.pop %v3441
    %v3490 = vrsqrt.pop %v3442
    %v3491 = vrsqrt.pop %v3443
    %v3492 = vmul.f32 %v2436, %v3444
    %v3493 = vmul.f32 %v2437, %v3444
    %v3494 = vmul.f32 %v2438, %v3444
    %v3495 = vmul.f32 %v2439, %v3444
    %v3496 = vmul.f32 %v2440, %v3444
    %v3497 = vmul.f32 %v2441, %v3444
    %v3498 = vmul.f32 %v2442, %v3445
    %v3499 = vmul.f32 %v2443, %v3445
    %v3500 = vmul.f32 %v2444, %v3445
    %v3501 = vmul.f32 %v2445, %v3445
    %v3502 = vmul.f32 %v2446, %v3445
    %v3503 = vmul.f32 %v2447, %v3445
    %v3504 = vmul.f32 %v2448, %v3446
    %v3505 = vmul.f32 %v2449, %v3446
    %v3506 = vmul.f32 %v2450, %v3446
    %v3507 = vmul.f32 %v2451, %v3446
    %v3508 = vmul.f32 %v2452, %v3446
    %v3509 = vmul.f32 %v2453, %v3446
    %v3510 = vmul.f32 %v2454, %v3447
    %v3511 = vmul.f32 %v2455, %v3447
    %v3512 = vmul.f32 %v2456, %v3447
    %v3513 = vmul.f32 %v2457, %v3447
    %v3514 = vmul.f32 %v2458, %v3447
    %v3515 = vmul.f32 %v2459, %v3447
    %v3516 = vmul.f32 %v2460, %v3448
    %v3517 = vmul.f32 %v2461, %v3448
    %v3518 = vmul.f32 %v2462, %v3448
    %v3519 = vmul.f32 %v2463, %v3448
    %v3520 = vmul.f32 %v2464, %v3448
    %v3521 = vmul.f32 %v2465, %v3448
    %v3522 = vmul.f32 %v2466, %v3449
    %v3523 = vmul.f32 %v2467, %v3449
    %v3524 = vmul.f32 %v2468, %v3449
    %v3525 = vmul.f32 %v2469, %v3449
    %v3526 = vmul.f32 %v2470, %v3449
    %v3527 = vmul.f32 %v2471, %v3449
    %v3528 = vmul.f32 %v2472, %v3450
    %v3529 = vmul.f32 %v2473, %v3450
    %v3530 = vmul.f32 %v2474, %v3450
    %v3531 = vmul.f32 %v2475, %v3450
    %v3532 = vmul.f32 %v2476, %v3450
    %v3533 = vmul.f32 %v2477, %v3450
    %v3534 = vmul.f32 %v2478, %v3451
    %v3535 = vmul.f32 %v2479, %v3451
    %v3536 = vmul.f32 %v2480, %v3451
    %v3537 = vmul.f32 %v2481, %v3451
    %v3538 = vmul.f32 %v2482, %v3451
    %v3539 = vmul.f32 %v2483, %v3451
    %v3540 = vmul.f32 %v2484, %v3452
    %v3541 = vmul.f32 %v2485, %v3452
    %v3542 = vmul.f32 %v2486, %v3452
    %v3543 = vmul.f32 %v2487, %v3452
    %v3544 = vmul.f32 %v2488, %v3452
    %v3545 = vmul.f32 %v2489, %v3452
    %v3546 = vmul.f32 %v2490, %v3453
    %v3547 = vmul.f32 %v2491, %v3453
    %v3548 = vmul.f32 %v2492, %v3453
    %v3549 = vmul.f32 %v2493, %v3453
    %v3550 = vmul.f32 %v2494, %v3453
    %v3551 = vmul.f32 %v2495, %v3453
    %v3552 = vmul.f32 %v2496, %v3454
    %v3553 = vmul.f32 %v2497, %v3454
    %v3554 = vmul.f32 %v2498, %v3454
    %v3555 = vmul.f32 %v2499, %v3454
    %v3556 = vmul.f32 %v2500, %v3454
    %v3557 = vmul.f32 %v2501, %v3454
    %v3558 = vmul.f32 %v2502, %v3455
    %v3559 = vmul.f32 %v2503, %v3455
    %v3560 = vmul.f32 %v2504, %v3455
    %v3561 = vmul.f32 %v2505, %v3455
    %v3562 = vmul.f32 %v2506, %v3455
    %v3563 = vmul.f32 %v2507, %v3455
    %v3564 = vmul.f32 %v2508, %v3456
    %v3565 = vmul.f32 %v2509, %v3456
    %v3566 = vmul.f32 %v2510, %v3456
    %v3567 = vmul.f32 %v2511, %v3456
    %v3568 = vmul.f32 %v2512, %v3456
    %v3569 = vmul.f32 %v2513, %v3456
    %v3570 = vmul.f32 %v2514, %v3457
    %v3571 = vmul.f32 %v2515, %v3457
    %v3572 = vmul.f32 %v2516, %v3457
    %v3573 = vmul.f32 %v2517, %v3457
    %v3574 = vmul.f32 %v2518, %v3457
    %v3575 = vmul.f32 %v2519, %v3457
    %v3576 = vmul.f32 %v2520, %v3458
    %v3577 = vmul.f32 %v2521, %v3458
    %v3578 = vmul.f32 %v2522, %v3458
    %v3579 = vmul.f32 %v2523, %v3458
    %v3580 = vmul.f32 %v2524, %v3458
    %v3581 = vmul.f32 %v2525, %v3458
    %v3582 = vmul.f32 %v2526, %v3459
    %v3583 = vmul.f32 %v2527, %v3459
    %v3584 = vmul.f32 %v2528, %v3459
    %v3585 = vmul.f32 %v2529, %v3459
    %v3586 = vmul.f32 %v2530, %v3459
    %v3587 = vmul.f32 %v2531, %v3459
    %v3588 = vmul.f32 %v2532, %v3460
    %v3589 = vmul.f32 %v2533, %v3460
    %v3590 = vmul.f32 %v2534, %v3460
    %v3591 = vmul.f32 %v2535, %v3460
    %v3592 = vmul.f32 %v2536, %v3460
    %v3593 = vmul.f32 %v2537, %v3460
    %v3594 = vmul.f32 %v2538, %v3461
    %v3595 = vmul.f32 %v2539, %v3461
    %v3596 = vmul.f32 %v2540, %v3461
    %v3597 = vmul.f32 %v2541, %v3461
    %v3598 = vmul.f32 %v2542, %v3461
    %v3599 = vmul.f32 %v2543, %v3461
    %v3600 = vmul.f32 %v2544, %v3462
    %v3601 = vmul.f32 %v2545, %v3462
    %v3602 = vmul.f32 %v2546, %v3462
    %v3603 = vmul.f32 %v2547, %v3462
    %v3604 = vmul.f32 %v2548, %v3462
    %v3605 = vmul.f32 %v2549, %v3462
    %v3606 = vmul.f32 %v2550, %v3463
    %v3607 = vmul.f32 %v2551, %v3463
    %v3608 = vmul.f32 %v2552, %v3463
    %v3609 = vmul.f32 %v2553, %v3463
    %v3610 = vmul.f32 %v2554, %v3463
    %v3611 = vmul.f32 %v2555, %v3463
    %v3612 = vmul.f32 %v2556, %v3464
    %v3613 = vmul.f32 %v2557, %v3464
    %v3614 = vmul.f32 %v2558, %v3464
    %v3615 = vmul.f32 %v2559, %v3464
    %v3616 = vmul.f32 %v2560, %v3464
    %v3617 = vmul.f32 %v2561, %v3464
    %v3618 = vmul.f32 %v2562, %v3465
    %v3619 = vmul.f32 %v2563, %v3465
    %v3620 = vmul.f32 %v2564, %v3465
    %v3621 = vmul.f32 %v2565, %v3465
    %v3622 = vmul.f32 %v2566, %v3465
    %v3623 = vmul.f32 %v2567, %v3465
    %v3624 = vmul.f32 %v2568, %v3466
    %v3625 = vmul.f32 %v2569, %v3466
    %v3626 = vmul.f32 %v2570, %v3466
    %v3627 = vmul.f32 %v2571, %v3466
    %v3628 = vmul.f32 %v2572, %v3466
    %v3629 = vmul.f32 %v2573, %v3466
    %v3630 = vmul.f32 %v2574, %v3467
    %v3631 = vmul.f32 %v2575, %v3467
    %v3632 = vmul.f32 %v2576, %v3467
    %v3633 = vmul.f32 %v2577, %v3467
    %v3634 = vmul.f32 %v2578, %v3467
    %v3635 = vmul.f32 %v2579, %v3467
    %v3636 = vmul.f32 %v2580, %v3468
    %v3637 = vmul.f32 %v2581, %v3468
    %v3638 = vmul.f32 %v2582, %v3468
    %v3639 = vmul.f32 %v2583, %v3468
    %v3640 = vmul.f32 %v2584, %v3468
    %v3641 = vmul.f32 %v2585, %v3468
    %v3642 = vmul.f32 %v2586, %v3469
    %v3643 = vmul.f32 %v2587, %v3469
    %v3644 = vmul.f32 %v2588, %v3469
    %v3645 = vmul.f32 %v2589, %v3469
    %v3646 = vmul.f32 %v2590, %v3469
    %v3647 = vmul.f32 %v2591, %v3469
    %v3648 = vmul.f32 %v2592, %v3470
    %v3649 = vmul.f32 %v2593, %v3470
    %v3650 = vmul.f32 %v2594, %v3470
    %v3651 = vmul.f32 %v2595, %v3470
    %v3652 = vmul.f32 %v2596, %v3470
    %v3653 = vmul.f32 %v2597, %v3470
    %v3654 = vmul.f32 %v2598, %v3471
    %v3655 = vmul.f32 %v2599, %v3471
    %v3656 = vmul.f32 %v2600, %v3471
    %v3657 = vmul.f32 %v2601, %v3471
    %v3658 = vmul.f32 %v2602, %v3471
    %v3659 = vmul.f32 %v2603, %v3471
    %v3660 = vmul.f32 %v2604, %v3472
    %v3661 = vmul.f32 %v2605, %v3472
    %v3662 = vmul.f32 %v2606, %v3472
    %v3663 = vmul.f32 %v2607, %v3472
    %v3664 = vmul.f32 %v2608, %v3472
    %v3665 = vmul.f32 %v2609, %v3472
    %v3666 = vmul.f32 %v2610, %v3473
    %v3667 = vmul.f32 %v2611, %v3473
    %v3668 = vmul.f32 %v2612, %v3473
    %v3669 = vmul.f32 %v2613, %v3473
    %v3670 = vmul.f32 %v2614, %v3473
    %v3671 = vmul.f32 %v2615, %v3473
    %v3672 = vmul.f32 %v2616, %v3474
    %v3673 = vmul.f32 %v2617, %v3474
    %v3674 = vmul.f32 %v2618, %v3474
    %v3675 = vmul.f32 %v2619, %v3474
    %v3676 = vmul.f32 %v2620, %v3474
    %v3677 = vmul.f32 %v2621, %v3474
    %v3678 = vmul.f32 %v2622, %v3475
    %v3679 = vmul.f32 %v2623, %v3475
    %v3680 = vmul.f32 %v2624, %v3475
    %v3681 = vmul.f32 %v2625, %v3475
    %v3682 = vmul.f32 %v2626, %v3475
    %v3683 = vmul.f32 %v2627, %v3475
    %v3684 = vmul.f32 %v2628, %v3476
    %v3685 = vmul.f32 %v2629, %v3476
    %v3686 = vmul.f32 %v2630, %v3476
    %v3687 = vmul.f32 %v2631, %v3476
    %v3688 = vmul.f32 %v2632, %v3476
    %v3689 = vmul.f32 %v2633, %v3476
    %v3690 = vmul.f32 %v2634, %v3477
    %v3691 = vmul.f32 %v2635, %v3477
    %v3692 = vmul.f32 %v2636, %v3477
    %v3693 = vmul.f32 %v2637, %v3477
    %v3694 = vmul.f32 %v2638, %v3477
    %v3695 = vmul.f32 %v2639, %v3477
    %v3696 = vmul.f32 %v2640, %v3478
    %v3697 = vmul.f32 %v2641, %v3478
    %v3698 = vmul.f32 %v2642, %v3478
    %v3699 = vmul.f32 %v2643, %v3478
    %v3700 = vmul.f32 %v2644, %v3478
    %v3701 = vmul.f32 %v2645, %v3478
    %v3702 = vmul.f32 %v2646, %v3479
    %v3703 = vmul.f32 %v2647, %v3479
    %v3704 = vmul.f32 %v2648, %v3479
    %v3705 = vmul.f32 %v2649, %v3479
    %v3706 = vmul.f32 %v2650, %v3479
    %v3707 = vmul.f32 %v2651, %v3479
    %v3708 = vmul.f32 %v2652, %v3480
    %v3709 = vmul.f32 %v2653, %v3480
    %v3710 = vmul.f32 %v2654, %v3480
    %v3711 = vmul.f32 %v2655, %v3480
    %v3712 = vmul.f32 %v2656, %v3480
    %v3713 = vmul.f32 %v2657, %v3480
    %v3714 = vmul.f32 %v2658, %v3481
    %v3715 = vmul.f32 %v2659, %v3481
    %v3716 = vmul.f32 %v2660, %v3481
    %v3717 = vmul.f32 %v2661, %v3481
    %v3718 = vmul.f32 %v2662, %v3481
    %v3719 = vmul.f32 %v2663, %v3481
    %v3720 = vmul.f32 %v2664, %v3482
    %v3721 = vmul.f32 %v2665, %v3482
    %v3722 = vmul.f32 %v2666, %v3482
    %v3723 = vmul.f32 %v2667, %v3482
    %v3724 = vmul.f32 %v2668, %v3482
    %v3725 = vmul.f32 %v2669, %v3482
    %v3726 = vmul.f32 %v2670, %v3483
    %v3727 = vmul.f32 %v2671, %v3483
    %v3728 = vmul.f32 %v2672, %v3483
    %v3729 = vmul.f32 %v2673, %v3483
    %v3730 = vmul.f32 %v2674, %v3483
    %v3731 = vmul.f32 %v2675, %v3483
    %v3732 = vmul.f32 %v2676, %v3484
    %v3733 = vmul.f32 %v2677, %v3484
    %v3734 = vmul.f32 %v2678, %v3484
    %v3735 = vmul.f32 %v2679, %v3484
    %v3736 = vmul.f32 %v2680, %v3484
    %v3737 = vmul.f32 %v2681, %v3484
    %v3738 = vmul.f32 %v2682, %v3485
    %v3739 = vmul.f32 %v2683, %v3485
    %v3740 = vmul.f32 %v2684, %v3485
    %v3741 = vmul.f32 %v2685, %v3485
    %v3742 = vmul.f32 %v2686, %v3485
    %v3743 = vmul.f32 %v2687, %v3485
    %v3744 = vmul.f32 %v2688, %v3486
    %v3745 = vmul.f32 %v2689, %v3486
    %v3746 = vmul.f32 %v2690, %v3486
    %v3747 = vmul.f32 %v2691, %v3486
    %v3748 = vmul.f32 %v2692, %v3486
    %v3749 = vmul.f32 %v2693, %v3486
    %v3750 = vmul.f32 %v2694, %v3487
    %v3751 = vmul.f32 %v2695, %v3487
    %v3752 = vmul.f32 %v2696, %v3487
    %v3753 = vmul.f32 %v2697, %v3487
    %v3754 = vmul.f32 %v2698, %v3487
    %v3755 = vmul.f32 %v2699, %v3487
    %v3756 = vmul.f32 %v2700, %v3488
    %v3757 = vmul.f32 %v2701, %v3488
    %v3758 = vmul.f32 %v2702, %v3488
    %v3759 = vmul.f32 %v2703, %v3488
    %v3760 = vmul.f32 %v2704, %v3488
    %v3761 = vmul.f32 %v2705, %v3488
    %v3762 = vmul.f32 %v2706, %v3489
    %v3763 = vmul.f32 %v2707, %v3489
    %v3764 = vmul.f32 %v2708, %v3489
    %v3765 = vmul.f32 %v2709, %v3489
    %v3766 = vmul.f32 %v2710, %v3489
    %v3767 = vmul.f32 %v2711, %v3489
    %v3768 = vmul.f32 %v2712, %v3490
    %v3769 = vmul.f32 %v2713, %v3490
    %v3770 = vmul.f32 %v2714, %v3490
    %v3771 = vmul.f32 %v2715, %v3490
    %v3772 = vmul.f32 %v2716, %v3490
    %v3773 = vmul.f32 %v2717, %v3490
    %v3774 = vmul.f32 %v2718, %v3491
    %v3775 = vmul.f32 %v2719, %v3491
    %v3776 = vmul.f32 %v2720, %v3491
    %v3777 = vmul.f32 %v2721, %v3491
    %v3778 = vmul.f32 %v2722, %v3491
    %v3779 = vmul.f32 %v2723, %v3491
    %v3780 = vld [vmem:[%s3] sm:$0x3f]
    %v3782 = vlaneseq
    %v3783 = vshrl.u32 %v3782, 7
    %v3784 = vsub.s32 0, %v3783
    %v3785 = vrot.slane %v3780, %v3784
    %v3786 = vlaneseq
    %v3787 = vshrl.u32 %v3786, 7
    %v3788 = vsub.s32 1, %v3787
    %v3789 = vrot.slane %v3780, %v3788
    %v3790 = vlaneseq
    %v3791 = vshrl.u32 %v3790, 7
    %v3792 = vsub.s32 2, %v3791
    %v3793 = vrot.slane %v3780, %v3792
    %v3794 = vlaneseq
    %v3795 = vshrl.u32 %v3794, 7
    %v3796 = vsub.s32 3, %v3795
    %v3797 = vrot.slane %v3780, %v3796
    %v3798 = vlaneseq
    %v3799 = vshrl.u32 %v3798, 7
    %v3800 = vsub.s32 4, %v3799
    %v3801 = vrot.slane %v3780, %v3800
    %v3802 = vlaneseq
    %v3803 = vshrl.u32 %v3802, 7
    %v3804 = vsub.s32 5, %v3803
    %v3805 = vrot.slane %v3780, %v3804
    %v3812 = vmul.f32 %v3492, %v3785
    %v3813 = vmul.f32 %v3493, %v3789
    %v3814 = vmul.f32 %v3494, %v3793
    %v3815 = vmul.f32 %v3495, %v3797
    %v3816 = vmul.f32 %v3496, %v3801
    %v3817 = vmul.f32 %v3497, %v3805
    %v3818 = vmul.f32 %v3498, %v3785
    %v3819 = vmul.f32 %v3499, %v3789
    %v3820 = vmul.f32 %v3500, %v3793
    %v3821 = vmul.f32 %v3501, %v3797
    %v3822 = vmul.f32 %v3502, %v3801
    %v3823 = vmul.f32 %v3503, %v3805
    %v3824 = vmul.f32 %v3504, %v3785
    %v3825 = vmul.f32 %v3505, %v3789
    %v3826 = vmul.f32 %v3506, %v3793
    %v3827 = vmul.f32 %v3507, %v3797
    %v3828 = vmul.f32 %v3508, %v3801
    %v3829 = vmul.f32 %v3509, %v3805
    %v3830 = vmul.f32 %v3510, %v3785
    %v3831 = vmul.f32 %v3511, %v3789
    %v3832 = vmul.f32 %v3512, %v3793
    %v3833 = vmul.f32 %v3513, %v3797
    %v3834 = vmul.f32 %v3514, %v3801
    %v3835 = vmul.f32 %v3515, %v3805
    %v3836 = vmul.f32 %v3516, %v3785
    %v3837 = vmul.f32 %v3517, %v3789
    %v3838 = vmul.f32 %v3518, %v3793
    %v3839 = vmul.f32 %v3519, %v3797
    %v3840 = vmul.f32 %v3520, %v3801
    %v3841 = vmul.f32 %v3521, %v3805
    %v3842 = vmul.f32 %v3522, %v3785
    %v3843 = vmul.f32 %v3523, %v3789
    %v3844 = vmul.f32 %v3524, %v3793
    %v3845 = vmul.f32 %v3525, %v3797
    %v3846 = vmul.f32 %v3526, %v3801
    %v3847 = vmul.f32 %v3527, %v3805
    %v3848 = vmul.f32 %v3528, %v3785
    %v3849 = vmul.f32 %v3529, %v3789
    %v3850 = vmul.f32 %v3530, %v3793
    %v3851 = vmul.f32 %v3531, %v3797
    %v3852 = vmul.f32 %v3532, %v3801
    %v3853 = vmul.f32 %v3533, %v3805
    %v3854 = vmul.f32 %v3534, %v3785
    %v3855 = vmul.f32 %v3535, %v3789
    %v3856 = vmul.f32 %v3536, %v3793
    %v3857 = vmul.f32 %v3537, %v3797
    %v3858 = vmul.f32 %v3538, %v3801
    %v3859 = vmul.f32 %v3539, %v3805
    %v3860 = vmul.f32 %v3540, %v3785
    %v3861 = vmul.f32 %v3541, %v3789
    %v3862 = vmul.f32 %v3542, %v3793
    %v3863 = vmul.f32 %v3543, %v3797
    %v3864 = vmul.f32 %v3544, %v3801
    %v3865 = vmul.f32 %v3545, %v3805
    %v3866 = vmul.f32 %v3546, %v3785
    %v3867 = vmul.f32 %v3547, %v3789
    %v3868 = vmul.f32 %v3548, %v3793
    %v3869 = vmul.f32 %v3549, %v3797
    %v3870 = vmul.f32 %v3550, %v3801
    %v3871 = vmul.f32 %v3551, %v3805
    %v3872 = vmul.f32 %v3552, %v3785
    %v3873 = vmul.f32 %v3553, %v3789
    %v3874 = vmul.f32 %v3554, %v3793
    %v3875 = vmul.f32 %v3555, %v3797
    %v3876 = vmul.f32 %v3556, %v3801
    %v3877 = vmul.f32 %v3557, %v3805
    %v3878 = vmul.f32 %v3558, %v3785
    %v3879 = vmul.f32 %v3559, %v3789
    %v3880 = vmul.f32 %v3560, %v3793
    %v3881 = vmul.f32 %v3561, %v3797
    %v3882 = vmul.f32 %v3562, %v3801
    %v3883 = vmul.f32 %v3563, %v3805
    %v3884 = vmul.f32 %v3564, %v3785
    %v3885 = vmul.f32 %v3565, %v3789
    %v3886 = vmul.f32 %v3566, %v3793
    %v3887 = vmul.f32 %v3567, %v3797
    %v3888 = vmul.f32 %v3568, %v3801
    %v3889 = vmul.f32 %v3569, %v3805
    %v3890 = vmul.f32 %v3570, %v3785
    %v3891 = vmul.f32 %v3571, %v3789
    %v3892 = vmul.f32 %v3572, %v3793
    %v3893 = vmul.f32 %v3573, %v3797
    %v3894 = vmul.f32 %v3574, %v3801
    %v3895 = vmul.f32 %v3575, %v3805
    %v3896 = vmul.f32 %v3576, %v3785
    %v3897 = vmul.f32 %v3577, %v3789
    %v3898 = vmul.f32 %v3578, %v3793
    %v3899 = vmul.f32 %v3579, %v3797
    %v3900 = vmul.f32 %v3580, %v3801
    %v3901 = vmul.f32 %v3581, %v3805
    %v3902 = vmul.f32 %v3582, %v3785
    %v3903 = vmul.f32 %v3583, %v3789
    %v3904 = vmul.f32 %v3584, %v3793
    %v3905 = vmul.f32 %v3585, %v3797
    %v3906 = vmul.f32 %v3586, %v3801
    %v3907 = vmul.f32 %v3587, %v3805
    %v3908 = vmul.f32 %v3588, %v3785
    %v3909 = vmul.f32 %v3589, %v3789
    %v3910 = vmul.f32 %v3590, %v3793
    %v3911 = vmul.f32 %v3591, %v3797
    %v3912 = vmul.f32 %v3592, %v3801
    %v3913 = vmul.f32 %v3593, %v3805
    %v3914 = vmul.f32 %v3594, %v3785
    %v3915 = vmul.f32 %v3595, %v3789
    %v3916 = vmul.f32 %v3596, %v3793
    %v3917 = vmul.f32 %v3597, %v3797
    %v3918 = vmul.f32 %v3598, %v3801
    %v3919 = vmul.f32 %v3599, %v3805
    %v3920 = vmul.f32 %v3600, %v3785
    %v3921 = vmul.f32 %v3601, %v3789
    %v3922 = vmul.f32 %v3602, %v3793
    %v3923 = vmul.f32 %v3603, %v3797
    %v3924 = vmul.f32 %v3604, %v3801
    %v3925 = vmul.f32 %v3605, %v3805
    %v3926 = vmul.f32 %v3606, %v3785
    %v3927 = vmul.f32 %v3607, %v3789
    %v3928 = vmul.f32 %v3608, %v3793
    %v3929 = vmul.f32 %v3609, %v3797
    %v3930 = vmul.f32 %v3610, %v3801
    %v3931 = vmul.f32 %v3611, %v3805
    %v3932 = vmul.f32 %v3612, %v3785
    %v3933 = vmul.f32 %v3613, %v3789
    %v3934 = vmul.f32 %v3614, %v3793
    %v3935 = vmul.f32 %v3615, %v3797
    %v3936 = vmul.f32 %v3616, %v3801
    %v3937 = vmul.f32 %v3617, %v3805
    %v3938 = vmul.f32 %v3618, %v3785
    %v3939 = vmul.f32 %v3619, %v3789
    %v3940 = vmul.f32 %v3620, %v3793
    %v3941 = vmul.f32 %v3621, %v3797
    %v3942 = vmul.f32 %v3622, %v3801
    %v3943 = vmul.f32 %v3623, %v3805
    %v3944 = vmul.f32 %v3624, %v3785
    %v3945 = vmul.f32 %v3625, %v3789
    %v3946 = vmul.f32 %v3626, %v3793
    %v3947 = vmul.f32 %v3627, %v3797
    %v3948 = vmul.f32 %v3628, %v3801
    %v3949 = vmul.f32 %v3629, %v3805
    %v3950 = vmul.f32 %v3630, %v3785
    %v3951 = vmul.f32 %v3631, %v3789
    %v3952 = vmul.f32 %v3632, %v3793
    %v3953 = vmul.f32 %v3633, %v3797
    %v3954 = vmul.f32 %v3634, %v3801
    %v3955 = vmul.f32 %v3635, %v3805
    %v3956 = vmul.f32 %v3636, %v3785
    %v3957 = vmul.f32 %v3637, %v3789
    %v3958 = vmul.f32 %v3638, %v3793
    %v3959 = vmul.f32 %v3639, %v3797
    %v3960 = vmul.f32 %v3640, %v3801
    %v3961 = vmul.f32 %v3641, %v3805
    %v3962 = vmul.f32 %v3642, %v3785
    %v3963 = vmul.f32 %v3643, %v3789
    %v3964 = vmul.f32 %v3644, %v3793
    %v3965 = vmul.f32 %v3645, %v3797
    %v3966 = vmul.f32 %v3646, %v3801
    %v3967 = vmul.f32 %v3647, %v3805
    %v3968 = vmul.f32 %v3648, %v3785
    %v3969 = vmul.f32 %v3649, %v3789
    %v3970 = vmul.f32 %v3650, %v3793
    %v3971 = vmul.f32 %v3651, %v3797
    %v3972 = vmul.f32 %v3652, %v3801
    %v3973 = vmul.f32 %v3653, %v3805
    %v3974 = vmul.f32 %v3654, %v3785
    %v3975 = vmul.f32 %v3655, %v3789
    %v3976 = vmul.f32 %v3656, %v3793
    %v3977 = vmul.f32 %v3657, %v3797
    %v3978 = vmul.f32 %v3658, %v3801
    %v3979 = vmul.f32 %v3659, %v3805
    %v3980 = vmul.f32 %v3660, %v3785
    %v3981 = vmul.f32 %v3661, %v3789
    %v3982 = vmul.f32 %v3662, %v3793
    %v3983 = vmul.f32 %v3663, %v3797
    %v3984 = vmul.f32 %v3664, %v3801
    %v3985 = vmul.f32 %v3665, %v3805
    %v3986 = vmul.f32 %v3666, %v3785
    %v3987 = vmul.f32 %v3667, %v3789
    %v3988 = vmul.f32 %v3668, %v3793
    %v3989 = vmul.f32 %v3669, %v3797
    %v3990 = vmul.f32 %v3670, %v3801
    %v3991 = vmul.f32 %v3671, %v3805
    %v3992 = vmul.f32 %v3672, %v3785
    %v3993 = vmul.f32 %v3673, %v3789
    %v3994 = vmul.f32 %v3674, %v3793
    %v3995 = vmul.f32 %v3675, %v3797
    %v3996 = vmul.f32 %v3676, %v3801
    %v3997 = vmul.f32 %v3677, %v3805
    %v3998 = vmul.f32 %v3678, %v3785
    %v3999 = vmul.f32 %v3679, %v3789
    %v4000 = vmul.f32 %v3680, %v3793
    %v4001 = vmul.f32 %v3681, %v3797
    %v4002 = vmul.f32 %v3682, %v3801
    %v4003 = vmul.f32 %v3683, %v3805
    %v4004 = vmul.f32 %v3684, %v3785
    %v4005 = vmul.f32 %v3685, %v3789
    %v4006 = vmul.f32 %v3686, %v3793
    %v4007 = vmul.f32 %v3687, %v3797
    %v4008 = vmul.f32 %v3688, %v3801
    %v4009 = vmul.f32 %v3689, %v3805
    %v4010 = vmul.f32 %v3690, %v3785
    %v4011 = vmul.f32 %v3691, %v3789
    %v4012 = vmul.f32 %v3692, %v3793
    %v4013 = vmul.f32 %v3693, %v3797
    %v4014 = vmul.f32 %v3694, %v3801
    %v4015 = vmul.f32 %v3695, %v3805
    %v4016 = vmul.f32 %v3696, %v3785
    %v4017 = vmul.f32 %v3697, %v3789
    %v4018 = vmul.f32 %v3698, %v3793
    %v4019 = vmul.f32 %v3699, %v3797
    %v4020 = vmul.f32 %v3700, %v3801
    %v4021 = vmul.f32 %v3701, %v3805
    %v4022 = vmul.f32 %v3702, %v3785
    %v4023 = vmul.f32 %v3703, %v3789
    %v4024 = vmul.f32 %v3704, %v3793
    %v4025 = vmul.f32 %v3705, %v3797
    %v4026 = vmul.f32 %v3706, %v3801
    %v4027 = vmul.f32 %v3707, %v3805
    %v4028 = vmul.f32 %v3708, %v3785
    %v4029 = vmul.f32 %v3709, %v3789
    %v4030 = vmul.f32 %v3710, %v3793
    %v4031 = vmul.f32 %v3711, %v3797
    %v4032 = vmul.f32 %v3712, %v3801
    %v4033 = vmul.f32 %v3713, %v3805
    %v4034 = vmul.f32 %v3714, %v3785
    %v4035 = vmul.f32 %v3715, %v3789
    %v4036 = vmul.f32 %v3716, %v3793
    %v4037 = vmul.f32 %v3717, %v3797
    %v4038 = vmul.f32 %v3718, %v3801
    %v4039 = vmul.f32 %v3719, %v3805
    %v4040 = vmul.f32 %v3720, %v3785
    %v4041 = vmul.f32 %v3721, %v3789
    %v4042 = vmul.f32 %v3722, %v3793
    %v4043 = vmul.f32 %v3723, %v3797
    %v4044 = vmul.f32 %v3724, %v3801
    %v4045 = vmul.f32 %v3725, %v3805
    %v4046 = vmul.f32 %v3726, %v3785
    %v4047 = vmul.f32 %v3727, %v3789
    %v4048 = vmul.f32 %v3728, %v3793
    %v4049 = vmul.f32 %v3729, %v3797
    %v4050 = vmul.f32 %v3730, %v3801
    %v4051 = vmul.f32 %v3731, %v3805
    %v4052 = vmul.f32 %v3732, %v3785
    %v4053 = vmul.f32 %v3733, %v3789
    %v4054 = vmul.f32 %v3734, %v3793
    %v4055 = vmul.f32 %v3735, %v3797
    %v4056 = vmul.f32 %v3736, %v3801
    %v4057 = vmul.f32 %v3737, %v3805
    %v4058 = vmul.f32 %v3738, %v3785
    %v4059 = vmul.f32 %v3739, %v3789
    %v4060 = vmul.f32 %v3740, %v3793
    %v4061 = vmul.f32 %v3741, %v3797
    %v4062 = vmul.f32 %v3742, %v3801
    %v4063 = vmul.f32 %v3743, %v3805
    %v4064 = vmul.f32 %v3744, %v3785
    %v4065 = vmul.f32 %v3745, %v3789
    %v4066 = vmul.f32 %v3746, %v3793
    %v4067 = vmul.f32 %v3747, %v3797
    %v4068 = vmul.f32 %v3748, %v3801
    %v4069 = vmul.f32 %v3749, %v3805
    %v4070 = vmul.f32 %v3750, %v3785
    %v4071 = vmul.f32 %v3751, %v3789
    %v4072 = vmul.f32 %v3752, %v3793
    %v4073 = vmul.f32 %v3753, %v3797
    %v4074 = vmul.f32 %v3754, %v3801
    %v4075 = vmul.f32 %v3755, %v3805
    %v4076 = vmul.f32 %v3756, %v3785
    %v4077 = vmul.f32 %v3757, %v3789
    %v4078 = vmul.f32 %v3758, %v3793
    %v4079 = vmul.f32 %v3759, %v3797
    %v4080 = vmul.f32 %v3760, %v3801
    %v4081 = vmul.f32 %v3761, %v3805
    %v4082 = vmul.f32 %v3762, %v3785
    %v4083 = vmul.f32 %v3763, %v3789
    %v4084 = vmul.f32 %v3764, %v3793
    %v4085 = vmul.f32 %v3765, %v3797
    %v4086 = vmul.f32 %v3766, %v3801
    %v4087 = vmul.f32 %v3767, %v3805
    %v4088 = vmul.f32 %v3768, %v3785
    %v4089 = vmul.f32 %v3769, %v3789
    %v4090 = vmul.f32 %v3770, %v3793
    %v4091 = vmul.f32 %v3771, %v3797
    %v4092 = vmul.f32 %v3772, %v3801
    %v4093 = vmul.f32 %v3773, %v3805
    %v4094 = vmul.f32 %v3774, %v3785
    %v4095 = vmul.f32 %v3775, %v3789
    %v4096 = vmul.f32 %v3776, %v3793
    %v4097 = vmul.f32 %v3777, %v3797
    %v4098 = vmul.f32 %v3778, %v3801
    %v4099 = vmul.f32 %v3779, %v3805
    %v4100 = vld [vmem:[%s4] sm:$0x3f]
    %v4102 = vlaneseq
    %v4103 = vshrl.u32 %v4102, 7
    %v4104 = vsub.s32 0, %v4103
    %v4105 = vrot.slane %v4100, %v4104
    %v4106 = vlaneseq
    %v4107 = vshrl.u32 %v4106, 7
    %v4108 = vsub.s32 1, %v4107
    %v4109 = vrot.slane %v4100, %v4108
    %v4110 = vlaneseq
    %v4111 = vshrl.u32 %v4110, 7
    %v4112 = vsub.s32 2, %v4111
    %v4113 = vrot.slane %v4100, %v4112
    %v4114 = vlaneseq
    %v4115 = vshrl.u32 %v4114, 7
    %v4116 = vsub.s32 3, %v4115
    %v4117 = vrot.slane %v4100, %v4116
    %v4118 = vlaneseq
    %v4119 = vshrl.u32 %v4118, 7
    %v4120 = vsub.s32 4, %v4119
    %v4121 = vrot.slane %v4100, %v4120
    %v4122 = vlaneseq
    %v4123 = vshrl.u32 %v4122, 7
    %v4124 = vsub.s32 5, %v4123
    %v4125 = vrot.slane %v4100, %v4124
    %v4132 = vadd.f32 %v3812, %v4105
    %v4133 = vadd.f32 %v3813, %v4109
    %v4134 = vadd.f32 %v3814, %v4113
    %v4135 = vadd.f32 %v3815, %v4117
    %v4136 = vadd.f32 %v3816, %v4121
    %v4137 = vadd.f32 %v3817, %v4125
    %v4138 = vadd.f32 %v3818, %v4105
    %v4139 = vadd.f32 %v3819, %v4109
    %v4140 = vadd.f32 %v3820, %v4113
    %v4141 = vadd.f32 %v3821, %v4117
    %v4142 = vadd.f32 %v3822, %v4121
    %v4143 = vadd.f32 %v3823, %v4125
    %v4144 = vadd.f32 %v3824, %v4105
    %v4145 = vadd.f32 %v3825, %v4109
    %v4146 = vadd.f32 %v3826, %v4113
    %v4147 = vadd.f32 %v3827, %v4117
    %v4148 = vadd.f32 %v3828, %v4121
    %v4149 = vadd.f32 %v3829, %v4125
    %v4150 = vadd.f32 %v3830, %v4105
    %v4151 = vadd.f32 %v3831, %v4109
    %v4152 = vadd.f32 %v3832, %v4113
    %v4153 = vadd.f32 %v3833, %v4117
    %v4154 = vadd.f32 %v3834, %v4121
    %v4155 = vadd.f32 %v3835, %v4125
    %v4156 = vadd.f32 %v3836, %v4105
    %v4157 = vadd.f32 %v3837, %v4109
    %v4158 = vadd.f32 %v3838, %v4113
    %v4159 = vadd.f32 %v3839, %v4117
    %v4160 = vadd.f32 %v3840, %v4121
    %v4161 = vadd.f32 %v3841, %v4125
    %v4162 = vadd.f32 %v3842, %v4105
    %v4163 = vadd.f32 %v3843, %v4109
    %v4164 = vadd.f32 %v3844, %v4113
    %v4165 = vadd.f32 %v3845, %v4117
    %v4166 = vadd.f32 %v3846, %v4121
    %v4167 = vadd.f32 %v3847, %v4125
    %v4168 = vadd.f32 %v3848, %v4105
    %v4169 = vadd.f32 %v3849, %v4109
    %v4170 = vadd.f32 %v3850, %v4113
    %v4171 = vadd.f32 %v3851, %v4117
    %v4172 = vadd.f32 %v3852, %v4121
    %v4173 = vadd.f32 %v3853, %v4125
    %v4174 = vadd.f32 %v3854, %v4105
    %v4175 = vadd.f32 %v3855, %v4109
    %v4176 = vadd.f32 %v3856, %v4113
    %v4177 = vadd.f32 %v3857, %v4117
    %v4178 = vadd.f32 %v3858, %v4121
    %v4179 = vadd.f32 %v3859, %v4125
    %v4180 = vadd.f32 %v3860, %v4105
    %v4181 = vadd.f32 %v3861, %v4109
    %v4182 = vadd.f32 %v3862, %v4113
    %v4183 = vadd.f32 %v3863, %v4117
    %v4184 = vadd.f32 %v3864, %v4121
    %v4185 = vadd.f32 %v3865, %v4125
    %v4186 = vadd.f32 %v3866, %v4105
    %v4187 = vadd.f32 %v3867, %v4109
    %v4188 = vadd.f32 %v3868, %v4113
    %v4189 = vadd.f32 %v3869, %v4117
    %v4190 = vadd.f32 %v3870, %v4121
    %v4191 = vadd.f32 %v3871, %v4125
    %v4192 = vadd.f32 %v3872, %v4105
    %v4193 = vadd.f32 %v3873, %v4109
    %v4194 = vadd.f32 %v3874, %v4113
    %v4195 = vadd.f32 %v3875, %v4117
    %v4196 = vadd.f32 %v3876, %v4121
    %v4197 = vadd.f32 %v3877, %v4125
    %v4198 = vadd.f32 %v3878, %v4105
    %v4199 = vadd.f32 %v3879, %v4109
    %v4200 = vadd.f32 %v3880, %v4113
    %v4201 = vadd.f32 %v3881, %v4117
    %v4202 = vadd.f32 %v3882, %v4121
    %v4203 = vadd.f32 %v3883, %v4125
    %v4204 = vadd.f32 %v3884, %v4105
    %v4205 = vadd.f32 %v3885, %v4109
    %v4206 = vadd.f32 %v3886, %v4113
    %v4207 = vadd.f32 %v3887, %v4117
    %v4208 = vadd.f32 %v3888, %v4121
    %v4209 = vadd.f32 %v3889, %v4125
    %v4210 = vadd.f32 %v3890, %v4105
    %v4211 = vadd.f32 %v3891, %v4109
    %v4212 = vadd.f32 %v3892, %v4113
    %v4213 = vadd.f32 %v3893, %v4117
    %v4214 = vadd.f32 %v3894, %v4121
    %v4215 = vadd.f32 %v3895, %v4125
    %v4216 = vadd.f32 %v3896, %v4105
    %v4217 = vadd.f32 %v3897, %v4109
    %v4218 = vadd.f32 %v3898, %v4113
    %v4219 = vadd.f32 %v3899, %v4117
    %v4220 = vadd.f32 %v3900, %v4121
    %v4221 = vadd.f32 %v3901, %v4125
    %v4222 = vadd.f32 %v3902, %v4105
    %v4223 = vadd.f32 %v3903, %v4109
    %v4224 = vadd.f32 %v3904, %v4113
    %v4225 = vadd.f32 %v3905, %v4117
    %v4226 = vadd.f32 %v3906, %v4121
    %v4227 = vadd.f32 %v3907, %v4125
    %v4228 = vadd.f32 %v3908, %v4105
    %v4229 = vadd.f32 %v3909, %v4109
    %v4230 = vadd.f32 %v3910, %v4113
    %v4231 = vadd.f32 %v3911, %v4117
    %v4232 = vadd.f32 %v3912, %v4121
    %v4233 = vadd.f32 %v3913, %v4125
    %v4234 = vadd.f32 %v3914, %v4105
    %v4235 = vadd.f32 %v3915, %v4109
    %v4236 = vadd.f32 %v3916, %v4113
    %v4237 = vadd.f32 %v3917, %v4117
    %v4238 = vadd.f32 %v3918, %v4121
    %v4239 = vadd.f32 %v3919, %v4125
    %v4240 = vadd.f32 %v3920, %v4105
    %v4241 = vadd.f32 %v3921, %v4109
    %v4242 = vadd.f32 %v3922, %v4113
    %v4243 = vadd.f32 %v3923, %v4117
    %v4244 = vadd.f32 %v3924, %v4121
    %v4245 = vadd.f32 %v3925, %v4125
    %v4246 = vadd.f32 %v3926, %v4105
    %v4247 = vadd.f32 %v3927, %v4109
    %v4248 = vadd.f32 %v3928, %v4113
    %v4249 = vadd.f32 %v3929, %v4117
    %v4250 = vadd.f32 %v3930, %v4121
    %v4251 = vadd.f32 %v3931, %v4125
    %v4252 = vadd.f32 %v3932, %v4105
    %v4253 = vadd.f32 %v3933, %v4109
    %v4254 = vadd.f32 %v3934, %v4113
    %v4255 = vadd.f32 %v3935, %v4117
    %v4256 = vadd.f32 %v3936, %v4121
    %v4257 = vadd.f32 %v3937, %v4125
    %v4258 = vadd.f32 %v3938, %v4105
    %v4259 = vadd.f32 %v3939, %v4109
    %v4260 = vadd.f32 %v3940, %v4113
    %v4261 = vadd.f32 %v3941, %v4117
    %v4262 = vadd.f32 %v3942, %v4121
    %v4263 = vadd.f32 %v3943, %v4125
    %v4264 = vadd.f32 %v3944, %v4105
    %v4265 = vadd.f32 %v3945, %v4109
    %v4266 = vadd.f32 %v3946, %v4113
    %v4267 = vadd.f32 %v3947, %v4117
    %v4268 = vadd.f32 %v3948, %v4121
    %v4269 = vadd.f32 %v3949, %v4125
    %v4270 = vadd.f32 %v3950, %v4105
    %v4271 = vadd.f32 %v3951, %v4109
    %v4272 = vadd.f32 %v3952, %v4113
    %v4273 = vadd.f32 %v3953, %v4117
    %v4274 = vadd.f32 %v3954, %v4121
    %v4275 = vadd.f32 %v3955, %v4125
    %v4276 = vadd.f32 %v3956, %v4105
    %v4277 = vadd.f32 %v3957, %v4109
    %v4278 = vadd.f32 %v3958, %v4113
    %v4279 = vadd.f32 %v3959, %v4117
    %v4280 = vadd.f32 %v3960, %v4121
    %v4281 = vadd.f32 %v3961, %v4125
    %v4282 = vadd.f32 %v3962, %v4105
    %v4283 = vadd.f32 %v3963, %v4109
    %v4284 = vadd.f32 %v3964, %v4113
    %v4285 = vadd.f32 %v3965, %v4117
    %v4286 = vadd.f32 %v3966, %v4121
    %v4287 = vadd.f32 %v3967, %v4125
    %v4288 = vadd.f32 %v3968, %v4105
    %v4289 = vadd.f32 %v3969, %v4109
    %v4290 = vadd.f32 %v3970, %v4113
    %v4291 = vadd.f32 %v3971, %v4117
    %v4292 = vadd.f32 %v3972, %v4121
    %v4293 = vadd.f32 %v3973, %v4125
    %v4294 = vadd.f32 %v3974, %v4105
    %v4295 = vadd.f32 %v3975, %v4109
    %v4296 = vadd.f32 %v3976, %v4113
    %v4297 = vadd.f32 %v3977, %v4117
    %v4298 = vadd.f32 %v3978, %v4121
    %v4299 = vadd.f32 %v3979, %v4125
    %v4300 = vadd.f32 %v3980, %v4105
    %v4301 = vadd.f32 %v3981, %v4109
    %v4302 = vadd.f32 %v3982, %v4113
    %v4303 = vadd.f32 %v3983, %v4117
    %v4304 = vadd.f32 %v3984, %v4121
    %v4305 = vadd.f32 %v3985, %v4125
    %v4306 = vadd.f32 %v3986, %v4105
    %v4307 = vadd.f32 %v3987, %v4109
    %v4308 = vadd.f32 %v3988, %v4113
    %v4309 = vadd.f32 %v3989, %v4117
    %v4310 = vadd.f32 %v3990, %v4121
    %v4311 = vadd.f32 %v3991, %v4125
    %v4312 = vadd.f32 %v3992, %v4105
    %v4313 = vadd.f32 %v3993, %v4109
    %v4314 = vadd.f32 %v3994, %v4113
    %v4315 = vadd.f32 %v3995, %v4117
    %v4316 = vadd.f32 %v3996, %v4121
    %v4317 = vadd.f32 %v3997, %v4125
    %v4318 = vadd.f32 %v3998, %v4105
    %v4319 = vadd.f32 %v3999, %v4109
    %v4320 = vadd.f32 %v4000, %v4113
    %v4321 = vadd.f32 %v4001, %v4117
    %v4322 = vadd.f32 %v4002, %v4121
    %v4323 = vadd.f32 %v4003, %v4125
    %v4324 = vadd.f32 %v4004, %v4105
    %v4325 = vadd.f32 %v4005, %v4109
    %v4326 = vadd.f32 %v4006, %v4113
    %v4327 = vadd.f32 %v4007, %v4117
    %v4328 = vadd.f32 %v4008, %v4121
    %v4329 = vadd.f32 %v4009, %v4125
    %v4330 = vadd.f32 %v4010, %v4105
    %v4331 = vadd.f32 %v4011, %v4109
    %v4332 = vadd.f32 %v4012, %v4113
    %v4333 = vadd.f32 %v4013, %v4117
    %v4334 = vadd.f32 %v4014, %v4121
    %v4335 = vadd.f32 %v4015, %v4125
    %v4336 = vadd.f32 %v4016, %v4105
    %v4337 = vadd.f32 %v4017, %v4109
    %v4338 = vadd.f32 %v4018, %v4113
    %v4339 = vadd.f32 %v4019, %v4117
    %v4340 = vadd.f32 %v4020, %v4121
    %v4341 = vadd.f32 %v4021, %v4125
    %v4342 = vadd.f32 %v4022, %v4105
    %v4343 = vadd.f32 %v4023, %v4109
    %v4344 = vadd.f32 %v4024, %v4113
    %v4345 = vadd.f32 %v4025, %v4117
    %v4346 = vadd.f32 %v4026, %v4121
    %v4347 = vadd.f32 %v4027, %v4125
    %v4348 = vadd.f32 %v4028, %v4105
    %v4349 = vadd.f32 %v4029, %v4109
    %v4350 = vadd.f32 %v4030, %v4113
    %v4351 = vadd.f32 %v4031, %v4117
    %v4352 = vadd.f32 %v4032, %v4121
    %v4353 = vadd.f32 %v4033, %v4125
    %v4354 = vadd.f32 %v4034, %v4105
    %v4355 = vadd.f32 %v4035, %v4109
    %v4356 = vadd.f32 %v4036, %v4113
    %v4357 = vadd.f32 %v4037, %v4117
    %v4358 = vadd.f32 %v4038, %v4121
    %v4359 = vadd.f32 %v4039, %v4125
    %v4360 = vadd.f32 %v4040, %v4105
    %v4361 = vadd.f32 %v4041, %v4109
    %v4362 = vadd.f32 %v4042, %v4113
    %v4363 = vadd.f32 %v4043, %v4117
    %v4364 = vadd.f32 %v4044, %v4121
    %v4365 = vadd.f32 %v4045, %v4125
    %v4366 = vadd.f32 %v4046, %v4105
    %v4367 = vadd.f32 %v4047, %v4109
    %v4368 = vadd.f32 %v4048, %v4113
    %v4369 = vadd.f32 %v4049, %v4117
    %v4370 = vadd.f32 %v4050, %v4121
    %v4371 = vadd.f32 %v4051, %v4125
    %v4372 = vadd.f32 %v4052, %v4105
    %v4373 = vadd.f32 %v4053, %v4109
    %v4374 = vadd.f32 %v4054, %v4113
    %v4375 = vadd.f32 %v4055, %v4117
    %v4376 = vadd.f32 %v4056, %v4121
    %v4377 = vadd.f32 %v4057, %v4125
    %v4378 = vadd.f32 %v4058, %v4105
    %v4379 = vadd.f32 %v4059, %v4109
    %v4380 = vadd.f32 %v4060, %v4113
    %v4381 = vadd.f32 %v4061, %v4117
    %v4382 = vadd.f32 %v4062, %v4121
    %v4383 = vadd.f32 %v4063, %v4125
    %v4384 = vadd.f32 %v4064, %v4105
    %v4385 = vadd.f32 %v4065, %v4109
    %v4386 = vadd.f32 %v4066, %v4113
    %v4387 = vadd.f32 %v4067, %v4117
    %v4388 = vadd.f32 %v4068, %v4121
    %v4389 = vadd.f32 %v4069, %v4125
    %v4390 = vadd.f32 %v4070, %v4105
    %v4391 = vadd.f32 %v4071, %v4109
    %v4392 = vadd.f32 %v4072, %v4113
    %v4393 = vadd.f32 %v4073, %v4117
    %v4394 = vadd.f32 %v4074, %v4121
    %v4395 = vadd.f32 %v4075, %v4125
    %v4396 = vadd.f32 %v4076, %v4105
    %v4397 = vadd.f32 %v4077, %v4109
    %v4398 = vadd.f32 %v4078, %v4113
    %v4399 = vadd.f32 %v4079, %v4117
    %v4400 = vadd.f32 %v4080, %v4121
    %v4401 = vadd.f32 %v4081, %v4125
    %v4402 = vadd.f32 %v4082, %v4105
    %v4403 = vadd.f32 %v4083, %v4109
    %v4404 = vadd.f32 %v4084, %v4113
    %v4405 = vadd.f32 %v4085, %v4117
    %v4406 = vadd.f32 %v4086, %v4121
    %v4407 = vadd.f32 %v4087, %v4125
    %v4408 = vadd.f32 %v4088, %v4105
    %v4409 = vadd.f32 %v4089, %v4109
    %v4410 = vadd.f32 %v4090, %v4113
    %v4411 = vadd.f32 %v4091, %v4117
    %v4412 = vadd.f32 %v4092, %v4121
    %v4413 = vadd.f32 %v4093, %v4125
    %v4414 = vadd.f32 %v4094, %v4105
    %v4415 = vadd.f32 %v4095, %v4109
    %v4416 = vadd.f32 %v4096, %v4113
    %v4417 = vadd.f32 %v4097, %v4117
    %v4418 = vadd.f32 %v4098, %v4121
    %v4419 = vadd.f32 %v4099, %v4125
    %4420 = vst [vmem:[#allocation5] sm:$0xff] %v4132
    %4421 = vst [vmem:[#allocation5 + $0x8] sm:$0xff] %v4133
    %4422 = vst [vmem:[#allocation5 + $0x10] sm:$0xff] %v4134
    %4423 = vst [vmem:[#allocation5 + $0x18] sm:$0xff] %v4135
    %4424 = vst [vmem:[#allocation5 + $0x20] sm:$0xff] %v4136
    %4425 = vst [vmem:[#allocation5 + $0x28] sm:$0xff] %v4137
    %4426 = vst [vmem:[#allocation5 + $0x30] sm:$0xff] %v4138
    %4427 = vst [vmem:[#allocation5 + $0x38] sm:$0xff] %v4139
    %4428 = vst [vmem:[#allocation5 + $0x40] sm:$0xff] %v4140
    %4429 = vst [vmem:[#allocation5 + $0x48] sm:$0xff] %v4141
    %4430 = vst [vmem:[#allocation5 + $0x50] sm:$0xff] %v4142
    %4431 = vst [vmem:[#allocation5 + $0x58] sm:$0xff] %v4143
    %4432 = vst [vmem:[#allocation5 + $0x60] sm:$0xff] %v4144
    %4433 = vst [vmem:[#allocation5 + $0x68] sm:$0xff] %v4145
    %4434 = vst [vmem:[#allocation5 + $0x70] sm:$0xff] %v4146
    %4435 = vst [vmem:[#allocation5 + $0x78] sm:$0xff] %v4147
    %4436 = vst [vmem:[#allocation5 + $0x80] sm:$0xff] %v4148
    %4437 = vst [vmem:[#allocation5 + $0x88] sm:$0xff] %v4149
    %4438 = vst [vmem:[#allocation5 + $0x90] sm:$0xff] %v4150
    %4439 = vst [vmem:[#allocation5 + $0x98] sm:$0xff] %v4151
    %4440 = vst [vmem:[#allocation5 + $0xa0] sm:$0xff] %v4152
    %4441 = vst [vmem:[#allocation5 + $0xa8] sm:$0xff] %v4153
    %4442 = vst [vmem:[#allocation5 + $0xb0] sm:$0xff] %v4154
    %4443 = vst [vmem:[#allocation5 + $0xb8] sm:$0xff] %v4155
    %4444 = vst [vmem:[#allocation5 + $0xc0] sm:$0xff] %v4156
    %4445 = vst [vmem:[#allocation5 + $0xc8] sm:$0xff] %v4157
    %4446 = vst [vmem:[#allocation5 + $0xd0] sm:$0xff] %v4158
    %4447 = vst [vmem:[#allocation5 + $0xd8] sm:$0xff] %v4159
    %4448 = vst [vmem:[#allocation5 + $0xe0] sm:$0xff] %v4160
    %4449 = vst [vmem:[#allocation5 + $0xe8] sm:$0xff] %v4161
    %4450 = vst [vmem:[#allocation5 + $0xf0] sm:$0xff] %v4162
    %4451 = vst [vmem:[#allocation5 + $0xf8] sm:$0xff] %v4163
    %4452 = vst [vmem:[#allocation5 + $0x100] sm:$0xff] %v4164
    %4453 = vst [vmem:[#allocation5 + $0x108] sm:$0xff] %v4165
    %4454 = vst [vmem:[#allocation5 + $0x110] sm:$0xff] %v4166
    %4455 = vst [vmem:[#allocation5 + $0x118] sm:$0xff] %v4167
    %4456 = vst [vmem:[#allocation5 + $0x120] sm:$0xff] %v4168
    %4457 = vst [vmem:[#allocation5 + $0x128] sm:$0xff] %v4169
    %4458 = vst [vmem:[#allocation5 + $0x130] sm:$0xff] %v4170
    %4459 = vst [vmem:[#allocation5 + $0x138] sm:$0xff] %v4171
    %4460 = vst [vmem:[#allocation5 + $0x140] sm:$0xff] %v4172
    %4461 = vst [vmem:[#allocation5 + $0x148] sm:$0xff] %v4173
    %4462 = vst [vmem:[#allocation5 + $0x150] sm:$0xff] %v4174
    %4463 = vst [vmem:[#allocation5 + $0x158] sm:$0xff] %v4175
    %4464 = vst [vmem:[#allocation5 + $0x160] sm:$0xff] %v4176
    %4465 = vst [vmem:[#allocation5 + $0x168] sm:$0xff] %v4177
    %4466 = vst [vmem:[#allocation5 + $0x170] sm:$0xff] %v4178
    %4467 = vst [vmem:[#allocation5 + $0x178] sm:$0xff] %v4179
    %4468 = vst [vmem:[#allocation5 + $0x180] sm:$0xff] %v4180
    %4469 = vst [vmem:[#allocation5 + $0x188] sm:$0xff] %v4181
    %4470 = vst [vmem:[#allocation5 + $0x190] sm:$0xff] %v4182
    %4471 = vst [vmem:[#allocation5 + $0x198] sm:$0xff] %v4183
    %4472 = vst [vmem:[#allocation5 + $0x1a0] sm:$0xff] %v4184
    %4473 = vst [vmem:[#allocation5 + $0x1a8] sm:$0xff] %v4185
    %4474 = vst [vmem:[#allocation5 + $0x1b0] sm:$0xff] %v4186
    %4475 = vst [vmem:[#allocation5 + $0x1b8] sm:$0xff] %v4187
    %4476 = vst [vmem:[#allocation5 + $0x1c0] sm:$0xff] %v4188
    %4477 = vst [vmem:[#allocation5 + $0x1c8] sm:$0xff] %v4189
    %4478 = vst [vmem:[#allocation5 + $0x1d0] sm:$0xff] %v4190
    %4479 = vst [vmem:[#allocation5 + $0x1d8] sm:$0xff] %v4191
    %4480 = vst [vmem:[#allocation5 + $0x1e0] sm:$0xff] %v4192
    %4481 = vst [vmem:[#allocation5 + $0x1e8] sm:$0xff] %v4193
    %4482 = vst [vmem:[#allocation5 + $0x1f0] sm:$0xff] %v4194
    %4483 = vst [vmem:[#allocation5 + $0x1f8] sm:$0xff] %v4195
    %4484 = vst [vmem:[#allocation5 + $0x200] sm:$0xff] %v4196
    %4485 = vst [vmem:[#allocation5 + $0x208] sm:$0xff] %v4197
    %4486 = vst [vmem:[#allocation5 + $0x210] sm:$0xff] %v4198
    %4487 = vst [vmem:[#allocation5 + $0x218] sm:$0xff] %v4199
    %4488 = vst [vmem:[#allocation5 + $0x220] sm:$0xff] %v4200
    %4489 = vst [vmem:[#allocation5 + $0x228] sm:$0xff] %v4201
    %4490 = vst [vmem:[#allocation5 + $0x230] sm:$0xff] %v4202
    %4491 = vst [vmem:[#allocation5 + $0x238] sm:$0xff] %v4203
    %4492 = vst [vmem:[#allocation5 + $0x240] sm:$0xff] %v4204
    %4493 = vst [vmem:[#allocation5 + $0x248] sm:$0xff] %v4205
    %4494 = vst [vmem:[#allocation5 + $0x250] sm:$0xff] %v4206
    %4495 = vst [vmem:[#allocation5 + $0x258] sm:$0xff] %v4207
    %4496 = vst [vmem:[#allocation5 + $0x260] sm:$0xff] %v4208
    %4497 = vst [vmem:[#allocation5 + $0x268] sm:$0xff] %v4209
    %4498 = vst [vmem:[#allocation5 + $0x270] sm:$0xff] %v4210
    %4499 = vst [vmem:[#allocation5 + $0x278] sm:$0xff] %v4211
    %4500 = vst [vmem:[#allocation5 + $0x280] sm:$0xff] %v4212
    %4501 = vst [vmem:[#allocation5 + $0x288] sm:$0xff] %v4213
    %4502 = vst [vmem:[#allocation5 + $0x290] sm:$0xff] %v4214
    %4503 = vst [vmem:[#allocation5 + $0x298] sm:$0xff] %v4215
    %4504 = vst [vmem:[#allocation5 + $0x2a0] sm:$0xff] %v4216
    %4505 = vst [vmem:[#allocation5 + $0x2a8] sm:$0xff] %v4217
    %4506 = vst [vmem:[#allocation5 + $0x2b0] sm:$0xff] %v4218
    %4507 = vst [vmem:[#allocation5 + $0x2b8] sm:$0xff] %v4219
    %4508 = vst [vmem:[#allocation5 + $0x2c0] sm:$0xff] %v4220
    %4509 = vst [vmem:[#allocation5 + $0x2c8] sm:$0xff] %v4221
    %4510 = vst [vmem:[#allocation5 + $0x2d0] sm:$0xff] %v4222
    %4511 = vst [vmem:[#allocation5 + $0x2d8] sm:$0xff] %v4223
    %4512 = vst [vmem:[#allocation5 + $0x2e0] sm:$0xff] %v4224
    %4513 = vst [vmem:[#allocation5 + $0x2e8] sm:$0xff] %v4225
    %4514 = vst [vmem:[#allocation5 + $0x2f0] sm:$0xff] %v4226
    %4515 = vst [vmem:[#allocation5 + $0x2f8] sm:$0xff] %v4227
    %4516 = vst [vmem:[#allocation5 + $0x300] sm:$0xff] %v4228
    %4517 = vst [vmem:[#allocation5 + $0x308] sm:$0xff] %v4229
    %4518 = vst [vmem:[#allocation5 + $0x310] sm:$0xff] %v4230
    %4519 = vst [vmem:[#allocation5 + $0x318] sm:$0xff] %v4231
    %4520 = vst [vmem:[#allocation5 + $0x320] sm:$0xff] %v4232
    %4521 = vst [vmem:[#allocation5 + $0x328] sm:$0xff] %v4233
    %4522 = vst [vmem:[#allocation5 + $0x330] sm:$0xff] %v4234
    %4523 = vst [vmem:[#allocation5 + $0x338] sm:$0xff] %v4235
    %4524 = vst [vmem:[#allocation5 + $0x340] sm:$0xff] %v4236
    %4525 = vst [vmem:[#allocation5 + $0x348] sm:$0xff] %v4237
    %4526 = vst [vmem:[#allocation5 + $0x350] sm:$0xff] %v4238
    %4527 = vst [vmem:[#allocation5 + $0x358] sm:$0xff] %v4239
    %4528 = vst [vmem:[#allocation5 + $0x360] sm:$0xff] %v4240
    %4529 = vst [vmem:[#allocation5 + $0x368] sm:$0xff] %v4241
    %4530 = vst [vmem:[#allocation5 + $0x370] sm:$0xff] %v4242
    %4531 = vst [vmem:[#allocation5 + $0x378] sm:$0xff] %v4243
    %4532 = vst [vmem:[#allocation5 + $0x380] sm:$0xff] %v4244
    %4533 = vst [vmem:[#allocation5 + $0x388] sm:$0xff] %v4245
    %4534 = vst [vmem:[#allocation5 + $0x390] sm:$0xff] %v4246
    %4535 = vst [vmem:[#allocation5 + $0x398] sm:$0xff] %v4247
    %4536 = vst [vmem:[#allocation5 + $0x3a0] sm:$0xff] %v4248
    %4537 = vst [vmem:[#allocation5 + $0x3a8] sm:$0xff] %v4249
    %4538 = vst [vmem:[#allocation5 + $0x3b0] sm:$0xff] %v4250
    %4539 = vst [vmem:[#allocation5 + $0x3b8] sm:$0xff] %v4251
    %4540 = vst [vmem:[#allocation5 + $0x3c0] sm:$0xff] %v4252
    %4541 = vst [vmem:[#allocation5 + $0x3c8] sm:$0xff] %v4253
    %4542 = vst [vmem:[#allocation5 + $0x3d0] sm:$0xff] %v4254
    %4543 = vst [vmem:[#allocation5 + $0x3d8] sm:$0xff] %v4255
    %4544 = vst [vmem:[#allocation5 + $0x3e0] sm:$0xff] %v4256
    %4545 = vst [vmem:[#allocation5 + $0x3e8] sm:$0xff] %v4257
    %4546 = vst [vmem:[#allocation5 + $0x3f0] sm:$0xff] %v4258
    %4547 = vst [vmem:[#allocation5 + $0x3f8] sm:$0xff] %v4259
    %4548 = vst [vmem:[#allocation5 + $0x400] sm:$0xff] %v4260
    %4549 = vst [vmem:[#allocation5 + $0x408] sm:$0xff] %v4261
    %4550 = vst [vmem:[#allocation5 + $0x410] sm:$0xff] %v4262
    %4551 = vst [vmem:[#allocation5 + $0x418] sm:$0xff] %v4263
    %4552 = vst [vmem:[#allocation5 + $0x420] sm:$0xff] %v4264
    %4553 = vst [vmem:[#allocation5 + $0x428] sm:$0xff] %v4265
    %4554 = vst [vmem:[#allocation5 + $0x430] sm:$0xff] %v4266
    %4555 = vst [vmem:[#allocation5 + $0x438] sm:$0xff] %v4267
    %4556 = vst [vmem:[#allocation5 + $0x440] sm:$0xff] %v4268
    %4557 = vst [vmem:[#allocation5 + $0x448] sm:$0xff] %v4269
    %4558 = vst [vmem:[#allocation5 + $0x450] sm:$0xff] %v4270
    %4559 = vst [vmem:[#allocation5 + $0x458] sm:$0xff] %v4271
    %4560 = vst [vmem:[#allocation5 + $0x460] sm:$0xff] %v4272
    %4561 = vst [vmem:[#allocation5 + $0x468] sm:$0xff] %v4273
    %4562 = vst [vmem:[#allocation5 + $0x470] sm:$0xff] %v4274
    %4563 = vst [vmem:[#allocation5 + $0x478] sm:$0xff] %v4275
    %4564 = vst [vmem:[#allocation5 + $0x480] sm:$0xff] %v4276
    %4565 = vst [vmem:[#allocation5 + $0x488] sm:$0xff] %v4277
    %4566 = vst [vmem:[#allocation5 + $0x490] sm:$0xff] %v4278
    %4567 = vst [vmem:[#allocation5 + $0x498] sm:$0xff] %v4279
    %4568 = vst [vmem:[#allocation5 + $0x4a0] sm:$0xff] %v4280
    %4569 = vst [vmem:[#allocation5 + $0x4a8] sm:$0xff] %v4281
    %4570 = vst [vmem:[#allocation5 + $0x4b0] sm:$0xff] %v4282
    %4571 = vst [vmem:[#allocation5 + $0x4b8] sm:$0xff] %v4283
    %4572 = vst [vmem:[#allocation5 + $0x4c0] sm:$0xff] %v4284
    %4573 = vst [vmem:[#allocation5 + $0x4c8] sm:$0xff] %v4285
    %4574 = vst [vmem:[#allocation5 + $0x4d0] sm:$0xff] %v4286
    %4575 = vst [vmem:[#allocation5 + $0x4d8] sm:$0xff] %v4287
    %4576 = vst [vmem:[#allocation5 + $0x4e0] sm:$0xff] %v4288
    %4577 = vst [vmem:[#allocation5 + $0x4e8] sm:$0xff] %v4289
    %4578 = vst [vmem:[#allocation5 + $0x4f0] sm:$0xff] %v4290
    %4579 = vst [vmem:[#allocation5 + $0x4f8] sm:$0xff] %v4291
    %4580 = vst [vmem:[#allocation5 + $0x500] sm:$0xff] %v4292
    %4581 = vst [vmem:[#allocation5 + $0x508] sm:$0xff] %v4293
    %4582 = vst [vmem:[#allocation5 + $0x510] sm:$0xff] %v4294
    %4583 = vst [vmem:[#allocation5 + $0x518] sm:$0xff] %v4295
    %4584 = vst [vmem:[#allocation5 + $0x520] sm:$0xff] %v4296
    %4585 = vst [vmem:[#allocation5 + $0x528] sm:$0xff] %v4297
    %4586 = vst [vmem:[#allocation5 + $0x530] sm:$0xff] %v4298
    %4587 = vst [vmem:[#allocation5 + $0x538] sm:$0xff] %v4299
    %4588 = vst [vmem:[#allocation5 + $0x540] sm:$0xff] %v4300
    %4589 = vst [vmem:[#allocation5 + $0x548] sm:$0xff] %v4301
    %4590 = vst [vmem:[#allocation5 + $0x550] sm:$0xff] %v4302
    %4591 = vst [vmem:[#allocation5 + $0x558] sm:$0xff] %v4303
    %4592 = vst [vmem:[#allocation5 + $0x560] sm:$0xff] %v4304
    %4593 = vst [vmem:[#allocation5 + $0x568] sm:$0xff] %v4305
    %4594 = vst [vmem:[#allocation5 + $0x570] sm:$0xff] %v4306
    %4595 = vst [vmem:[#allocation5 + $0x578] sm:$0xff] %v4307
    %4596 = vst [vmem:[#allocation5 + $0x580] sm:$0xff] %v4308
    %4597 = vst [vmem:[#allocation5 + $0x588] sm:$0xff] %v4309
    %4598 = vst [vmem:[#allocation5 + $0x590] sm:$0xff] %v4310
    %4599 = vst [vmem:[#allocation5 + $0x598] sm:$0xff] %v4311
    %4600 = vst [vmem:[#allocation5 + $0x5a0] sm:$0xff] %v4312
    %4601 = vst [vmem:[#allocation5 + $0x5a8] sm:$0xff] %v4313
    %4602 = vst [vmem:[#allocation5 + $0x5b0] sm:$0xff] %v4314
    %4603 = vst [vmem:[#allocation5 + $0x5b8] sm:$0xff] %v4315
    %4604 = vst [vmem:[#allocation5 + $0x5c0] sm:$0xff] %v4316
    %4605 = vst [vmem:[#allocation5 + $0x5c8] sm:$0xff] %v4317
    %4606 = vst [vmem:[#allocation5 + $0x5d0] sm:$0xff] %v4318
    %4607 = vst [vmem:[#allocation5 + $0x5d8] sm:$0xff] %v4319
    %4608 = vst [vmem:[#allocation5 + $0x5e0] sm:$0xff] %v4320
    %4609 = vst [vmem:[#allocation5 + $0x5e8] sm:$0xff] %v4321
    %4610 = vst [vmem:[#allocation5 + $0x5f0] sm:$0xff] %v4322
    %4611 = vst [vmem:[#allocation5 + $0x5f8] sm:$0xff] %v4323
    %4612 = vst [vmem:[#allocation5 + $0x600] sm:$0xff] %v4324
    %4613 = vst [vmem:[#allocation5 + $0x608] sm:$0xff] %v4325
    %4614 = vst [vmem:[#allocation5 + $0x610] sm:$0xff] %v4326
    %4615 = vst [vmem:[#allocation5 + $0x618] sm:$0xff] %v4327
    %4616 = vst [vmem:[#allocation5 + $0x620] sm:$0xff] %v4328
    %4617 = vst [vmem:[#allocation5 + $0x628] sm:$0xff] %v4329
    %4618 = vst [vmem:[#allocation5 + $0x630] sm:$0xff] %v4330
    %4619 = vst [vmem:[#allocation5 + $0x638] sm:$0xff] %v4331
    %4620 = vst [vmem:[#allocation5 + $0x640] sm:$0xff] %v4332
    %4621 = vst [vmem:[#allocation5 + $0x648] sm:$0xff] %v4333
    %4622 = vst [vmem:[#allocation5 + $0x650] sm:$0xff] %v4334
    %4623 = vst [vmem:[#allocation5 + $0x658] sm:$0xff] %v4335
    %4624 = vst [vmem:[#allocation5 + $0x660] sm:$0xff] %v4336
    %4625 = vst [vmem:[#allocation5 + $0x668] sm:$0xff] %v4337
    %4626 = vst [vmem:[#allocation5 + $0x670] sm:$0xff] %v4338
    %4627 = vst [vmem:[#allocation5 + $0x678] sm:$0xff] %v4339
    %4628 = vst [vmem:[#allocation5 + $0x680] sm:$0xff] %v4340
    %4629 = vst [vmem:[#allocation5 + $0x688] sm:$0xff] %v4341
    %4630 = vst [vmem:[#allocation5 + $0x690] sm:$0xff] %v4342
    %4631 = vst [vmem:[#allocation5 + $0x698] sm:$0xff] %v4343
    %4632 = vst [vmem:[#allocation5 + $0x6a0] sm:$0xff] %v4344
    %4633 = vst [vmem:[#allocation5 + $0x6a8] sm:$0xff] %v4345
    %4634 = vst [vmem:[#allocation5 + $0x6b0] sm:$0xff] %v4346
    %4635 = vst [vmem:[#allocation5 + $0x6b8] sm:$0xff] %v4347
    %4636 = vst [vmem:[#allocation5 + $0x6c0] sm:$0xff] %v4348
    %4637 = vst [vmem:[#allocation5 + $0x6c8] sm:$0xff] %v4349
    %4638 = vst [vmem:[#allocation5 + $0x6d0] sm:$0xff] %v4350
    %4639 = vst [vmem:[#allocation5 + $0x6d8] sm:$0xff] %v4351
    %4640 = vst [vmem:[#allocation5 + $0x6e0] sm:$0xff] %v4352
    %4641 = vst [vmem:[#allocation5 + $0x6e8] sm:$0xff] %v4353
    %4642 = vst [vmem:[#allocation5 + $0x6f0] sm:$0xff] %v4354
    %4643 = vst [vmem:[#allocation5 + $0x6f8] sm:$0xff] %v4355
    %4644 = vst [vmem:[#allocation5 + $0x700] sm:$0xff] %v4356
    %4645 = vst [vmem:[#allocation5 + $0x708] sm:$0xff] %v4357
    %4646 = vst [vmem:[#allocation5 + $0x710] sm:$0xff] %v4358
    %4647 = vst [vmem:[#allocation5 + $0x718] sm:$0xff] %v4359
    %4648 = vst [vmem:[#allocation5 + $0x720] sm:$0xff] %v4360
    %4649 = vst [vmem:[#allocation5 + $0x728] sm:$0xff] %v4361
    %4650 = vst [vmem:[#allocation5 + $0x730] sm:$0xff] %v4362
    %4651 = vst [vmem:[#allocation5 + $0x738] sm:$0xff] %v4363
    %4652 = vst [vmem:[#allocation5 + $0x740] sm:$0xff] %v4364
    %4653 = vst [vmem:[#allocation5 + $0x748] sm:$0xff] %v4365
    %4654 = vst [vmem:[#allocation5 + $0x750] sm:$0xff] %v4366
    %4655 = vst [vmem:[#allocation5 + $0x758] sm:$0xff] %v4367
    %4656 = vst [vmem:[#allocation5 + $0x760] sm:$0xff] %v4368
    %4657 = vst [vmem:[#allocation5 + $0x768] sm:$0xff] %v4369
    %4658 = vst [vmem:[#allocation5 + $0x770] sm:$0xff] %v4370
    %4659 = vst [vmem:[#allocation5 + $0x778] sm:$0xff] %v4371
    %4660 = vst [vmem:[#allocation5 + $0x780] sm:$0xff] %v4372
    %4661 = vst [vmem:[#allocation5 + $0x788] sm:$0xff] %v4373
    %4662 = vst [vmem:[#allocation5 + $0x790] sm:$0xff] %v4374
    %4663 = vst [vmem:[#allocation5 + $0x798] sm:$0xff] %v4375
    %4664 = vst [vmem:[#allocation5 + $0x7a0] sm:$0xff] %v4376
    %4665 = vst [vmem:[#allocation5 + $0x7a8] sm:$0xff] %v4377
    %4666 = vst [vmem:[#allocation5 + $0x7b0] sm:$0xff] %v4378
    %4667 = vst [vmem:[#allocation5 + $0x7b8] sm:$0xff] %v4379
    %4668 = vst [vmem:[#allocation5 + $0x7c0] sm:$0xff] %v4380
    %4669 = vst [vmem:[#allocation5 + $0x7c8] sm:$0xff] %v4381
    %4670 = vst [vmem:[#allocation5 + $0x7d0] sm:$0xff] %v4382
    %4671 = vst [vmem:[#allocation5 + $0x7d8] sm:$0xff] %v4383
    %4672 = vst [vmem:[#allocation5 + $0x7e0] sm:$0xff] %v4384
    %4673 = vst [vmem:[#allocation5 + $0x7e8] sm:$0xff] %v4385
    %4674 = vst [vmem:[#allocation5 + $0x7f0] sm:$0xff] %v4386
    %4675 = vst [vmem:[#allocation5 + $0x7f8] sm:$0xff] %v4387
    %4676 = vst [vmem:[#allocation5 + $0x800] sm:$0xff] %v4388
    %4677 = vst [vmem:[#allocation5 + $0x808] sm:$0xff] %v4389
    %4678 = vst [vmem:[#allocation5 + $0x810] sm:$0xff] %v4390
    %4679 = vst [vmem:[#allocation5 + $0x818] sm:$0xff] %v4391
    %4680 = vst [vmem:[#allocation5 + $0x820] sm:$0xff] %v4392
    %4681 = vst [vmem:[#allocation5 + $0x828] sm:$0xff] %v4393
    %4682 = vst [vmem:[#allocation5 + $0x830] sm:$0xff] %v4394
    %4683 = vst [vmem:[#allocation5 + $0x838] sm:$0xff] %v4395
    %4684 = vst [vmem:[#allocation5 + $0x840] sm:$0xff] %v4396
    %4685 = vst [vmem:[#allocation5 + $0x848] sm:$0xff] %v4397
    %4686 = vst [vmem:[#allocation5 + $0x850] sm:$0xff] %v4398
    %4687 = vst [vmem:[#allocation5 + $0x858] sm:$0xff] %v4399
    %4688 = vst [vmem:[#allocation5 + $0x860] sm:$0xff] %v4400
    %4689 = vst [vmem:[#allocation5 + $0x868] sm:$0xff] %v4401
    %4690 = vst [vmem:[#allocation5 + $0x870] sm:$0xff] %v4402
    %4691 = vst [vmem:[#allocation5 + $0x878] sm:$0xff] %v4403
    %4692 = vst [vmem:[#allocation5 + $0x880] sm:$0xff] %v4404
    %4693 = vst [vmem:[#allocation5 + $0x888] sm:$0xff] %v4405
    %4694 = vst [vmem:[#allocation5 + $0x890] sm:$0xff] %v4406
    %4695 = vst [vmem:[#allocation5 + $0x898] sm:$0xff] %v4407
    %4696 = vst [vmem:[#allocation5 + $0x8a0] sm:$0xff] %v4408
    %4697 = vst [vmem:[#allocation5 + $0x8a8] sm:$0xff] %v4409
    %4698 = vst [vmem:[#allocation5 + $0x8b0] sm:$0xff] %v4410
    %4699 = vst [vmem:[#allocation5 + $0x8b8] sm:$0xff] %v4411
    %4700 = vst [vmem:[#allocation5 + $0x8c0] sm:$0xff] %v4412
    %4701 = vst [vmem:[#allocation5 + $0x8c8] sm:$0xff] %v4413
    %4702 = vst [vmem:[#allocation5 + $0x8d0] sm:$0xff] %v4414
    %4703 = vst [vmem:[#allocation5 + $0x8d8] sm:$0xff] %v4415
    %4704 = vst [vmem:[#allocation5 + $0x8e0] sm:$0xff] %v4416
    %4705 = vst [vmem:[#allocation5 + $0x8e8] sm:$0xff] %v4417
    %4706 = vst [vmem:[#allocation5 + $0x8f0] sm:$0xff] %v4418
    %4707 = vst [vmem:[#allocation5 + $0x8f8] sm:$0xff] %v4419
    // Predicated region
    $region26: #{dropout_add_layernorm.1} parent=1 // pred_check
      _
    $region27: #{dropout_add_layernorm.1} parent=1 // pred_check_branch
      %4709 = sbr.rel (0) target = $region29
    $region28: #{dropout_add_layernorm.1} parent=1 // pred_region
      %s4711 = ssub.s32 36864, 36864
      %4712 = vsyncadd [#allocation4], %s4711
      %s4713 = sshll.u32 [#allocation5], 4
      %s4714 = int_to_ptr.vmem [resolvable:$true] %s4713
      %4719 = dma.vmem_to_hbm [thread:$0]  %s4714, 36864, %s5, [#allocation4], 768, 768, 48
    $region29: #{dropout_add_layernorm.1} parent=1 // pred_fallthru
      _
    // Predicated region
    $region30: #{dropout_add_layernorm.1} parent=1 // pred_check
      _
    $region31: #{dropout_add_layernorm.1} parent=1 // pred_check_branch
      %4721 = sbr.rel (0) target = $region33
    $region32: #{dropout_add_layernorm.1} parent=1 // pred_region
      %4722 = dma.done [#allocation4], 36864
    $region33: #{dropout_add_layernorm.1} parent=1 // pred_fallthru
      _
    %4723 = vsyncpa [#allocation3], 1
    %4724 = vsyncpa [#allocation4], 1

</llo_original>
